<compile_context>
chip_gen: v6e
topology: v6e:2x2x1
jax: 0.10.0
libtpu: 0.0.40
codegen_flags: <defaults>
</compile_context>

<pallas_src>
import functools

import jax
import jax.numpy as jnp
from jax.experimental import pallas as pl
from jax.experimental.pallas import tpu as pltpu

_O_PAD = 128  # lane-dense padded output width for the Linear head


def _lstm_last_kernel(x_ref, wih1_ref, whh1_ref, b1_ref,
                      wcat2_ref, b2_ref, wout_ref, bout_ref,
                      out_ref, *, batch, seq_len, hidden_dim):
    B, T, H = batch, seq_len, hidden_dim

    # Hoisted layer-1 input projection for ALL timesteps: (T*B, 4H) in f32.
    gx1 = (jnp.dot(x_ref[...], wih1_ref[...],
                   preferred_element_type=jnp.float32)
           + b1_ref[...])

    # Hoist the (1,4H)->(B,4H) bias broadcast out of the recurrence.
    b2b = jnp.broadcast_to(b2_ref[...], (B, 4 * H))

    def gates_to_hc(pre, c):
        # PyTorch gate order: [i, f, g, o]; all elementwise math stays f32.
        i_g = jax.nn.sigmoid(pre[:, 0 * H:1 * H])
        f_g = jax.nn.sigmoid(pre[:, 1 * H:2 * H])
        g_g = jnp.tanh(pre[:, 2 * H:3 * H])
        o_g = jax.nn.sigmoid(pre[:, 3 * H:4 * H])
        c_new = f_g * c + i_g * g_g
        h_new = o_g * jnp.tanh(c_new)
        return h_new, c_new

    h1 = jnp.zeros((B, H), jnp.float32)
    c1 = jnp.zeros((B, H), jnp.float32)
    h2 = jnp.zeros((B, H), jnp.float32)
    c2 = jnp.zeros((B, H), jnp.float32)

    # Serial recurrence, fully unrolled (T is small & static); only two MXU
    # matmuls per timestep remain on the sequential critical path.
    for t in range(T):
        # Layer 1: input projection is precomputed, only h1 @ W_hh1 in loop.
        g1 = gx1[t * B:(t + 1) * B, :] + jnp.dot(
            h1.astype(jnp.bfloat16), whh1_ref[...],
            preferred_element_type=jnp.float32)
        h1, c1 = gates_to_hc(g1, c1)

        # Layer 2: single fused matmul over concatenated [h1 | h2].
        hcat = jnp.concatenate([h1, h2], axis=-1).astype(jnp.bfloat16)
        g2 = jnp.dot(hcat, wcat2_ref[...],
                     preferred_element_type=jnp.float32) + b2b
        h2, c2 = gates_to_hc(g2, c2)

    # hidden2out on the final layer-2 hidden state (ht[-1]); padded 128-lane
    # output for a lane-dense store (sliced to output_dim in the wrapper).
    out_ref[...] = (jnp.dot(h2.astype(jnp.bfloat16), wout_ref[...],
                            preferred_element_type=jnp.float32)
                    + bout_ref[...])


def lstm_last_gr_forward(x, params, *, hidden_dim):
    """x: (B, 1, T, D) float32. Returns (out_wrd, out_wrd), each (B, output_dim)."""
    B = x.shape[0]
    T = x.shape[2]
    D = x.shape[3]
    H = hidden_dim
    O = params["w_out"].shape[0]

    # Reshape exactly like the PyTorch module, then go time-major and flatten
    # (T, B) so the layer-1 input projection is one matmul.
    x_btd = x.reshape(B, T, D)
    x_tb_d = jnp.transpose(x_btd, (1, 0, 2)).reshape(T * B, D)
    x_tb_d = x_tb_d.astype(jnp.bfloat16)

    # Weights transposed for row-major (B,K)@(K,4H) matmuls; bf16 MXU operands,
    # f32 biases (accumulation and gate math stay f32 in the kernel).
    wih1 = params["w_ih_l0"].T.astype(jnp.bfloat16)                     # (D, 4H)
    whh1 = params["w_hh_l0"].T.astype(jnp.bfloat16)                     # (H, 4H)
    b1 = (params["b_ih_l0"] + params["b_hh_l0"]
          ).reshape(1, 4 * H).astype(jnp.float32)
    # Layer 2: stack [W_ih ; W_hh] so [h1|h2] @ Wcat is one fused matmul.
    wcat2 = jnp.concatenate([params["w_ih_l1"].T, params["w_hh_l1"].T],
                            axis=0).astype(jnp.bfloat16)                # (2H, 4H)
    b2 = (params["b_ih_l1"] + params["b_hh_l1"]
          ).reshape(1, 4 * H).astype(jnp.float32)
    # Pad the Linear head to 128 output lanes; zero-pad is exact.
    wout = jnp.zeros((H, _O_PAD), jnp.float32).at[:, :O].set(params["w_out"].T)
    wout = wout.astype(jnp.bfloat16)
    bout = jnp.zeros((1, _O_PAD), jnp.float32).at[:, :O].set(params["b_out"])

    kernel = functools.partial(_lstm_last_kernel,
                               batch=B, seq_len=T, hidden_dim=H)

    in_specs = [pl.BlockSpec(memory_space=pltpu.MemorySpace.VMEM)
                for _ in range(8)]
    out_pad = pl.pallas_call(
        kernel,
        out_shape=jax.ShapeDtypeStruct((B, _O_PAD), jnp.float32),
        in_specs=in_specs,
        out_specs=pl.BlockSpec(memory_space=pltpu.MemorySpace.VMEM),
    )(x_tb_d, wih1, whh1, b1, wcat2, b2, wout, bout)

    out_wrd = out_pad[:, :O]
    return out_wrd, out_wrd


def _reference_forward(x, params, *, hidden_dim):
    """Pure-JAX f32 reference (inference mode, no dropout, alpha=None path)."""
    B = x.shape[0]
    T = x.shape[2]
    D = x.shape[3]
    H = hidden_dim
    xs = x.reshape(B, T, D)

    def run_layer(inp, wih, whh, bih, bhh):
        def step(carry, x_t):
            h, c = carry
            gates = x_t @ wih.T + h @ whh.T + bih + bhh
            i = jax.nn.sigmoid(gates[:, 0 * H:1 * H])
            f = jax.nn.sigmoid(gates[:, 1 * H:2 * H])
            g = jnp.tanh(gates[:, 2 * H:3 * H])
            o = jax.nn.sigmoid(gates[:, 3 * H:4 * H])
            c = f * c + i * g
            h = o * jnp.tanh(c)
            return (h, c), h
        init = (jnp.zeros((B, H), jnp.float32), jnp.zeros((B, H), jnp.float32))
        (h_last, _), ys = jax.lax.scan(step, init, jnp.transpose(inp, (1, 0, 2)))
        return jnp.transpose(ys, (1, 0, 2)), h_last

    y1, _ = run_layer(xs, params["w_ih_l0"], params["w_hh_l0"],
                      params["b_ih_l0"], params["b_hh_l0"])
    _, h_last = run_layer(y1, params["w_ih_l1"], params["w_hh_l1"],
                          params["b_ih_l1"], params["b_hh_l1"])
    out = h_last @ params["w_out"].T + params["b_out"]
    return out, out


def init_params(key, input_dim, hidden_dim, output_dim):
    """PyTorch-style uniform(-1/sqrt(H), 1/sqrt(H)) init, deterministic."""
    H = hidden_dim
    bound = 1.0 / jnp.sqrt(jnp.float32(H))
    shapes = {
        "w_ih_l0": (4 * H, input_dim),
        "w_hh_l0": (4 * H, H),
        "b_ih_l0": (4 * H,),
        "b_hh_l0": (4 * H,),
        "w_ih_l1": (4 * H, H),
        "w_hh_l1": (4 * H, H),
        "b_ih_l1": (4 * H,),
        "b_hh_l1": (4 * H,),
        "w_out": (output_dim, H),
        "b_out": (output_dim,),
    }
    params = {}
    keys = jax.random.split(key, len(shapes))
    for k, (name, shp) in zip(keys, shapes.items()):
        params[name] = jax.random.uniform(
            k, shp, jnp.float32, minval=-bound, maxval=bound)
    return params


if __name__ == "__main__":
    # Small shapes consistent with the module's forward: x is (B, 1, T, D).
    B, T, D = 2, 8, 40
    HIDDEN, OUT = 128, 2

    key = jax.random.PRNGKey(0)
    kx, kp = jax.random.split(key)
    x = jax.random.normal(kx, (B, 1, T, D), dtype=jnp.float32)
    params = init_params(kp, D, HIDDEN, OUT)

    out, out2 = lstm_last_gr_forward(x, params, hidden_dim=HIDDEN)
    jax.block_until_ready(out)

    ref, _ = _reference_forward(x, params, hidden_dim=HIDDEN)
    assert out.shape == (B, OUT)
    # bf16 matmul operands (f32 accumulation) -> loosened tolerance vs f32 ref.
    assert jnp.allclose(out, ref, atol=5e-2, rtol=5e-2), (out, ref)
    assert jnp.array_equal(out, out2)

    print("KERNEL_OK")
</pallas_src>

<mosaic_0001>
module attributes {stable_mosaic.version = 11 : i64} {
  func.func @_lstm_last_kernel(%arg0: memref<16x40xbf16, #tpu.memory_space<vmem>>, %arg1: memref<40x512xbf16, #tpu.memory_space<vmem>>, %arg2: memref<128x512xbf16, #tpu.memory_space<vmem>>, %arg3: memref<1x512xf32, #tpu.memory_space<vmem>>, %arg4: memref<256x512xbf16, #tpu.memory_space<vmem>>, %arg5: memref<1x512xf32, #tpu.memory_space<vmem>>, %arg6: memref<128x128xbf16, #tpu.memory_space<vmem>>, %arg7: memref<1x128xf32, #tpu.memory_space<vmem>>, %arg8: memref<2x128xf32, #tpu.memory_space<vmem>>) attributes {dimension_semantics = [], scalar_prefetch = 0 : i64, scratch_operands = 0 : i64, tpu.core_type = #tpu.core_type<tc>} {
    %c0 = arith.constant 0 : index
    %c0_0 = arith.constant 0 : index
    %0 = vector.load %arg0[%c0, %c0_0] : memref<16x40xbf16, #tpu.memory_space<vmem>>, vector<16x40xbf16>
    %c0_1 = arith.constant 0 : index
    %c0_2 = arith.constant 0 : index
    %1 = vector.load %arg1[%c0_1, %c0_2] : memref<40x512xbf16, #tpu.memory_space<vmem>>, vector<40x512xbf16>
    %cst = arith.constant dense<0.000000e+00> : vector<16x512xf32>
    %2 = tpu.matmul %0, %1, %cst {dimension_numbers = #tpu.dot_dimension_numbers<[1], [0], [0], [1], [0, 0, 1, 1], [], []>} : vector<16x40xbf16>, vector<40x512xbf16>, vector<16x512xf32> -> vector<16x512xf32>
    %c0_3 = arith.constant 0 : index
    %c0_4 = arith.constant 0 : index
    %3 = vector.load %arg3[%c0_3, %c0_4] : memref<1x512xf32, #tpu.memory_space<vmem>>, vector<1x512xf32>
    %4 = vector.broadcast %3 : vector<1x512xf32> to vector<16x512xf32>
    %5 = arith.addf %2, %4 : vector<16x512xf32>
    %c0_5 = arith.constant 0 : index
    %c0_6 = arith.constant 0 : index
    %6 = vector.load %arg5[%c0_5, %c0_6] : memref<1x512xf32, #tpu.memory_space<vmem>>, vector<1x512xf32>
    %7 = vector.shape_cast %6 : vector<1x512xf32> to vector<1x512xf32>
    %8 = vector.broadcast %7 : vector<1x512xf32> to vector<2x512xf32>
    %cst_7 = arith.constant 0.000000e+00 : f32
    %9 = vector.broadcast %cst_7 : f32 to vector<2x128xf32>
    %cst_8 = arith.constant 0.000000e+00 : f32
    %10 = vector.broadcast %cst_8 : f32 to vector<2x128xf32>
    %cst_9 = arith.constant 0.000000e+00 : f32
    %11 = vector.broadcast %cst_9 : f32 to vector<2x128xf32>
    %cst_10 = arith.constant 0.000000e+00 : f32
    %12 = vector.broadcast %cst_10 : f32 to vector<2x128xf32>
    %13 = vector.extract_strided_slice %5 {offsets = [0, 0], sizes = [2, 512], strides = [1, 1]} : vector<16x512xf32> to vector<2x512xf32>
    %14 = arith.truncf %9 : vector<2x128xf32> to vector<2x128xbf16>
    %c0_11 = arith.constant 0 : index
    %c0_12 = arith.constant 0 : index
    %15 = vector.load %arg2[%c0_11, %c0_12] : memref<128x512xbf16, #tpu.memory_space<vmem>>, vector<128x512xbf16>
    %cst_13 = arith.constant dense<0.000000e+00> : vector<2x512xf32>
    %16 = tpu.matmul %14, %15, %cst_13 {dimension_numbers = #tpu.dot_dimension_numbers<[1], [0], [0], [1], [0, 0, 1, 1], [], []>} : vector<2x128xbf16>, vector<128x512xbf16>, vector<2x512xf32> -> vector<2x512xf32>
    %17 = arith.addf %13, %16 : vector<2x512xf32>
    %18 = vector.extract_strided_slice %17 {offsets = [0, 0], sizes = [2, 128], strides = [1, 1]} : vector<2x512xf32> to vector<2x128xf32>
    %19 = arith.negf %18 : vector<2x128xf32>
    %20 = math.exp %19 : vector<2x128xf32>
    %cst_14 = arith.constant 1.000000e+00 : f32
    %21 = vector.broadcast %cst_14 : f32 to vector<2x128xf32>
    %22 = arith.addf %21, %20 : vector<2x128xf32>
    %23 = arith.divf %21, %22 : vector<2x128xf32>
    %24 = vector.extract_strided_slice %17 {offsets = [0, 128], sizes = [2, 128], strides = [1, 1]} : vector<2x512xf32> to vector<2x128xf32>
    %25 = arith.negf %24 : vector<2x128xf32>
    %26 = math.exp %25 : vector<2x128xf32>
    %cst_15 = arith.constant 1.000000e+00 : f32
    %27 = vector.broadcast %cst_15 : f32 to vector<2x128xf32>
    %28 = arith.addf %27, %26 : vector<2x128xf32>
    %29 = arith.divf %27, %28 : vector<2x128xf32>
    %30 = vector.extract_strided_slice %17 {offsets = [0, 256], sizes = [2, 128], strides = [1, 1]} : vector<2x512xf32> to vector<2x128xf32>
    %31 = math.tanh %30 : vector<2x128xf32>
    %32 = vector.extract_strided_slice %17 {offsets = [0, 384], sizes = [2, 128], strides = [1, 1]} : vector<2x512xf32> to vector<2x128xf32>
    %33 = arith.negf %32 : vector<2x128xf32>
    %34 = math.exp %33 : vector<2x128xf32>
    %cst_16 = arith.constant 1.000000e+00 : f32
    %35 = vector.broadcast %cst_16 : f32 to vector<2x128xf32>
    %36 = arith.addf %35, %34 : vector<2x128xf32>
    %37 = arith.divf %35, %36 : vector<2x128xf32>
    %38 = arith.mulf %29, %10 : vector<2x128xf32>
    %39 = arith.mulf %23, %31 : vector<2x128xf32>
    %40 = arith.addf %38, %39 : vector<2x128xf32>
    %41 = math.tanh %40 : vector<2x128xf32>
    %42 = arith.mulf %37, %41 : vector<2x128xf32>
    %43 = tpu.concatenate %42, %11 in 1 : vector<2x128xf32>, vector<2x128xf32> -> vector<2x256xf32>
    %44 = arith.truncf %43 : vector<2x256xf32> to vector<2x256xbf16>
    %c0_17 = arith.constant 0 : index
    %c0_18 = arith.constant 0 : index
    %45 = vector.load %arg4[%c0_17, %c0_18] : memref<256x512xbf16, #tpu.memory_space<vmem>>, vector<256x512xbf16>
    %cst_19 = arith.constant dense<0.000000e+00> : vector<2x512xf32>
    %46 = tpu.matmul %44, %45, %cst_19 {dimension_numbers = #tpu.dot_dimension_numbers<[1], [0], [0], [1], [0, 0, 1, 1], [], []>} : vector<2x256xbf16>, vector<256x512xbf16>, vector<2x512xf32> -> vector<2x512xf32>
    %47 = arith.addf %46, %8 : vector<2x512xf32>
    %48 = vector.extract_strided_slice %47 {offsets = [0, 0], sizes = [2, 128], strides = [1, 1]} : vector<2x512xf32> to vector<2x128xf32>
    %49 = arith.negf %48 : vector<2x128xf32>
    %50 = math.exp %49 : vector<2x128xf32>
    %cst_20 = arith.constant 1.000000e+00 : f32
    %51 = vector.broadcast %cst_20 : f32 to vector<2x128xf32>
    %52 = arith.addf %51, %50 : vector<2x128xf32>
    %53 = arith.divf %51, %52 : vector<2x128xf32>
    %54 = vector.extract_strided_slice %47 {offsets = [0, 128], sizes = [2, 128], strides = [1, 1]} : vector<2x512xf32> to vector<2x128xf32>
    %55 = arith.negf %54 : vector<2x128xf32>
    %56 = math.exp %55 : vector<2x128xf32>
    %cst_21 = arith.constant 1.000000e+00 : f32
    %57 = vector.broadcast %cst_21 : f32 to vector<2x128xf32>
    %58 = arith.addf %57, %56 : vector<2x128xf32>
    %59 = arith.divf %57, %58 : vector<2x128xf32>
    %60 = vector.extract_strided_slice %47 {offsets = [0, 256], sizes = [2, 128], strides = [1, 1]} : vector<2x512xf32> to vector<2x128xf32>
    %61 = math.tanh %60 : vector<2x128xf32>
    %62 = vector.extract_strided_slice %47 {offsets = [0, 384], sizes = [2, 128], strides = [1, 1]} : vector<2x512xf32> to vector<2x128xf32>
    %63 = arith.negf %62 : vector<2x128xf32>
    %64 = math.exp %63 : vector<2x128xf32>
    %cst_22 = arith.constant 1.000000e+00 : f32
    %65 = vector.broadcast %cst_22 : f32 to vector<2x128xf32>
    %66 = arith.addf %65, %64 : vector<2x128xf32>
    %67 = arith.divf %65, %66 : vector<2x128xf32>
    %68 = arith.mulf %59, %12 : vector<2x128xf32>
    %69 = arith.mulf %53, %61 : vector<2x128xf32>
    %70 = arith.addf %68, %69 : vector<2x128xf32>
    %71 = math.tanh %70 : vector<2x128xf32>
    %72 = arith.mulf %67, %71 : vector<2x128xf32>
    %73 = vector.extract_strided_slice %5 {offsets = [2, 0], sizes = [2, 512], strides = [1, 1]} : vector<16x512xf32> to vector<2x512xf32>
    %74 = arith.truncf %42 : vector<2x128xf32> to vector<2x128xbf16>
    %c0_23 = arith.constant 0 : index
    %c0_24 = arith.constant 0 : index
    %75 = vector.load %arg2[%c0_23, %c0_24] : memref<128x512xbf16, #tpu.memory_space<vmem>>, vector<128x512xbf16>
    %cst_25 = arith.constant dense<0.000000e+00> : vector<2x512xf32>
    %76 = tpu.matmul %74, %75, %cst_25 {dimension_numbers = #tpu.dot_dimension_numbers<[1], [0], [0], [1], [0, 0, 1, 1], [], []>} : vector<2x128xbf16>, vector<128x512xbf16>, vector<2x512xf32> -> vector<2x512xf32>
    %77 = arith.addf %73, %76 : vector<2x512xf32>
    %78 = vector.extract_strided_slice %77 {offsets = [0, 0], sizes = [2, 128], strides = [1, 1]} : vector<2x512xf32> to vector<2x128xf32>
    %79 = arith.negf %78 : vector<2x128xf32>
    %80 = math.exp %79 : vector<2x128xf32>
    %cst_26 = arith.constant 1.000000e+00 : f32
    %81 = vector.broadcast %cst_26 : f32 to vector<2x128xf32>
    %82 = arith.addf %81, %80 : vector<2x128xf32>
    %83 = arith.divf %81, %82 : vector<2x128xf32>
    %84 = vector.extract_strided_slice %77 {offsets = [0, 128], sizes = [2, 128], strides = [1, 1]} : vector<2x512xf32> to vector<2x128xf32>
    %85 = arith.negf %84 : vector<2x128xf32>
    %86 = math.exp %85 : vector<2x128xf32>
    %cst_27 = arith.constant 1.000000e+00 : f32
    %87 = vector.broadcast %cst_27 : f32 to vector<2x128xf32>
    %88 = arith.addf %87, %86 : vector<2x128xf32>
    %89 = arith.divf %87, %88 : vector<2x128xf32>
    %90 = vector.extract_strided_slice %77 {offsets = [0, 256], sizes = [2, 128], strides = [1, 1]} : vector<2x512xf32> to vector<2x128xf32>
    %91 = math.tanh %90 : vector<2x128xf32>
    %92 = vector.extract_strided_slice %77 {offsets = [0, 384], sizes = [2, 128], strides = [1, 1]} : vector<2x512xf32> to vector<2x128xf32>
    %93 = arith.negf %92 : vector<2x128xf32>
    %94 = math.exp %93 : vector<2x128xf32>
    %cst_28 = arith.constant 1.000000e+00 : f32
    %95 = vector.broadcast %cst_28 : f32 to vector<2x128xf32>
    %96 = arith.addf %95, %94 : vector<2x128xf32>
    %97 = arith.divf %95, %96 : vector<2x128xf32>
    %98 = arith.mulf %89, %40 : vector<2x128xf32>
    %99 = arith.mulf %83, %91 : vector<2x128xf32>
    %100 = arith.addf %98, %99 : vector<2x128xf32>
    %101 = math.tanh %100 : vector<2x128xf32>
    %102 = arith.mulf %97, %101 : vector<2x128xf32>
    %103 = tpu.concatenate %102, %72 in 1 : vector<2x128xf32>, vector<2x128xf32> -> vector<2x256xf32>
    %104 = arith.truncf %103 : vector<2x256xf32> to vector<2x256xbf16>
    %c0_29 = arith.constant 0 : index
    %c0_30 = arith.constant 0 : index
    %105 = vector.load %arg4[%c0_29, %c0_30] : memref<256x512xbf16, #tpu.memory_space<vmem>>, vector<256x512xbf16>
    %cst_31 = arith.constant dense<0.000000e+00> : vector<2x512xf32>
    %106 = tpu.matmul %104, %105, %cst_31 {dimension_numbers = #tpu.dot_dimension_numbers<[1], [0], [0], [1], [0, 0, 1, 1], [], []>} : vector<2x256xbf16>, vector<256x512xbf16>, vector<2x512xf32> -> vector<2x512xf32>
    %107 = arith.addf %106, %8 : vector<2x512xf32>
    %108 = vector.extract_strided_slice %107 {offsets = [0, 0], sizes = [2, 128], strides = [1, 1]} : vector<2x512xf32> to vector<2x128xf32>
    %109 = arith.negf %108 : vector<2x128xf32>
    %110 = math.exp %109 : vector<2x128xf32>
    %cst_32 = arith.constant 1.000000e+00 : f32
    %111 = vector.broadcast %cst_32 : f32 to vector<2x128xf32>
    %112 = arith.addf %111, %110 : vector<2x128xf32>
    %113 = arith.divf %111, %112 : vector<2x128xf32>
    %114 = vector.extract_strided_slice %107 {offsets = [0, 128], sizes = [2, 128], strides = [1, 1]} : vector<2x512xf32> to vector<2x128xf32>
    %115 = arith.negf %114 : vector<2x128xf32>
    %116 = math.exp %115 : vector<2x128xf32>
    %cst_33 = arith.constant 1.000000e+00 : f32
    %117 = vector.broadcast %cst_33 : f32 to vector<2x128xf32>
    %118 = arith.addf %117, %116 : vector<2x128xf32>
    %119 = arith.divf %117, %118 : vector<2x128xf32>
    %120 = vector.extract_strided_slice %107 {offsets = [0, 256], sizes = [2, 128], strides = [1, 1]} : vector<2x512xf32> to vector<2x128xf32>
    %121 = math.tanh %120 : vector<2x128xf32>
    %122 = vector.extract_strided_slice %107 {offsets = [0, 384], sizes = [2, 128], strides = [1, 1]} : vector<2x512xf32> to vector<2x128xf32>
    %123 = arith.negf %122 : vector<2x128xf32>
    %124 = math.exp %123 : vector<2x128xf32>
    %cst_34 = arith.constant 1.000000e+00 : f32
    %125 = vector.broadcast %cst_34 : f32 to vector<2x128xf32>
    %126 = arith.addf %125, %124 : vector<2x128xf32>
    %127 = arith.divf %125, %126 : vector<2x128xf32>
    %128 = arith.mulf %119, %70 : vector<2x128xf32>
    %129 = arith.mulf %113, %121 : vector<2x128xf32>
    %130 = arith.addf %128, %129 : vector<2x128xf32>
    %131 = math.tanh %130 : vector<2x128xf32>
    %132 = arith.mulf %127, %131 : vector<2x128xf32>
    %133 = vector.extract_strided_slice %5 {offsets = [4, 0], sizes = [2, 512], strides = [1, 1]} : vector<16x512xf32> to vector<2x512xf32>
    %134 = arith.truncf %102 : vector<2x128xf32> to vector<2x128xbf16>
    %c0_35 = arith.constant 0 : index
    %c0_36 = arith.constant 0 : index
    %135 = vector.load %arg2[%c0_35, %c0_36] : memref<128x512xbf16, #tpu.memory_space<vmem>>, vector<128x512xbf16>
    %cst_37 = arith.constant dense<0.000000e+00> : vector<2x512xf32>
    %136 = tpu.matmul %134, %135, %cst_37 {dimension_numbers = #tpu.dot_dimension_numbers<[1], [0], [0], [1], [0, 0, 1, 1], [], []>} : vector<2x128xbf16>, vector<128x512xbf16>, vector<2x512xf32> -> vector<2x512xf32>
    %137 = arith.addf %133, %136 : vector<2x512xf32>
    %138 = vector.extract_strided_slice %137 {offsets = [0, 0], sizes = [2, 128], strides = [1, 1]} : vector<2x512xf32> to vector<2x128xf32>
    %139 = arith.negf %138 : vector<2x128xf32>
    %140 = math.exp %139 : vector<2x128xf32>
    %cst_38 = arith.constant 1.000000e+00 : f32
    %141 = vector.broadcast %cst_38 : f32 to vector<2x128xf32>
    %142 = arith.addf %141, %140 : vector<2x128xf32>
    %143 = arith.divf %141, %142 : vector<2x128xf32>
    %144 = vector.extract_strided_slice %137 {offsets = [0, 128], sizes = [2, 128], strides = [1, 1]} : vector<2x512xf32> to vector<2x128xf32>
    %145 = arith.negf %144 : vector<2x128xf32>
    %146 = math.exp %145 : vector<2x128xf32>
    %cst_39 = arith.constant 1.000000e+00 : f32
    %147 = vector.broadcast %cst_39 : f32 to vector<2x128xf32>
    %148 = arith.addf %147, %146 : vector<2x128xf32>
    %149 = arith.divf %147, %148 : vector<2x128xf32>
    %150 = vector.extract_strided_slice %137 {offsets = [0, 256], sizes = [2, 128], strides = [1, 1]} : vector<2x512xf32> to vector<2x128xf32>
    %151 = math.tanh %150 : vector<2x128xf32>
    %152 = vector.extract_strided_slice %137 {offsets = [0, 384], sizes = [2, 128], strides = [1, 1]} : vector<2x512xf32> to vector<2x128xf32>
    %153 = arith.negf %152 : vector<2x128xf32>
    %154 = math.exp %153 : vector<2x128xf32>
    %cst_40 = arith.constant 1.000000e+00 : f32
    %155 = vector.broadcast %cst_40 : f32 to vector<2x128xf32>
    %156 = arith.addf %155, %154 : vector<2x128xf32>
    %157 = arith.divf %155, %156 : vector<2x128xf32>
    %158 = arith.mulf %149, %100 : vector<2x128xf32>
    %159 = arith.mulf %143, %151 : vector<2x128xf32>
    %160 = arith.addf %158, %159 : vector<2x128xf32>
    %161 = math.tanh %160 : vector<2x128xf32>
    %162 = arith.mulf %157, %161 : vector<2x128xf32>
    %163 = tpu.concatenate %162, %132 in 1 : vector<2x128xf32>, vector<2x128xf32> -> vector<2x256xf32>
    %164 = arith.truncf %163 : vector<2x256xf32> to vector<2x256xbf16>
    %c0_41 = arith.constant 0 : index
    %c0_42 = arith.constant 0 : index
    %165 = vector.load %arg4[%c0_41, %c0_42] : memref<256x512xbf16, #tpu.memory_space<vmem>>, vector<256x512xbf16>
    %cst_43 = arith.constant dense<0.000000e+00> : vector<2x512xf32>
    %166 = tpu.matmul %164, %165, %cst_43 {dimension_numbers = #tpu.dot_dimension_numbers<[1], [0], [0], [1], [0, 0, 1, 1], [], []>} : vector<2x256xbf16>, vector<256x512xbf16>, vector<2x512xf32> -> vector<2x512xf32>
    %167 = arith.addf %166, %8 : vector<2x512xf32>
    %168 = vector.extract_strided_slice %167 {offsets = [0, 0], sizes = [2, 128], strides = [1, 1]} : vector<2x512xf32> to vector<2x128xf32>
    %169 = arith.negf %168 : vector<2x128xf32>
    %170 = math.exp %169 : vector<2x128xf32>
    %cst_44 = arith.constant 1.000000e+00 : f32
    %171 = vector.broadcast %cst_44 : f32 to vector<2x128xf32>
    %172 = arith.addf %171, %170 : vector<2x128xf32>
    %173 = arith.divf %171, %172 : vector<2x128xf32>
    %174 = vector.extract_strided_slice %167 {offsets = [0, 128], sizes = [2, 128], strides = [1, 1]} : vector<2x512xf32> to vector<2x128xf32>
    %175 = arith.negf %174 : vector<2x128xf32>
    %176 = math.exp %175 : vector<2x128xf32>
    %cst_45 = arith.constant 1.000000e+00 : f32
    %177 = vector.broadcast %cst_45 : f32 to vector<2x128xf32>
    %178 = arith.addf %177, %176 : vector<2x128xf32>
    %179 = arith.divf %177, %178 : vector<2x128xf32>
    %180 = vector.extract_strided_slice %167 {offsets = [0, 256], sizes = [2, 128], strides = [1, 1]} : vector<2x512xf32> to vector<2x128xf32>
    %181 = math.tanh %180 : vector<2x128xf32>
    %182 = vector.extract_strided_slice %167 {offsets = [0, 384], sizes = [2, 128], strides = [1, 1]} : vector<2x512xf32> to vector<2x128xf32>
    %183 = arith.negf %182 : vector<2x128xf32>
    %184 = math.exp %183 : vector<2x128xf32>
    %cst_46 = arith.constant 1.000000e+00 : f32
    %185 = vector.broadcast %cst_46 : f32 to vector<2x128xf32>
    %186 = arith.addf %185, %184 : vector<2x128xf32>
    %187 = arith.divf %185, %186 : vector<2x128xf32>
    %188 = arith.mulf %179, %130 : vector<2x128xf32>
    %189 = arith.mulf %173, %181 : vector<2x128xf32>
    %190 = arith.addf %188, %189 : vector<2x128xf32>
    %191 = math.tanh %190 : vector<2x128xf32>
    %192 = arith.mulf %187, %191 : vector<2x128xf32>
    %193 = vector.extract_strided_slice %5 {offsets = [6, 0], sizes = [2, 512], strides = [1, 1]} : vector<16x512xf32> to vector<2x512xf32>
    %194 = arith.truncf %162 : vector<2x128xf32> to vector<2x128xbf16>
    %c0_47 = arith.constant 0 : index
    %c0_48 = arith.constant 0 : index
    %195 = vector.load %arg2[%c0_47, %c0_48] : memref<128x512xbf16, #tpu.memory_space<vmem>>, vector<128x512xbf16>
    %cst_49 = arith.constant dense<0.000000e+00> : vector<2x512xf32>
    %196 = tpu.matmul %194, %195, %cst_49 {dimension_numbers = #tpu.dot_dimension_numbers<[1], [0], [0], [1], [0, 0, 1, 1], [], []>} : vector<2x128xbf16>, vector<128x512xbf16>, vector<2x512xf32> -> vector<2x512xf32>
    %197 = arith.addf %193, %196 : vector<2x512xf32>
    %198 = vector.extract_strided_slice %197 {offsets = [0, 0], sizes = [2, 128], strides = [1, 1]} : vector<2x512xf32> to vector<2x128xf32>
    %199 = arith.negf %198 : vector<2x128xf32>
    %200 = math.exp %199 : vector<2x128xf32>
    %cst_50 = arith.constant 1.000000e+00 : f32
    %201 = vector.broadcast %cst_50 : f32 to vector<2x128xf32>
    %202 = arith.addf %201, %200 : vector<2x128xf32>
    %203 = arith.divf %201, %202 : vector<2x128xf32>
    %204 = vector.extract_strided_slice %197 {offsets = [0, 128], sizes = [2, 128], strides = [1, 1]} : vector<2x512xf32> to vector<2x128xf32>
    %205 = arith.negf %204 : vector<2x128xf32>
    %206 = math.exp %205 : vector<2x128xf32>
    %cst_51 = arith.constant 1.000000e+00 : f32
    %207 = vector.broadcast %cst_51 : f32 to vector<2x128xf32>
    %208 = arith.addf %207, %206 : vector<2x128xf32>
    %209 = arith.divf %207, %208 : vector<2x128xf32>
    %210 = vector.extract_strided_slice %197 {offsets = [0, 256], sizes = [2, 128], strides = [1, 1]} : vector<2x512xf32> to vector<2x128xf32>
    %211 = math.tanh %210 : vector<2x128xf32>
    %212 = vector.extract_strided_slice %197 {offsets = [0, 384], sizes = [2, 128], strides = [1, 1]} : vector<2x512xf32> to vector<2x128xf32>
    %213 = arith.negf %212 : vector<2x128xf32>
    %214 = math.exp %213 : vector<2x128xf32>
    %cst_52 = arith.constant 1.000000e+00 : f32
    %215 = vector.broadcast %cst_52 : f32 to vector<2x128xf32>
    %216 = arith.addf %215, %214 : vector<2x128xf32>
    %217 = arith.divf %215, %216 : vector<2x128xf32>
    %218 = arith.mulf %209, %160 : vector<2x128xf32>
    %219 = arith.mulf %203, %211 : vector<2x128xf32>
    %220 = arith.addf %218, %219 : vector<2x128xf32>
    %221 = math.tanh %220 : vector<2x128xf32>
    %222 = arith.mulf %217, %221 : vector<2x128xf32>
    %223 = tpu.concatenate %222, %192 in 1 : vector<2x128xf32>, vector<2x128xf32> -> vector<2x256xf32>
    %224 = arith.truncf %223 : vector<2x256xf32> to vector<2x256xbf16>
    %c0_53 = arith.constant 0 : index
    %c0_54 = arith.constant 0 : index
    %225 = vector.load %arg4[%c0_53, %c0_54] : memref<256x512xbf16, #tpu.memory_space<vmem>>, vector<256x512xbf16>
    %cst_55 = arith.constant dense<0.000000e+00> : vector<2x512xf32>
    %226 = tpu.matmul %224, %225, %cst_55 {dimension_numbers = #tpu.dot_dimension_numbers<[1], [0], [0], [1], [0, 0, 1, 1], [], []>} : vector<2x256xbf16>, vector<256x512xbf16>, vector<2x512xf32> -> vector<2x512xf32>
    %227 = arith.addf %226, %8 : vector<2x512xf32>
    %228 = vector.extract_strided_slice %227 {offsets = [0, 0], sizes = [2, 128], strides = [1, 1]} : vector<2x512xf32> to vector<2x128xf32>
    %229 = arith.negf %228 : vector<2x128xf32>
    %230 = math.exp %229 : vector<2x128xf32>
    %cst_56 = arith.constant 1.000000e+00 : f32
    %231 = vector.broadcast %cst_56 : f32 to vector<2x128xf32>
    %232 = arith.addf %231, %230 : vector<2x128xf32>
    %233 = arith.divf %231, %232 : vector<2x128xf32>
    %234 = vector.extract_strided_slice %227 {offsets = [0, 128], sizes = [2, 128], strides = [1, 1]} : vector<2x512xf32> to vector<2x128xf32>
    %235 = arith.negf %234 : vector<2x128xf32>
    %236 = math.exp %235 : vector<2x128xf32>
    %cst_57 = arith.constant 1.000000e+00 : f32
    %237 = vector.broadcast %cst_57 : f32 to vector<2x128xf32>
    %238 = arith.addf %237, %236 : vector<2x128xf32>
    %239 = arith.divf %237, %238 : vector<2x128xf32>
    %240 = vector.extract_strided_slice %227 {offsets = [0, 256], sizes = [2, 128], strides = [1, 1]} : vector<2x512xf32> to vector<2x128xf32>
    %241 = math.tanh %240 : vector<2x128xf32>
    %242 = vector.extract_strided_slice %227 {offsets = [0, 384], sizes = [2, 128], strides = [1, 1]} : vector<2x512xf32> to vector<2x128xf32>
    %243 = arith.negf %242 : vector<2x128xf32>
    %244 = math.exp %243 : vector<2x128xf32>
    %cst_58 = arith.constant 1.000000e+00 : f32
    %245 = vector.broadcast %cst_58 : f32 to vector<2x128xf32>
    %246 = arith.addf %245, %244 : vector<2x128xf32>
    %247 = arith.divf %245, %246 : vector<2x128xf32>
    %248 = arith.mulf %239, %190 : vector<2x128xf32>
    %249 = arith.mulf %233, %241 : vector<2x128xf32>
    %250 = arith.addf %248, %249 : vector<2x128xf32>
    %251 = math.tanh %250 : vector<2x128xf32>
    %252 = arith.mulf %247, %251 : vector<2x128xf32>
    %253 = vector.extract_strided_slice %5 {offsets = [8, 0], sizes = [2, 512], strides = [1, 1]} : vector<16x512xf32> to vector<2x512xf32>
    %254 = arith.truncf %222 : vector<2x128xf32> to vector<2x128xbf16>
    %c0_59 = arith.constant 0 : index
    %c0_60 = arith.constant 0 : index
    %255 = vector.load %arg2[%c0_59, %c0_60] : memref<128x512xbf16, #tpu.memory_space<vmem>>, vector<128x512xbf16>
    %cst_61 = arith.constant dense<0.000000e+00> : vector<2x512xf32>
    %256 = tpu.matmul %254, %255, %cst_61 {dimension_numbers = #tpu.dot_dimension_numbers<[1], [0], [0], [1], [0, 0, 1, 1], [], []>} : vector<2x128xbf16>, vector<128x512xbf16>, vector<2x512xf32> -> vector<2x512xf32>
    %257 = arith.addf %253, %256 : vector<2x512xf32>
    %258 = vector.extract_strided_slice %257 {offsets = [0, 0], sizes = [2, 128], strides = [1, 1]} : vector<2x512xf32> to vector<2x128xf32>
    %259 = arith.negf %258 : vector<2x128xf32>
    %260 = math.exp %259 : vector<2x128xf32>
    %cst_62 = arith.constant 1.000000e+00 : f32
    %261 = vector.broadcast %cst_62 : f32 to vector<2x128xf32>
    %262 = arith.addf %261, %260 : vector<2x128xf32>
    %263 = arith.divf %261, %262 : vector<2x128xf32>
    %264 = vector.extract_strided_slice %257 {offsets = [0, 128], sizes = [2, 128], strides = [1, 1]} : vector<2x512xf32> to vector<2x128xf32>
    %265 = arith.negf %264 : vector<2x128xf32>
    %266 = math.exp %265 : vector<2x128xf32>
    %cst_63 = arith.constant 1.000000e+00 : f32
    %267 = vector.broadcast %cst_63 : f32 to vector<2x128xf32>
    %268 = arith.addf %267, %266 : vector<2x128xf32>
    %269 = arith.divf %267, %268 : vector<2x128xf32>
    %270 = vector.extract_strided_slice %257 {offsets = [0, 256], sizes = [2, 128], strides = [1, 1]} : vector<2x512xf32> to vector<2x128xf32>
    %271 = math.tanh %270 : vector<2x128xf32>
    %272 = vector.extract_strided_slice %257 {offsets = [0, 384], sizes = [2, 128], strides = [1, 1]} : vector<2x512xf32> to vector<2x128xf32>
    %273 = arith.negf %272 : vector<2x128xf32>
    %274 = math.exp %273 : vector<2x128xf32>
    %cst_64 = arith.constant 1.000000e+00 : f32
    %275 = vector.broadcast %cst_64 : f32 to vector<2x128xf32>
    %276 = arith.addf %275, %274 : vector<2x128xf32>
    %277 = arith.divf %275, %276 : vector<2x128xf32>
    %278 = arith.mulf %269, %220 : vector<2x128xf32>
    %279 = arith.mulf %263, %271 : vector<2x128xf32>
    %280 = arith.addf %278, %279 : vector<2x128xf32>
    %281 = math.tanh %280 : vector<2x128xf32>
    %282 = arith.mulf %277, %281 : vector<2x128xf32>
    %283 = tpu.concatenate %282, %252 in 1 : vector<2x128xf32>, vector<2x128xf32> -> vector<2x256xf32>
    %284 = arith.truncf %283 : vector<2x256xf32> to vector<2x256xbf16>
    %c0_65 = arith.constant 0 : index
    %c0_66 = arith.constant 0 : index
    %285 = vector.load %arg4[%c0_65, %c0_66] : memref<256x512xbf16, #tpu.memory_space<vmem>>, vector<256x512xbf16>
    %cst_67 = arith.constant dense<0.000000e+00> : vector<2x512xf32>
    %286 = tpu.matmul %284, %285, %cst_67 {dimension_numbers = #tpu.dot_dimension_numbers<[1], [0], [0], [1], [0, 0, 1, 1], [], []>} : vector<2x256xbf16>, vector<256x512xbf16>, vector<2x512xf32> -> vector<2x512xf32>
    %287 = arith.addf %286, %8 : vector<2x512xf32>
    %288 = vector.extract_strided_slice %287 {offsets = [0, 0], sizes = [2, 128], strides = [1, 1]} : vector<2x512xf32> to vector<2x128xf32>
    %289 = arith.negf %288 : vector<2x128xf32>
    %290 = math.exp %289 : vector<2x128xf32>
    %cst_68 = arith.constant 1.000000e+00 : f32
    %291 = vector.broadcast %cst_68 : f32 to vector<2x128xf32>
    %292 = arith.addf %291, %290 : vector<2x128xf32>
    %293 = arith.divf %291, %292 : vector<2x128xf32>
    %294 = vector.extract_strided_slice %287 {offsets = [0, 128], sizes = [2, 128], strides = [1, 1]} : vector<2x512xf32> to vector<2x128xf32>
    %295 = arith.negf %294 : vector<2x128xf32>
    %296 = math.exp %295 : vector<2x128xf32>
    %cst_69 = arith.constant 1.000000e+00 : f32
    %297 = vector.broadcast %cst_69 : f32 to vector<2x128xf32>
    %298 = arith.addf %297, %296 : vector<2x128xf32>
    %299 = arith.divf %297, %298 : vector<2x128xf32>
    %300 = vector.extract_strided_slice %287 {offsets = [0, 256], sizes = [2, 128], strides = [1, 1]} : vector<2x512xf32> to vector<2x128xf32>
    %301 = math.tanh %300 : vector<2x128xf32>
    %302 = vector.extract_strided_slice %287 {offsets = [0, 384], sizes = [2, 128], strides = [1, 1]} : vector<2x512xf32> to vector<2x128xf32>
    %303 = arith.negf %302 : vector<2x128xf32>
    %304 = math.exp %303 : vector<2x128xf32>
    %cst_70 = arith.constant 1.000000e+00 : f32
    %305 = vector.broadcast %cst_70 : f32 to vector<2x128xf32>
    %306 = arith.addf %305, %304 : vector<2x128xf32>
    %307 = arith.divf %305, %306 : vector<2x128xf32>
    %308 = arith.mulf %299, %250 : vector<2x128xf32>
    %309 = arith.mulf %293, %301 : vector<2x128xf32>
    %310 = arith.addf %308, %309 : vector<2x128xf32>
    %311 = math.tanh %310 : vector<2x128xf32>
    %312 = arith.mulf %307, %311 : vector<2x128xf32>
    %313 = vector.extract_strided_slice %5 {offsets = [10, 0], sizes = [2, 512], strides = [1, 1]} : vector<16x512xf32> to vector<2x512xf32>
    %314 = arith.truncf %282 : vector<2x128xf32> to vector<2x128xbf16>
    %c0_71 = arith.constant 0 : index
    %c0_72 = arith.constant 0 : index
    %315 = vector.load %arg2[%c0_71, %c0_72] : memref<128x512xbf16, #tpu.memory_space<vmem>>, vector<128x512xbf16>
    %cst_73 = arith.constant dense<0.000000e+00> : vector<2x512xf32>
    %316 = tpu.matmul %314, %315, %cst_73 {dimension_numbers = #tpu.dot_dimension_numbers<[1], [0], [0], [1], [0, 0, 1, 1], [], []>} : vector<2x128xbf16>, vector<128x512xbf16>, vector<2x512xf32> -> vector<2x512xf32>
    %317 = arith.addf %313, %316 : vector<2x512xf32>
    %318 = vector.extract_strided_slice %317 {offsets = [0, 0], sizes = [2, 128], strides = [1, 1]} : vector<2x512xf32> to vector<2x128xf32>
    %319 = arith.negf %318 : vector<2x128xf32>
    %320 = math.exp %319 : vector<2x128xf32>
    %cst_74 = arith.constant 1.000000e+00 : f32
    %321 = vector.broadcast %cst_74 : f32 to vector<2x128xf32>
    %322 = arith.addf %321, %320 : vector<2x128xf32>
    %323 = arith.divf %321, %322 : vector<2x128xf32>
    %324 = vector.extract_strided_slice %317 {offsets = [0, 128], sizes = [2, 128], strides = [1, 1]} : vector<2x512xf32> to vector<2x128xf32>
    %325 = arith.negf %324 : vector<2x128xf32>
    %326 = math.exp %325 : vector<2x128xf32>
    %cst_75 = arith.constant 1.000000e+00 : f32
    %327 = vector.broadcast %cst_75 : f32 to vector<2x128xf32>
    %328 = arith.addf %327, %326 : vector<2x128xf32>
    %329 = arith.divf %327, %328 : vector<2x128xf32>
    %330 = vector.extract_strided_slice %317 {offsets = [0, 256], sizes = [2, 128], strides = [1, 1]} : vector<2x512xf32> to vector<2x128xf32>
    %331 = math.tanh %330 : vector<2x128xf32>
    %332 = vector.extract_strided_slice %317 {offsets = [0, 384], sizes = [2, 128], strides = [1, 1]} : vector<2x512xf32> to vector<2x128xf32>
    %333 = arith.negf %332 : vector<2x128xf32>
    %334 = math.exp %333 : vector<2x128xf32>
    %cst_76 = arith.constant 1.000000e+00 : f32
    %335 = vector.broadcast %cst_76 : f32 to vector<2x128xf32>
    %336 = arith.addf %335, %334 : vector<2x128xf32>
    %337 = arith.divf %335, %336 : vector<2x128xf32>
    %338 = arith.mulf %329, %280 : vector<2x128xf32>
    %339 = arith.mulf %323, %331 : vector<2x128xf32>
    %340 = arith.addf %338, %339 : vector<2x128xf32>
    %341 = math.tanh %340 : vector<2x128xf32>
    %342 = arith.mulf %337, %341 : vector<2x128xf32>
    %343 = tpu.concatenate %342, %312 in 1 : vector<2x128xf32>, vector<2x128xf32> -> vector<2x256xf32>
    %344 = arith.truncf %343 : vector<2x256xf32> to vector<2x256xbf16>
    %c0_77 = arith.constant 0 : index
    %c0_78 = arith.constant 0 : index
    %345 = vector.load %arg4[%c0_77, %c0_78] : memref<256x512xbf16, #tpu.memory_space<vmem>>, vector<256x512xbf16>
    %cst_79 = arith.constant dense<0.000000e+00> : vector<2x512xf32>
    %346 = tpu.matmul %344, %345, %cst_79 {dimension_numbers = #tpu.dot_dimension_numbers<[1], [0], [0], [1], [0, 0, 1, 1], [], []>} : vector<2x256xbf16>, vector<256x512xbf16>, vector<2x512xf32> -> vector<2x512xf32>
    %347 = arith.addf %346, %8 : vector<2x512xf32>
    %348 = vector.extract_strided_slice %347 {offsets = [0, 0], sizes = [2, 128], strides = [1, 1]} : vector<2x512xf32> to vector<2x128xf32>
    %349 = arith.negf %348 : vector<2x128xf32>
    %350 = math.exp %349 : vector<2x128xf32>
    %cst_80 = arith.constant 1.000000e+00 : f32
    %351 = vector.broadcast %cst_80 : f32 to vector<2x128xf32>
    %352 = arith.addf %351, %350 : vector<2x128xf32>
    %353 = arith.divf %351, %352 : vector<2x128xf32>
    %354 = vector.extract_strided_slice %347 {offsets = [0, 128], sizes = [2, 128], strides = [1, 1]} : vector<2x512xf32> to vector<2x128xf32>
    %355 = arith.negf %354 : vector<2x128xf32>
    %356 = math.exp %355 : vector<2x128xf32>
    %cst_81 = arith.constant 1.000000e+00 : f32
    %357 = vector.broadcast %cst_81 : f32 to vector<2x128xf32>
    %358 = arith.addf %357, %356 : vector<2x128xf32>
    %359 = arith.divf %357, %358 : vector<2x128xf32>
    %360 = vector.extract_strided_slice %347 {offsets = [0, 256], sizes = [2, 128], strides = [1, 1]} : vector<2x512xf32> to vector<2x128xf32>
    %361 = math.tanh %360 : vector<2x128xf32>
    %362 = vector.extract_strided_slice %347 {offsets = [0, 384], sizes = [2, 128], strides = [1, 1]} : vector<2x512xf32> to vector<2x128xf32>
    %363 = arith.negf %362 : vector<2x128xf32>
    %364 = math.exp %363 : vector<2x128xf32>
    %cst_82 = arith.constant 1.000000e+00 : f32
    %365 = vector.broadcast %cst_82 : f32 to vector<2x128xf32>
    %366 = arith.addf %365, %364 : vector<2x128xf32>
    %367 = arith.divf %365, %366 : vector<2x128xf32>
    %368 = arith.mulf %359, %310 : vector<2x128xf32>
    %369 = arith.mulf %353, %361 : vector<2x128xf32>
    %370 = arith.addf %368, %369 : vector<2x128xf32>
    %371 = math.tanh %370 : vector<2x128xf32>
    %372 = arith.mulf %367, %371 : vector<2x128xf32>
    %373 = vector.extract_strided_slice %5 {offsets = [12, 0], sizes = [2, 512], strides = [1, 1]} : vector<16x512xf32> to vector<2x512xf32>
    %374 = arith.truncf %342 : vector<2x128xf32> to vector<2x128xbf16>
    %c0_83 = arith.constant 0 : index
    %c0_84 = arith.constant 0 : index
    %375 = vector.load %arg2[%c0_83, %c0_84] : memref<128x512xbf16, #tpu.memory_space<vmem>>, vector<128x512xbf16>
    %cst_85 = arith.constant dense<0.000000e+00> : vector<2x512xf32>
    %376 = tpu.matmul %374, %375, %cst_85 {dimension_numbers = #tpu.dot_dimension_numbers<[1], [0], [0], [1], [0, 0, 1, 1], [], []>} : vector<2x128xbf16>, vector<128x512xbf16>, vector<2x512xf32> -> vector<2x512xf32>
    %377 = arith.addf %373, %376 : vector<2x512xf32>
    %378 = vector.extract_strided_slice %377 {offsets = [0, 0], sizes = [2, 128], strides = [1, 1]} : vector<2x512xf32> to vector<2x128xf32>
    %379 = arith.negf %378 : vector<2x128xf32>
    %380 = math.exp %379 : vector<2x128xf32>
    %cst_86 = arith.constant 1.000000e+00 : f32
    %381 = vector.broadcast %cst_86 : f32 to vector<2x128xf32>
    %382 = arith.addf %381, %380 : vector<2x128xf32>
    %383 = arith.divf %381, %382 : vector<2x128xf32>
    %384 = vector.extract_strided_slice %377 {offsets = [0, 128], sizes = [2, 128], strides = [1, 1]} : vector<2x512xf32> to vector<2x128xf32>
    %385 = arith.negf %384 : vector<2x128xf32>
    %386 = math.exp %385 : vector<2x128xf32>
    %cst_87 = arith.constant 1.000000e+00 : f32
    %387 = vector.broadcast %cst_87 : f32 to vector<2x128xf32>
    %388 = arith.addf %387, %386 : vector<2x128xf32>
    %389 = arith.divf %387, %388 : vector<2x128xf32>
    %390 = vector.extract_strided_slice %377 {offsets = [0, 256], sizes = [2, 128], strides = [1, 1]} : vector<2x512xf32> to vector<2x128xf32>
    %391 = math.tanh %390 : vector<2x128xf32>
    %392 = vector.extract_strided_slice %377 {offsets = [0, 384], sizes = [2, 128], strides = [1, 1]} : vector<2x512xf32> to vector<2x128xf32>
    %393 = arith.negf %392 : vector<2x128xf32>
    %394 = math.exp %393 : vector<2x128xf32>
    %cst_88 = arith.constant 1.000000e+00 : f32
    %395 = vector.broadcast %cst_88 : f32 to vector<2x128xf32>
    %396 = arith.addf %395, %394 : vector<2x128xf32>
    %397 = arith.divf %395, %396 : vector<2x128xf32>
    %398 = arith.mulf %389, %340 : vector<2x128xf32>
    %399 = arith.mulf %383, %391 : vector<2x128xf32>
    %400 = arith.addf %398, %399 : vector<2x128xf32>
    %401 = math.tanh %400 : vector<2x128xf32>
    %402 = arith.mulf %397, %401 : vector<2x128xf32>
    %403 = tpu.concatenate %402, %372 in 1 : vector<2x128xf32>, vector<2x128xf32> -> vector<2x256xf32>
    %404 = arith.truncf %403 : vector<2x256xf32> to vector<2x256xbf16>
    %c0_89 = arith.constant 0 : index
    %c0_90 = arith.constant 0 : index
    %405 = vector.load %arg4[%c0_89, %c0_90] : memref<256x512xbf16, #tpu.memory_space<vmem>>, vector<256x512xbf16>
    %cst_91 = arith.constant dense<0.000000e+00> : vector<2x512xf32>
    %406 = tpu.matmul %404, %405, %cst_91 {dimension_numbers = #tpu.dot_dimension_numbers<[1], [0], [0], [1], [0, 0, 1, 1], [], []>} : vector<2x256xbf16>, vector<256x512xbf16>, vector<2x512xf32> -> vector<2x512xf32>
    %407 = arith.addf %406, %8 : vector<2x512xf32>
    %408 = vector.extract_strided_slice %407 {offsets = [0, 0], sizes = [2, 128], strides = [1, 1]} : vector<2x512xf32> to vector<2x128xf32>
    %409 = arith.negf %408 : vector<2x128xf32>
    %410 = math.exp %409 : vector<2x128xf32>
    %cst_92 = arith.constant 1.000000e+00 : f32
    %411 = vector.broadcast %cst_92 : f32 to vector<2x128xf32>
    %412 = arith.addf %411, %410 : vector<2x128xf32>
    %413 = arith.divf %411, %412 : vector<2x128xf32>
    %414 = vector.extract_strided_slice %407 {offsets = [0, 128], sizes = [2, 128], strides = [1, 1]} : vector<2x512xf32> to vector<2x128xf32>
    %415 = arith.negf %414 : vector<2x128xf32>
    %416 = math.exp %415 : vector<2x128xf32>
    %cst_93 = arith.constant 1.000000e+00 : f32
    %417 = vector.broadcast %cst_93 : f32 to vector<2x128xf32>
    %418 = arith.addf %417, %416 : vector<2x128xf32>
    %419 = arith.divf %417, %418 : vector<2x128xf32>
    %420 = vector.extract_strided_slice %407 {offsets = [0, 256], sizes = [2, 128], strides = [1, 1]} : vector<2x512xf32> to vector<2x128xf32>
    %421 = math.tanh %420 : vector<2x128xf32>
    %422 = vector.extract_strided_slice %407 {offsets = [0, 384], sizes = [2, 128], strides = [1, 1]} : vector<2x512xf32> to vector<2x128xf32>
    %423 = arith.negf %422 : vector<2x128xf32>
    %424 = math.exp %423 : vector<2x128xf32>
    %cst_94 = arith.constant 1.000000e+00 : f32
    %425 = vector.broadcast %cst_94 : f32 to vector<2x128xf32>
    %426 = arith.addf %425, %424 : vector<2x128xf32>
    %427 = arith.divf %425, %426 : vector<2x128xf32>
    %428 = arith.mulf %419, %370 : vector<2x128xf32>
    %429 = arith.mulf %413, %421 : vector<2x128xf32>
    %430 = arith.addf %428, %429 : vector<2x128xf32>
    %431 = math.tanh %430 : vector<2x128xf32>
    %432 = arith.mulf %427, %431 : vector<2x128xf32>
    %433 = vector.extract_strided_slice %5 {offsets = [14, 0], sizes = [2, 512], strides = [1, 1]} : vector<16x512xf32> to vector<2x512xf32>
    %434 = arith.truncf %402 : vector<2x128xf32> to vector<2x128xbf16>
    %c0_95 = arith.constant 0 : index
    %c0_96 = arith.constant 0 : index
    %435 = vector.load %arg2[%c0_95, %c0_96] : memref<128x512xbf16, #tpu.memory_space<vmem>>, vector<128x512xbf16>
    %cst_97 = arith.constant dense<0.000000e+00> : vector<2x512xf32>
    %436 = tpu.matmul %434, %435, %cst_97 {dimension_numbers = #tpu.dot_dimension_numbers<[1], [0], [0], [1], [0, 0, 1, 1], [], []>} : vector<2x128xbf16>, vector<128x512xbf16>, vector<2x512xf32> -> vector<2x512xf32>
    %437 = arith.addf %433, %436 : vector<2x512xf32>
    %438 = vector.extract_strided_slice %437 {offsets = [0, 0], sizes = [2, 128], strides = [1, 1]} : vector<2x512xf32> to vector<2x128xf32>
    %439 = arith.negf %438 : vector<2x128xf32>
    %440 = math.exp %439 : vector<2x128xf32>
    %cst_98 = arith.constant 1.000000e+00 : f32
    %441 = vector.broadcast %cst_98 : f32 to vector<2x128xf32>
    %442 = arith.addf %441, %440 : vector<2x128xf32>
    %443 = arith.divf %441, %442 : vector<2x128xf32>
    %444 = vector.extract_strided_slice %437 {offsets = [0, 128], sizes = [2, 128], strides = [1, 1]} : vector<2x512xf32> to vector<2x128xf32>
    %445 = arith.negf %444 : vector<2x128xf32>
    %446 = math.exp %445 : vector<2x128xf32>
    %cst_99 = arith.constant 1.000000e+00 : f32
    %447 = vector.broadcast %cst_99 : f32 to vector<2x128xf32>
    %448 = arith.addf %447, %446 : vector<2x128xf32>
    %449 = arith.divf %447, %448 : vector<2x128xf32>
    %450 = vector.extract_strided_slice %437 {offsets = [0, 256], sizes = [2, 128], strides = [1, 1]} : vector<2x512xf32> to vector<2x128xf32>
    %451 = math.tanh %450 : vector<2x128xf32>
    %452 = vector.extract_strided_slice %437 {offsets = [0, 384], sizes = [2, 128], strides = [1, 1]} : vector<2x512xf32> to vector<2x128xf32>
    %453 = arith.negf %452 : vector<2x128xf32>
    %454 = math.exp %453 : vector<2x128xf32>
    %cst_100 = arith.constant 1.000000e+00 : f32
    %455 = vector.broadcast %cst_100 : f32 to vector<2x128xf32>
    %456 = arith.addf %455, %454 : vector<2x128xf32>
    %457 = arith.divf %455, %456 : vector<2x128xf32>
    %458 = arith.mulf %449, %400 : vector<2x128xf32>
    %459 = arith.mulf %443, %451 : vector<2x128xf32>
    %460 = arith.addf %458, %459 : vector<2x128xf32>
    %461 = math.tanh %460 : vector<2x128xf32>
    %462 = arith.mulf %457, %461 : vector<2x128xf32>
    %463 = tpu.concatenate %462, %432 in 1 : vector<2x128xf32>, vector<2x128xf32> -> vector<2x256xf32>
    %464 = arith.truncf %463 : vector<2x256xf32> to vector<2x256xbf16>
    %c0_101 = arith.constant 0 : index
    %c0_102 = arith.constant 0 : index
    %465 = vector.load %arg4[%c0_101, %c0_102] : memref<256x512xbf16, #tpu.memory_space<vmem>>, vector<256x512xbf16>
    %cst_103 = arith.constant dense<0.000000e+00> : vector<2x512xf32>
    %466 = tpu.matmul %464, %465, %cst_103 {dimension_numbers = #tpu.dot_dimension_numbers<[1], [0], [0], [1], [0, 0, 1, 1], [], []>} : vector<2x256xbf16>, vector<256x512xbf16>, vector<2x512xf32> -> vector<2x512xf32>
    %467 = arith.addf %466, %8 : vector<2x512xf32>
    %468 = vector.extract_strided_slice %467 {offsets = [0, 0], sizes = [2, 128], strides = [1, 1]} : vector<2x512xf32> to vector<2x128xf32>
    %469 = arith.negf %468 : vector<2x128xf32>
    %470 = math.exp %469 : vector<2x128xf32>
    %cst_104 = arith.constant 1.000000e+00 : f32
    %471 = vector.broadcast %cst_104 : f32 to vector<2x128xf32>
    %472 = arith.addf %471, %470 : vector<2x128xf32>
    %473 = arith.divf %471, %472 : vector<2x128xf32>
    %474 = vector.extract_strided_slice %467 {offsets = [0, 128], sizes = [2, 128], strides = [1, 1]} : vector<2x512xf32> to vector<2x128xf32>
    %475 = arith.negf %474 : vector<2x128xf32>
    %476 = math.exp %475 : vector<2x128xf32>
    %cst_105 = arith.constant 1.000000e+00 : f32
    %477 = vector.broadcast %cst_105 : f32 to vector<2x128xf32>
    %478 = arith.addf %477, %476 : vector<2x128xf32>
    %479 = arith.divf %477, %478 : vector<2x128xf32>
    %480 = vector.extract_strided_slice %467 {offsets = [0, 256], sizes = [2, 128], strides = [1, 1]} : vector<2x512xf32> to vector<2x128xf32>
    %481 = math.tanh %480 : vector<2x128xf32>
    %482 = vector.extract_strided_slice %467 {offsets = [0, 384], sizes = [2, 128], strides = [1, 1]} : vector<2x512xf32> to vector<2x128xf32>
    %483 = arith.negf %482 : vector<2x128xf32>
    %484 = math.exp %483 : vector<2x128xf32>
    %cst_106 = arith.constant 1.000000e+00 : f32
    %485 = vector.broadcast %cst_106 : f32 to vector<2x128xf32>
    %486 = arith.addf %485, %484 : vector<2x128xf32>
    %487 = arith.divf %485, %486 : vector<2x128xf32>
    %488 = arith.mulf %479, %430 : vector<2x128xf32>
    %489 = arith.mulf %473, %481 : vector<2x128xf32>
    %490 = arith.addf %488, %489 : vector<2x128xf32>
    %491 = math.tanh %490 : vector<2x128xf32>
    %492 = arith.mulf %487, %491 : vector<2x128xf32>
    %493 = arith.truncf %492 : vector<2x128xf32> to vector<2x128xbf16>
    %c0_107 = arith.constant 0 : index
    %c0_108 = arith.constant 0 : index
    %494 = vector.load %arg6[%c0_107, %c0_108] : memref<128x128xbf16, #tpu.memory_space<vmem>>, vector<128x128xbf16>
    %cst_109 = arith.constant dense<0.000000e+00> : vector<2x128xf32>
    %495 = tpu.matmul %493, %494, %cst_109 {dimension_numbers = #tpu.dot_dimension_numbers<[1], [0], [0], [1], [0, 0, 1, 1], [], []>} : vector<2x128xbf16>, vector<128x128xbf16>, vector<2x128xf32> -> vector<2x128xf32>
    %c0_110 = arith.constant 0 : index
    %c0_111 = arith.constant 0 : index
    %496 = vector.load %arg7[%c0_110, %c0_111] : memref<1x128xf32, #tpu.memory_space<vmem>>, vector<1x128xf32>
    %497 = vector.broadcast %496 : vector<1x128xf32> to vector<2x128xf32>
    %498 = arith.addf %495, %497 : vector<2x128xf32>
    %c0_112 = arith.constant 0 : index
    %c0_113 = arith.constant 0 : index
    %499 = vector.load %arg8[%c0_112, %c0_113] : memref<2x128xf32, #tpu.memory_space<vmem>>, vector<2x128xf32>
    tpu.vector_store %arg8[%c0_112, %c0_113], %498 {strides = array<i32>} : memref<2x128xf32, #tpu.memory_space<vmem>>, vector<2x128xf32>,
    return
  }
}

</mosaic_0001>

<llo_original>
// kernel: tpu_custom_call.1
$region0: #{tpu_custom_call.1}
  #allocation0 [shape = 'u32[]', space=smem, size = 0x4, offset = 0x4, fixed_abs, tag = 'smem constant byte address 0x4 - core index']
  #allocation1 [shape = 'u32[144,128]{1,0:T(1,128)}', space=vmem, size = 0x12000, scoped, tag = 'internal scratch']
  %s0 = inlined_call_operand.hbm [shape: bf16[16,40], index: 0, kind: input, shape index: {}]
  %s1 = inlined_call_operand.hbm [shape: bf16[40,512], index: 1, kind: input, shape index: {}]
  %s2 = inlined_call_operand.hbm [shape: bf16[128,512], index: 2, kind: input, shape index: {}]
  %s3 = inlined_call_operand.vmem [shape: f32[1,512], index: 3, kind: input, shape index: {}]
  %s4 = inlined_call_operand.hbm [shape: bf16[256,512], index: 4, kind: input, shape index: {}]
  %s5 = inlined_call_operand.vmem [shape: f32[1,512], index: 5, kind: input, shape index: {}]
  %s6 = inlined_call_operand.hbm [shape: bf16[128,128], index: 6, kind: input, shape index: {}]
  %s7 = inlined_call_operand.vmem [shape: f32[1,128], index: 7, kind: input, shape index: {}]
  %s8 = inlined_call_operand.hbm [shape: f32[2,128], index: 8, kind: output, shape index: {}]
  %s9 = sld [smem:[#allocation0]]
  $region62: #{tpu_custom_call.1} parent=0
    _
  %s11 = ssub.s32 1, %s9
  %s12 = scalar_select 0, %s11, %s9
  $region1: #{tpu_custom_call.1} parent=0
    #allocation2 [shape = 'u8[4096]{0}', space=vmem, size = 0x1000, scoped, tag = 'input window, operand 0, single buffered']
    #allocation3 [shape = 's32[1]{0}', space=sflag, size = 0x4, scoped, tag = 'scoped memory for tpu_custom_call.1']
    #allocation4 [shape = 's32[1]{0}', space=sflag, size = 0x4, scoped, tag = 'scoped memory for tpu_custom_call.1']
    #allocation5 [shape = 'u8[40960]{0}', space=vmem, size = 0xa000, scoped, tag = 'input window, operand 1, single buffered']
    #allocation6 [shape = 's32[1]{0}', space=sflag, size = 0x4, scoped, tag = 'scoped memory for tpu_custom_call.1']
    #allocation7 [shape = 'u8[131072]{0}', space=vmem, size = 0x20000, scoped, tag = 'input window, operand 2, single buffered']
    #allocation8 [shape = 'u8[262144]{0}', space=vmem, size = 0x40000, scoped, tag = 'input window, operand 4, single buffered']
    #allocation9 [shape = 's32[1]{0}', space=sflag, size = 0x4, scoped, tag = 'scoped memory for tpu_custom_call.1']
    #allocation10 [shape = 'u8[32768]{0}', space=vmem, size = 0x8000, scoped, tag = 'input window, operand 6, single buffered']
    #allocation11 [shape = 'u8[1024]{0}', space=vmem, size = 0x400, scoped, tag = 'output window, operand 0, single buffered']
    %13 = vsyncpa [#allocation3], 0
    %14 = vsyncpa [#allocation6], 0
    %15 = vsyncpa [#allocation9], 0
    %16 = vsyncpa [#allocation4], 0
    // Predicated region
    $region2: #{tpu_custom_call.1} parent=1 // pred_check
      _
    $region3: #{tpu_custom_call.1} parent=1 // pred_check_branch
      %18 = sbr.rel (0) target = $region5
    $region4: #{tpu_custom_call.1} parent=1 // pred_region
      %s20 = ssub.s32 128, 128
      %21 = vsyncadd [#allocation3], %s20
      %s22 = sshll.u32 [#allocation2], 4
      %s23 = int_to_ptr.vmem [resolvable:$true] %s22
      %28 = dma.hbm_to_vmem [thread:$0]  %s0, 128, %s23, [#allocation3], 64, 64, 4
    $region5: #{tpu_custom_call.1} parent=1 // pred_fallthru
      _
    // Predicated region
    $region6: #{tpu_custom_call.1} parent=1 // pred_check
      _
    $region7: #{tpu_custom_call.1} parent=1 // pred_check_branch
      %30 = sbr.rel (0) target = $region9
    $region8: #{tpu_custom_call.1} parent=1 // pred_region
      %s32 = ssub.s32 1280, 1280
      %33 = vsyncadd [#allocation6], %s32
      %s34 = sshll.u32 [#allocation5], 4
      %s35 = int_to_ptr.vmem [resolvable:$true] %s34
      %40 = dma.hbm_to_vmem [thread:$0]  %s1, 1280, %s35, [#allocation6], 256, 256, 16
    $region9: #{tpu_custom_call.1} parent=1 // pred_fallthru
      _
    // Predicated region
    $region10: #{tpu_custom_call.1} parent=1 // pred_check
      _
    $region11: #{tpu_custom_call.1} parent=1 // pred_check_branch
      %42 = sbr.rel (0) target = $region13
    $region12: #{tpu_custom_call.1} parent=1 // pred_region
      %s44 = ssub.s32 4096, 4096
      %45 = vsyncadd [#allocation6], %s44
      %s46 = sshll.u32 [#allocation7], 4
      %s47 = int_to_ptr.vmem [resolvable:$true] %s46
      %52 = dma.hbm_to_vmem [thread:$0]  %s2, 4096, %s47, [#allocation6], 256, 256, 16
    $region13: #{tpu_custom_call.1} parent=1 // pred_fallthru
      _
    // Predicated region
    $region14: #{tpu_custom_call.1} parent=1 // pred_check
      _
    $region15: #{tpu_custom_call.1} parent=1 // pred_check_branch
      %54 = sbr.rel (0) target = $region17
    $region16: #{tpu_custom_call.1} parent=1 // pred_region
      _
    $region17: #{tpu_custom_call.1} parent=1 // pred_fallthru
      _
    // Predicated region
    $region18: #{tpu_custom_call.1} parent=1 // pred_check
      _
    $region19: #{tpu_custom_call.1} parent=1 // pred_check_branch
      %56 = sbr.rel (0) target = $region21
    $region20: #{tpu_custom_call.1} parent=1 // pred_region
      %s58 = ssub.s32 8192, 8192
      %59 = vsyncadd [#allocation9], %s58
      %s60 = sshll.u32 [#allocation8], 4
      %s61 = int_to_ptr.vmem [resolvable:$true] %s60
      %66 = dma.hbm_to_vmem [thread:$0]  %s4, 8192, %s61, [#allocation9], 256, 256, 16
    $region21: #{tpu_custom_call.1} parent=1 // pred_fallthru
      _
    // Predicated region
    $region22: #{tpu_custom_call.1} parent=1 // pred_check
      _
    $region23: #{tpu_custom_call.1} parent=1 // pred_check_branch
      %68 = sbr.rel (0) target = $region25
    $region24: #{tpu_custom_call.1} parent=1 // pred_region
      _
    $region25: #{tpu_custom_call.1} parent=1 // pred_fallthru
      _
    // Predicated region
    $region26: #{tpu_custom_call.1} parent=1 // pred_check
      _
    $region27: #{tpu_custom_call.1} parent=1 // pred_check_branch
      %70 = sbr.rel (0) target = $region29
    $region28: #{tpu_custom_call.1} parent=1 // pred_region
      %s72 = ssub.s32 1024, 1024
      %73 = vsyncadd [#allocation9], %s72
      %s74 = sshll.u32 [#allocation10], 4
      %s75 = int_to_ptr.vmem [resolvable:$true] %s74
      %80 = dma.hbm_to_vmem [thread:$0]  %s6, 1024, %s75, [#allocation9], 64, 64, 4
    $region29: #{tpu_custom_call.1} parent=1 // pred_fallthru
      _
    // Predicated region
    $region30: #{tpu_custom_call.1} parent=1 // pred_check
      _
    $region31: #{tpu_custom_call.1} parent=1 // pred_check_branch
      %82 = sbr.rel (0) target = $region33
    $region32: #{tpu_custom_call.1} parent=1 // pred_region
      _
    $region33: #{tpu_custom_call.1} parent=1 // pred_fallthru
      _
    // Predicated region
    $region34: #{tpu_custom_call.1} parent=1 // pred_check
      _
    $region35: #{tpu_custom_call.1} parent=1 // pred_check_branch
      %84 = sbr.rel (0) target = $region37
    $region36: #{tpu_custom_call.1} parent=1 // pred_region
      %85 = dma.done [#allocation3], 128
    $region37: #{tpu_custom_call.1} parent=1 // pred_fallthru
      _
    // Predicated region
    $region38: #{tpu_custom_call.1} parent=1 // pred_check
      _
    $region39: #{tpu_custom_call.1} parent=1 // pred_check_branch
      %87 = sbr.rel (0) target = $region41
    $region40: #{tpu_custom_call.1} parent=1 // pred_region
      %88 = dma.done [#allocation6], 1280
    $region41: #{tpu_custom_call.1} parent=1 // pred_fallthru
      _
    // Predicated region
    $region42: #{tpu_custom_call.1} parent=1 // pred_check
      _
    $region43: #{tpu_custom_call.1} parent=1 // pred_check_branch
      %90 = sbr.rel (0) target = $region45
    $region44: #{tpu_custom_call.1} parent=1 // pred_region
      %91 = dma.done [#allocation6], 4096
    $region45: #{tpu_custom_call.1} parent=1 // pred_fallthru
      _
    // Predicated region
    $region46: #{tpu_custom_call.1} parent=1 // pred_check
      _
    $region47: #{tpu_custom_call.1} parent=1 // pred_check_branch
      %93 = sbr.rel (0) target = $region49
    $region48: #{tpu_custom_call.1} parent=1 // pred_region
      %94 = dma.done [#allocation9], 8192
    $region49: #{tpu_custom_call.1} parent=1 // pred_fallthru
      _
    // Predicated region
    $region50: #{tpu_custom_call.1} parent=1 // pred_check
      _
    $region51: #{tpu_custom_call.1} parent=1 // pred_check_branch
      %96 = sbr.rel (0) target = $region53
    $region52: #{tpu_custom_call.1} parent=1 // pred_region
      %97 = dma.done [#allocation9], 1024
    $region53: #{tpu_custom_call.1} parent=1 // pred_fallthru
      _
    %v99 = vld [vmem:[#allocation2] sm:$0xf]
    %v100 = vld [vmem:[#allocation2 + $0x4] sm:$0xf]
    %v101 = vld [vmem:[#allocation5] sm:$0xff]
    %v102 = vld [vmem:[#allocation5 + $0x8] sm:$0xff]
    %v103 = vld [vmem:[#allocation5 + $0x10] sm:$0xff]
    %v104 = vld [vmem:[#allocation5 + $0x18] sm:$0xff]
    %v105 = vld [vmem:[#allocation5 + $0x20] sm:$0xff]
    %v106 = vld [vmem:[#allocation5 + $0x28] sm:$0xff]
    %v107 = vld [vmem:[#allocation5 + $0x30] sm:$0xff]
    %v108 = vld [vmem:[#allocation5 + $0x38] sm:$0xff]
    %v109 = vld [vmem:[#allocation5 + $0x40] sm:$0xff]
    %v110 = vld [vmem:[#allocation5 + $0x48] sm:$0xff]
    %v111 = vld [vmem:[%s3] sm:$0xf]
    %v113 = vlaneseq
    %v114 = vshrl.u32 %v113, 7
    %v115 = vsub.s32 0, %v114
    %v116 = vrot.slane %v111, %v115
    %v117 = vlaneseq
    %v118 = vshrl.u32 %v117, 7
    %v119 = vsub.s32 1, %v118
    %v120 = vrot.slane %v111, %v119
    %v121 = vlaneseq
    %v122 = vshrl.u32 %v121, 7
    %v123 = vsub.s32 2, %v122
    %v124 = vrot.slane %v111, %v123
    %v125 = vlaneseq
    %v126 = vshrl.u32 %v125, 7
    %v127 = vsub.s32 3, %v126
    %v128 = vrot.slane %v111, %v127
    %v135 = vunpack.c.l.b16 %v99
    %v136 = vunpack.c.l.b16 %v100
    %v137 = vpack.c.b16 %v136, %v135
    %v148 = vunpack.c.l.b16 %v101
    %v149 = vunpack.c.h.b16 %v101
    %v150 = vunpack.c.l.b16 %v102
    %v151 = vunpack.c.h.b16 %v102
    %v152 = vunpack.c.l.b16 %v103
    %v153 = vunpack.c.h.b16 %v103
    %v154 = vunpack.c.l.b16 %v104
    %v155 = vunpack.c.h.b16 %v104
    %v156 = vunpack.c.l.b16 %v105
    %v157 = vunpack.c.h.b16 %v105
    %v158 = vunpack.c.l.b16 %v106
    %v159 = vunpack.c.h.b16 %v106
    %v160 = vunpack.c.l.b16 %v107
    %v161 = vunpack.c.h.b16 %v107
    %v162 = vunpack.c.l.b16 %v108
    %v163 = vunpack.c.h.b16 %v108
    %v164 = vunpack.c.l.b16 %v109
    %v165 = vunpack.c.h.b16 %v109
    %v166 = vunpack.c.l.b16 %v110
    %v167 = vunpack.c.h.b16 %v110
    %v168 = vpack.c.b16 %v152, %v148
    %v169 = vpack.c.b16 %v153, %v149
    %v170 = vpack.c.b16 %v154, %v150
    %v171 = vpack.c.b16 %v155, %v151
    %v172 = vpack.c.b16 %v160, %v156
    %v173 = vpack.c.b16 %v161, %v157
    %v174 = vpack.c.b16 %v162, %v158
    %v175 = vpack.c.b16 %v163, %v159
    %v176 = vpack.c.b16 %v164, %v164
    %v177 = vpack.c.b16 %v165, %v165
    %v178 = vpack.c.b16 %v166, %v166
    %v179 = vpack.c.b16 %v167, %v167
    %vm188 = vcmask 326656
    %v190 = vsel %vm188, %v137, 0
    %vm192 = vcmask 1043456
    %v194 = vsel %vm192, %v176, 0
    %v197 = vsel %vm192, %v177, 0
    %v200 = vsel %vm192, %v178, 0
    %v203 = vsel %vm192, %v179, 0
    %205 = vmatprep.subr.bf16.mxu0 0
    %206 = vmatpush1.bf16.msra.mxu0 0
    %207 = vmatprep.subr.bf16.mxu0 0
    %208 = vmatpush1.bf16.msra.mxu0 0
    %209 = vmatprep.subr.bf16.mxu0 0
    %210 = vmatpush1.bf16.msra.mxu0 0
    %211 = vmatprep.subr.bf16.mxu0 0
    %212 = vmatpush1.bf16.msra.mxu0 0
    %213 = vmatprep.subr.bf16.mxu0 0
    %214 = vmatpush1.bf16.msra.mxu0 0
    %215 = vmatprep.subr.bf16.mxu0 %v197
    %216 = vmatpush1.bf16.msra.mxu0 %v194
    %217 = vmatprep.subr.bf16.mxu0 %v173
    %218 = vmatpush1.bf16.msra.mxu0 %v172
    %219 = vmatprep.subr.bf16.mxu0 %v169
    %220 = vmatpush1.bf16.msra.mxu0 %v168
    %221 = vmatprep.subr.bf16.mxu0 0
    %222 = vmatpush2.bf16.msra.mxu0 0
    %223 = vmatprep.subr.bf16.mxu0 0
    %224 = vmatpush2.bf16.msra.mxu0 0
    %225 = vmatprep.subr.bf16.mxu0 0
    %226 = vmatpush2.bf16.msra.mxu0 0
    %227 = vmatprep.subr.bf16.mxu0 0
    %228 = vmatpush2.bf16.msra.mxu0 0
    %229 = vmatprep.subr.bf16.mxu0 0
    %230 = vmatpush2.bf16.msra.mxu0 0
    %231 = vmatprep.subr.bf16.mxu0 0
    %232 = vmatpush2.bf16.msra.mxu0 0
    %233 = vmatprep.subr.bf16.mxu0 0
    %234 = vmatpush2.bf16.msra.mxu0 0
    %235 = vmatprep.subr.bf16.mxu0 0
    %236 = vmatpush2.bf16.msra.mxu0 0
    %237 = vmatprep.mubr.bf16.mxu0 0
    %238 = vmatmul.mubr.bf16.gmra.mxu0 %v190
    %v239 = vpop.f32.mrf.mxu0
    %v240 = vadd.f32 %v116, %v239
    %v241 = vpop.f32.mrf.mxu0
    %v242 = vadd.f32 %v120, %v241
    %v243 = vpop.f32.mrf.mxu0
    %v244 = vadd.f32 %v116, %v243
    %v245 = vpop.f32.mrf.mxu0
    %v246 = vadd.f32 %v120, %v245
    %247 = vdwg.mxu0
    %248 = vmatprep.subr.bf16.mxu0 0
    %249 = vmatpush1.bf16.msra.mxu0 0
    %250 = vmatprep.subr.bf16.mxu0 0
    %251 = vmatpush1.bf16.msra.mxu0 0
    %252 = vmatprep.subr.bf16.mxu0 0
    %253 = vmatpush1.bf16.msra.mxu0 0
    %254 = vmatprep.subr.bf16.mxu0 0
    %255 = vmatpush1.bf16.msra.mxu0 0
    %256 = vmatprep.subr.bf16.mxu0 0
    %257 = vmatpush1.bf16.msra.mxu0 0
    %258 = vmatprep.subr.bf16.mxu0 %v203
    %259 = vmatpush1.bf16.msra.mxu0 %v200
    %260 = vmatprep.subr.bf16.mxu0 %v175
    %261 = vmatpush1.bf16.msra.mxu0 %v174
    %262 = vmatprep.subr.bf16.mxu0 %v171
    %263 = vmatpush1.bf16.msra.mxu0 %v170
    %264 = vmatprep.subr.bf16.mxu0 0
    %265 = vmatpush2.bf16.msra.mxu0 0
    %266 = vmatprep.subr.bf16.mxu0 0
    %267 = vmatpush2.bf16.msra.mxu0 0
    %268 = vmatprep.subr.bf16.mxu0 0
    %269 = vmatpush2.bf16.msra.mxu0 0
    %270 = vmatprep.subr.bf16.mxu0 0
    %271 = vmatpush2.bf16.msra.mxu0 0
    %272 = vmatprep.subr.bf16.mxu0 0
    %273 = vmatpush2.bf16.msra.mxu0 0
    %274 = vmatprep.subr.bf16.mxu0 0
    %275 = vmatpush2.bf16.msra.mxu0 0
    %276 = vmatprep.subr.bf16.mxu0 0
    %277 = vmatpush2.bf16.msra.mxu0 0
    %278 = vmatprep.subr.bf16.mxu0 0
    %279 = vmatpush2.bf16.msra.mxu0 0
    %280 = vmatprep.mubr.bf16.mxu0 0
    %281 = vmatmul.mubr.bf16.gmra.mxu0 %v190
    %v282 = vpop.f32.mrf.mxu0
    %v283 = vadd.f32 %v124, %v282
    %v284 = vpop.f32.mrf.mxu0
    %v285 = vadd.f32 %v128, %v284
    %v286 = vpop.f32.mrf.mxu0
    %v287 = vadd.f32 %v124, %v286
    %v288 = vpop.f32.mrf.mxu0
    %v289 = vadd.f32 %v128, %v288
    %290 = vdwg.mxu0
    %v291 = vld [vmem:[%s5] sm:$0xf]
    %v293 = vlaneseq
    %v294 = vshrl.u32 %v293, 7
    %v295 = vsub.s32 0, %v294
    %v296 = vrot.slane %v291, %v295
    %v297 = vlaneseq
    %v298 = vshrl.u32 %v297, 7
    %v299 = vsub.s32 1, %v298
    %v300 = vrot.slane %v291, %v299
    %v301 = vlaneseq
    %v302 = vshrl.u32 %v301, 7
    %v303 = vsub.s32 2, %v302
    %v304 = vrot.slane %v291, %v303
    %v305 = vlaneseq
    %v306 = vshrl.u32 %v305, 7
    %v307 = vsub.s32 3, %v306
    %v308 = vrot.slane %v291, %v307
    %v313 = vld [vmem:[#allocation7] sm:$0xff]
    %v314 = vld [vmem:[#allocation7 + $0x8] sm:$0xff]
    %v315 = vld [vmem:[#allocation7 + $0x10] sm:$0xff]
    %v316 = vld [vmem:[#allocation7 + $0x18] sm:$0xff]
    %v317 = vld [vmem:[#allocation7 + $0x20] sm:$0xff]
    %v318 = vld [vmem:[#allocation7 + $0x28] sm:$0xff]
    %v319 = vld [vmem:[#allocation7 + $0x30] sm:$0xff]
    %v320 = vld [vmem:[#allocation7 + $0x38] sm:$0xff]
    %v321 = vld [vmem:[#allocation7 + $0x40] sm:$0xff]
    %v322 = vld [vmem:[#allocation7 + $0x48] sm:$0xff]
    %v323 = vld [vmem:[#allocation7 + $0x50] sm:$0xff]
    %v324 = vld [vmem:[#allocation7 + $0x58] sm:$0xff]
    %v325 = vld [vmem:[#allocation7 + $0x60] sm:$0xff]
    %v326 = vld [vmem:[#allocation7 + $0x68] sm:$0xff]
    %v327 = vld [vmem:[#allocation7 + $0x70] sm:$0xff]
    %v328 = vld [vmem:[#allocation7 + $0x78] sm:$0xff]
    %v329 = vld [vmem:[#allocation7 + $0x80] sm:$0xff]
    %v330 = vld [vmem:[#allocation7 + $0x88] sm:$0xff]
    %v331 = vld [vmem:[#allocation7 + $0x90] sm:$0xff]
    %v332 = vld [vmem:[#allocation7 + $0x98] sm:$0xff]
    %v333 = vld [vmem:[#allocation7 + $0xa0] sm:$0xff]
    %v334 = vld [vmem:[#allocation7 + $0xa8] sm:$0xff]
    %v335 = vld [vmem:[#allocation7 + $0xb0] sm:$0xff]
    %v336 = vld [vmem:[#allocation7 + $0xb8] sm:$0xff]
    %v337 = vld [vmem:[#allocation7 + $0xc0] sm:$0xff]
    %v338 = vld [vmem:[#allocation7 + $0xc8] sm:$0xff]
    %v339 = vld [vmem:[#allocation7 + $0xd0] sm:$0xff]
    %v340 = vld [vmem:[#allocation7 + $0xd8] sm:$0xff]
    %v341 = vld [vmem:[#allocation7 + $0xe0] sm:$0xff]
    %v342 = vld [vmem:[#allocation7 + $0xe8] sm:$0xff]
    %v343 = vld [vmem:[#allocation7 + $0xf0] sm:$0xff]
    %v344 = vld [vmem:[#allocation7 + $0xf8] sm:$0xff]
    %v377 = vunpack.c.l.b16 %v313
    %v378 = vunpack.c.h.b16 %v313
    %v379 = vunpack.c.l.b16 %v314
    %v380 = vunpack.c.h.b16 %v314
    %v381 = vunpack.c.l.b16 %v315
    %v382 = vunpack.c.h.b16 %v315
    %v383 = vunpack.c.l.b16 %v316
    %v384 = vunpack.c.h.b16 %v316
    %v385 = vunpack.c.l.b16 %v317
    %v386 = vunpack.c.h.b16 %v317
    %v387 = vunpack.c.l.b16 %v318
    %v388 = vunpack.c.h.b16 %v318
    %v389 = vunpack.c.l.b16 %v319
    %v390 = vunpack.c.h.b16 %v319
    %v391 = vunpack.c.l.b16 %v320
    %v392 = vunpack.c.h.b16 %v320
    %v393 = vunpack.c.l.b16 %v321
    %v394 = vunpack.c.h.b16 %v321
    %v395 = vunpack.c.l.b16 %v322
    %v396 = vunpack.c.h.b16 %v322
    %v397 = vunpack.c.l.b16 %v323
    %v398 = vunpack.c.h.b16 %v323
    %v399 = vunpack.c.l.b16 %v324
    %v400 = vunpack.c.h.b16 %v324
    %v401 = vunpack.c.l.b16 %v325
    %v402 = vunpack.c.h.b16 %v325
    %v403 = vunpack.c.l.b16 %v326
    %v404 = vunpack.c.h.b16 %v326
    %v405 = vunpack.c.l.b16 %v327
    %v406 = vunpack.c.h.b16 %v327
    %v407 = vunpack.c.l.b16 %v328
    %v408 = vunpack.c.h.b16 %v328
    %v409 = vunpack.c.l.b16 %v329
    %v410 = vunpack.c.h.b16 %v329
    %v411 = vunpack.c.l.b16 %v330
    %v412 = vunpack.c.h.b16 %v330
    %v413 = vunpack.c.l.b16 %v331
    %v414 = vunpack.c.h.b16 %v331
    %v415 = vunpack.c.l.b16 %v332
    %v416 = vunpack.c.h.b16 %v332
    %v417 = vunpack.c.l.b16 %v333
    %v418 = vunpack.c.h.b16 %v333
    %v419 = vunpack.c.l.b16 %v334
    %v420 = vunpack.c.h.b16 %v334
    %v421 = vunpack.c.l.b16 %v335
    %v422 = vunpack.c.h.b16 %v335
    %v423 = vunpack.c.l.b16 %v336
    %v424 = vunpack.c.h.b16 %v336
    %v425 = vunpack.c.l.b16 %v337
    %v426 = vunpack.c.h.b16 %v337
    %v427 = vunpack.c.l.b16 %v338
    %v428 = vunpack.c.h.b16 %v338
    %v429 = vunpack.c.l.b16 %v339
    %v430 = vunpack.c.h.b16 %v339
    %v431 = vunpack.c.l.b16 %v340
    %v432 = vunpack.c.h.b16 %v340
    %v433 = vunpack.c.l.b16 %v341
    %v434 = vunpack.c.h.b16 %v341
    %v435 = vunpack.c.l.b16 %v342
    %v436 = vunpack.c.h.b16 %v342
    %v437 = vunpack.c.l.b16 %v343
    %v438 = vunpack.c.h.b16 %v343
    %v439 = vunpack.c.l.b16 %v344
    %v440 = vunpack.c.h.b16 %v344
    %v441 = vpack.c.b16 %v381, %v377
    %v442 = vpack.c.b16 %v382, %v378
    %v443 = vpack.c.b16 %v383, %v379
    %v444 = vpack.c.b16 %v384, %v380
    %v445 = vpack.c.b16 %v389, %v385
    %v446 = vpack.c.b16 %v390, %v386
    %v447 = vpack.c.b16 %v391, %v387
    %v448 = vpack.c.b16 %v392, %v388
    %v449 = vpack.c.b16 %v397, %v393
    %v450 = vpack.c.b16 %v398, %v394
    %v451 = vpack.c.b16 %v399, %v395
    %v452 = vpack.c.b16 %v400, %v396
    %v453 = vpack.c.b16 %v405, %v401
    %v454 = vpack.c.b16 %v406, %v402
    %v455 = vpack.c.b16 %v407, %v403
    %v456 = vpack.c.b16 %v408, %v404
    %v457 = vpack.c.b16 %v413, %v409
    %v458 = vpack.c.b16 %v414, %v410
    %v459 = vpack.c.b16 %v415, %v411
    %v460 = vpack.c.b16 %v416, %v412
    %v461 = vpack.c.b16 %v421, %v417
    %v462 = vpack.c.b16 %v422, %v418
    %v463 = vpack.c.b16 %v423, %v419
    %v464 = vpack.c.b16 %v424, %v420
    %v465 = vpack.c.b16 %v429, %v425
    %v466 = vpack.c.b16 %v430, %v426
    %v467 = vpack.c.b16 %v431, %v427
    %v468 = vpack.c.b16 %v432, %v428
    %v469 = vpack.c.b16 %v437, %v433
    %v470 = vpack.c.b16 %v438, %v434
    %v471 = vpack.c.b16 %v439, %v435
    %v472 = vpack.c.b16 %v440, %v436
    %505 = vmatprep.subr.bf16.mxu0 %v470
    %506 = vmatpush1.bf16.msra.mxu0 %v469
    %507 = vmatprep.subr.bf16.mxu0 %v466
    %508 = vmatpush1.bf16.msra.mxu0 %v465
    %509 = vmatprep.subr.bf16.mxu0 %v462
    %510 = vmatpush1.bf16.msra.mxu0 %v461
    %511 = vmatprep.subr.bf16.mxu0 %v458
    %512 = vmatpush1.bf16.msra.mxu0 %v457
    %513 = vmatprep.subr.bf16.mxu0 %v454
    %514 = vmatpush1.bf16.msra.mxu0 %v453
    %515 = vmatprep.subr.bf16.mxu0 %v450
    %516 = vmatpush1.bf16.msra.mxu0 %v449
    %517 = vmatprep.subr.bf16.mxu0 %v446
    %518 = vmatpush1.bf16.msra.mxu0 %v445
    %519 = vmatprep.subr.bf16.mxu0 %v442
    %520 = vmatpush1.bf16.msra.mxu0 %v441
    %521 = vmatprep.subr.bf16.mxu0 0
    %522 = vmatpush2.bf16.msra.mxu0 0
    %523 = vmatprep.subr.bf16.mxu0 0
    %524 = vmatpush2.bf16.msra.mxu0 0
    %525 = vmatprep.subr.bf16.mxu0 0
    %526 = vmatpush2.bf16.msra.mxu0 0
    %527 = vmatprep.subr.bf16.mxu0 0
    %528 = vmatpush2.bf16.msra.mxu0 0
    %529 = vmatprep.subr.bf16.mxu0 0
    %530 = vmatpush2.bf16.msra.mxu0 0
    %531 = vmatprep.subr.bf16.mxu0 0
    %532 = vmatpush2.bf16.msra.mxu0 0
    %533 = vmatprep.subr.bf16.mxu0 0
    %534 = vmatpush2.bf16.msra.mxu0 0
    %535 = vmatprep.subr.bf16.mxu0 0
    %536 = vmatpush2.bf16.msra.mxu0 0
    %537 = vmatprep.mubr.bf16.mxu0 0
    %538 = vmatmul.mubr.bf16.gmra.mxu0 0
    %v539 = vpop.f32.mrf.mxu0
    %v540 = vadd.f32 0.0, %v539
    %v541 = vpop.f32.mrf.mxu0
    %v542 = vadd.f32 0.0, %v541
    %v543 = vpop.f32.mrf.mxu0
    %v544 = vpop.f32.mrf.mxu0
    %545 = vdwg.mxu0
    %546 = vmatprep.subr.bf16.mxu0 %v472
    %547 = vmatpush1.bf16.msra.mxu0 %v471
    %548 = vmatprep.subr.bf16.mxu0 %v468
    %549 = vmatpush1.bf16.msra.mxu0 %v467
    %550 = vmatprep.subr.bf16.mxu0 %v464
    %551 = vmatpush1.bf16.msra.mxu0 %v463
    %552 = vmatprep.subr.bf16.mxu0 %v460
    %553 = vmatpush1.bf16.msra.mxu0 %v459
    %554 = vmatprep.subr.bf16.mxu0 %v456
    %555 = vmatpush1.bf16.msra.mxu0 %v455
    %556 = vmatprep.subr.bf16.mxu0 %v452
    %557 = vmatpush1.bf16.msra.mxu0 %v451
    %558 = vmatprep.subr.bf16.mxu0 %v448
    %559 = vmatpush1.bf16.msra.mxu0 %v447
    %560 = vmatprep.subr.bf16.mxu0 %v444
    %561 = vmatpush1.bf16.msra.mxu0 %v443
    %562 = vmatprep.subr.bf16.mxu0 0
    %563 = vmatpush2.bf16.msra.mxu0 0
    %564 = vmatprep.subr.bf16.mxu0 0
    %565 = vmatpush2.bf16.msra.mxu0 0
    %566 = vmatprep.subr.bf16.mxu0 0
    %567 = vmatpush2.bf16.msra.mxu0 0
    %568 = vmatprep.subr.bf16.mxu0 0
    %569 = vmatpush2.bf16.msra.mxu0 0
    %570 = vmatprep.subr.bf16.mxu0 0
    %571 = vmatpush2.bf16.msra.mxu0 0
    %572 = vmatprep.subr.bf16.mxu0 0
    %573 = vmatpush2.bf16.msra.mxu0 0
    %574 = vmatprep.subr.bf16.mxu0 0
    %575 = vmatpush2.bf16.msra.mxu0 0
    %576 = vmatprep.subr.bf16.mxu0 0
    %577 = vmatpush2.bf16.msra.mxu0 0
    %578 = vmatprep.mubr.bf16.mxu0 0
    %579 = vmatmul.mubr.bf16.gmra.mxu0 0
    %v580 = vpop.f32.mrf.mxu0
    %v581 = vadd.f32 0.0, %v580
    %v582 = vpop.f32.mrf.mxu0
    %v583 = vadd.f32 0.0, %v582
    %v584 = vpop.f32.mrf.mxu0
    %v585 = vpop.f32.mrf.mxu0
    %586 = vdwg.mxu0
    %v587 = vadd.f32 %v240, %v540
    %v588 = vadd.f32 %v242, %v542
    %v589 = vadd.f32 %v283, %v581
    %v590 = vadd.f32 %v285, %v583
    %v591 = vxor.u32 %v587, 2147483648
    %v592 = vmul.f32 %v591, 1.442695
    %v593 = vpow.pop %v592
    %v594 = vadd.f32 %v593, 1.0
    %v595 = vrcp.pop %v594
    %v596 = vmul.f32 1.0, %v595
    %v597 = vxor.u32 %v588, 2147483648
    %v598 = vmul.f32 %v597, 1.442695
    %v599 = vpow.pop %v598
    %v600 = vadd.f32 %v599, 1.0
    %v601 = vrcp.pop %v600
    %v602 = vmul.f32 1.0, %v601
    %v603 = vtanh.pop %v589
    %v604 = vxor.u32 %v590, 2147483648
    %v605 = vmul.f32 %v604, 1.442695
    %v606 = vpow.pop %v605
    %v607 = vadd.f32 %v606, 1.0
    %v608 = vrcp.pop %v607
    %v609 = vmul.f32 1.0, %v608
    %v610 = vmul.f32 %v602, 0.0
    %v611 = vmul.f32 %v596, %v603
    %v612 = vadd.f32 %v610, %v611
    %v613 = vtanh.pop %v612
    %v614 = vmul.f32 %v609, %v613
    %v615 = vpack.c.bf16 %v614, %v614
    %v616 = vpack.c.bf16 0.0, 0.0
    %v617 = vld [vmem:[#allocation8] sm:$0xff]
    %v618 = vld [vmem:[#allocation8 + $0x8] sm:$0xff]
    %v619 = vld [vmem:[#allocation8 + $0x10] sm:$0xff]
    %v620 = vld [vmem:[#allocation8 + $0x18] sm:$0xff]
    %v621 = vld [vmem:[#allocation8 + $0x20] sm:$0xff]
    %v622 = vld [vmem:[#allocation8 + $0x28] sm:$0xff]
    %v623 = vld [vmem:[#allocation8 + $0x30] sm:$0xff]
    %v624 = vld [vmem:[#allocation8 + $0x38] sm:$0xff]
    %v625 = vld [vmem:[#allocation8 + $0x40] sm:$0xff]
    %v626 = vld [vmem:[#allocation8 + $0x48] sm:$0xff]
    %v627 = vld [vmem:[#allocation8 + $0x50] sm:$0xff]
    %v628 = vld [vmem:[#allocation8 + $0x58] sm:$0xff]
    %v629 = vld [vmem:[#allocation8 + $0x60] sm:$0xff]
    %v630 = vld [vmem:[#allocation8 + $0x68] sm:$0xff]
    %v631 = vld [vmem:[#allocation8 + $0x70] sm:$0xff]
    %v632 = vld [vmem:[#allocation8 + $0x78] sm:$0xff]
    %v633 = vld [vmem:[#allocation8 + $0x80] sm:$0xff]
    %v634 = vld [vmem:[#allocation8 + $0x88] sm:$0xff]
    %v635 = vld [vmem:[#allocation8 + $0x90] sm:$0xff]
    %v636 = vld [vmem:[#allocation8 + $0x98] sm:$0xff]
    %v637 = vld [vmem:[#allocation8 + $0xa0] sm:$0xff]
    %v638 = vld [vmem:[#allocation8 + $0xa8] sm:$0xff]
    %v639 = vld [vmem:[#allocation8 + $0xb0] sm:$0xff]
    %v640 = vld [vmem:[#allocation8 + $0xb8] sm:$0xff]
    %v641 = vld [vmem:[#allocation8 + $0xc0] sm:$0xff]
    %v642 = vld [vmem:[#allocation8 + $0xc8] sm:$0xff]
    %v643 = vld [vmem:[#allocation8 + $0xd0] sm:$0xff]
    %v644 = vld [vmem:[#allocation8 + $0xd8] sm:$0xff]
    %v645 = vld [vmem:[#allocation8 + $0xe0] sm:$0xff]
    %v646 = vld [vmem:[#allocation8 + $0xe8] sm:$0xff]
    %v647 = vld [vmem:[#allocation8 + $0xf0] sm:$0xff]
    %v648 = vld [vmem:[#allocation8 + $0xf8] sm:$0xff]
    %v649 = vld [vmem:[#allocation8 + $0x100] sm:$0xff]
    %v650 = vld [vmem:[#allocation8 + $0x108] sm:$0xff]
    %v651 = vld [vmem:[#allocation8 + $0x110] sm:$0xff]
    %v652 = vld [vmem:[#allocation8 + $0x118] sm:$0xff]
    %v653 = vld [vmem:[#allocation8 + $0x120] sm:$0xff]
    %v654 = vld [vmem:[#allocation8 + $0x128] sm:$0xff]
    %v655 = vld [vmem:[#allocation8 + $0x130] sm:$0xff]
    %v656 = vld [vmem:[#allocation8 + $0x138] sm:$0xff]
    %v657 = vld [vmem:[#allocation8 + $0x140] sm:$0xff]
    %v658 = vld [vmem:[#allocation8 + $0x148] sm:$0xff]
    %v659 = vld [vmem:[#allocation8 + $0x150] sm:$0xff]
    %v660 = vld [vmem:[#allocation8 + $0x158] sm:$0xff]
    %v661 = vld [vmem:[#allocation8 + $0x160] sm:$0xff]
    %v662 = vld [vmem:[#allocation8 + $0x168] sm:$0xff]
    %v663 = vld [vmem:[#allocation8 + $0x170] sm:$0xff]
    %v664 = vld [vmem:[#allocation8 + $0x178] sm:$0xff]
    %v665 = vld [vmem:[#allocation8 + $0x180] sm:$0xff]
    %v666 = vld [vmem:[#allocation8 + $0x188] sm:$0xff]
    %v667 = vld [vmem:[#allocation8 + $0x190] sm:$0xff]
    %v668 = vld [vmem:[#allocation8 + $0x198] sm:$0xff]
    %v669 = vld [vmem:[#allocation8 + $0x1a0] sm:$0xff]
    %v670 = vld [vmem:[#allocation8 + $0x1a8] sm:$0xff]
    %v671 = vld [vmem:[#allocation8 + $0x1b0] sm:$0xff]
    %v672 = vld [vmem:[#allocation8 + $0x1b8] sm:$0xff]
    %v673 = vld [vmem:[#allocation8 + $0x1c0] sm:$0xff]
    %v674 = vld [vmem:[#allocation8 + $0x1c8] sm:$0xff]
    %v675 = vld [vmem:[#allocation8 + $0x1d0] sm:$0xff]
    %v676 = vld [vmem:[#allocation8 + $0x1d8] sm:$0xff]
    %v677 = vld [vmem:[#allocation8 + $0x1e0] sm:$0xff]
    %v678 = vld [vmem:[#allocation8 + $0x1e8] sm:$0xff]
    %v679 = vld [vmem:[#allocation8 + $0x1f0] sm:$0xff]
    %v680 = vld [vmem:[#allocation8 + $0x1f8] sm:$0xff]
    %v745 = vunpack.c.l.b16 %v617
    %v746 = vunpack.c.h.b16 %v617
    %v747 = vunpack.c.l.b16 %v618
    %v748 = vunpack.c.h.b16 %v618
    %v749 = vunpack.c.l.b16 %v619
    %v750 = vunpack.c.h.b16 %v619
    %v751 = vunpack.c.l.b16 %v620
    %v752 = vunpack.c.h.b16 %v620
    %v753 = vunpack.c.l.b16 %v621
    %v754 = vunpack.c.h.b16 %v621
    %v755 = vunpack.c.l.b16 %v622
    %v756 = vunpack.c.h.b16 %v622
    %v757 = vunpack.c.l.b16 %v623
    %v758 = vunpack.c.h.b16 %v623
    %v759 = vunpack.c.l.b16 %v624
    %v760 = vunpack.c.h.b16 %v624
    %v761 = vunpack.c.l.b16 %v625
    %v762 = vunpack.c.h.b16 %v625
    %v763 = vunpack.c.l.b16 %v626
    %v764 = vunpack.c.h.b16 %v626
    %v765 = vunpack.c.l.b16 %v627
    %v766 = vunpack.c.h.b16 %v627
    %v767 = vunpack.c.l.b16 %v628
    %v768 = vunpack.c.h.b16 %v628
    %v769 = vunpack.c.l.b16 %v629
    %v770 = vunpack.c.h.b16 %v629
    %v771 = vunpack.c.l.b16 %v630
    %v772 = vunpack.c.h.b16 %v630
    %v773 = vunpack.c.l.b16 %v631
    %v774 = vunpack.c.h.b16 %v631
    %v775 = vunpack.c.l.b16 %v632
    %v776 = vunpack.c.h.b16 %v632
    %v777 = vunpack.c.l.b16 %v633
    %v778 = vunpack.c.h.b16 %v633
    %v779 = vunpack.c.l.b16 %v634
    %v780 = vunpack.c.h.b16 %v634
    %v781 = vunpack.c.l.b16 %v635
    %v782 = vunpack.c.h.b16 %v635
    %v783 = vunpack.c.l.b16 %v636
    %v784 = vunpack.c.h.b16 %v636
    %v785 = vunpack.c.l.b16 %v637
    %v786 = vunpack.c.h.b16 %v637
    %v787 = vunpack.c.l.b16 %v638
    %v788 = vunpack.c.h.b16 %v638
    %v789 = vunpack.c.l.b16 %v639
    %v790 = vunpack.c.h.b16 %v639
    %v791 = vunpack.c.l.b16 %v640
    %v792 = vunpack.c.h.b16 %v640
    %v793 = vunpack.c.l.b16 %v641
    %v794 = vunpack.c.h.b16 %v641
    %v795 = vunpack.c.l.b16 %v642
    %v796 = vunpack.c.h.b16 %v642
    %v797 = vunpack.c.l.b16 %v643
    %v798 = vunpack.c.h.b16 %v643
    %v799 = vunpack.c.l.b16 %v644
    %v800 = vunpack.c.h.b16 %v644
    %v801 = vunpack.c.l.b16 %v645
    %v802 = vunpack.c.h.b16 %v645
    %v803 = vunpack.c.l.b16 %v646
    %v804 = vunpack.c.h.b16 %v646
    %v805 = vunpack.c.l.b16 %v647
    %v806 = vunpack.c.h.b16 %v647
    %v807 = vunpack.c.l.b16 %v648
    %v808 = vunpack.c.h.b16 %v648
    %v809 = vunpack.c.l.b16 %v649
    %v810 = vunpack.c.h.b16 %v649
    %v811 = vunpack.c.l.b16 %v650
    %v812 = vunpack.c.h.b16 %v650
    %v813 = vunpack.c.l.b16 %v651
    %v814 = vunpack.c.h.b16 %v651
    %v815 = vunpack.c.l.b16 %v652
    %v816 = vunpack.c.h.b16 %v652
    %v817 = vunpack.c.l.b16 %v653
    %v818 = vunpack.c.h.b16 %v653
    %v819 = vunpack.c.l.b16 %v654
    %v820 = vunpack.c.h.b16 %v654
    %v821 = vunpack.c.l.b16 %v655
    %v822 = vunpack.c.h.b16 %v655
    %v823 = vunpack.c.l.b16 %v656
    %v824 = vunpack.c.h.b16 %v656
    %v825 = vunpack.c.l.b16 %v657
    %v826 = vunpack.c.h.b16 %v657
    %v827 = vunpack.c.l.b16 %v658
    %v828 = vunpack.c.h.b16 %v658
    %v829 = vunpack.c.l.b16 %v659
    %v830 = vunpack.c.h.b16 %v659
    %v831 = vunpack.c.l.b16 %v660
    %v832 = vunpack.c.h.b16 %v660
    %v833 = vunpack.c.l.b16 %v661
    %v834 = vunpack.c.h.b16 %v661
    %v835 = vunpack.c.l.b16 %v662
    %v836 = vunpack.c.h.b16 %v662
    %v837 = vunpack.c.l.b16 %v663
    %v838 = vunpack.c.h.b16 %v663
    %v839 = vunpack.c.l.b16 %v664
    %v840 = vunpack.c.h.b16 %v664
    %v841 = vunpack.c.l.b16 %v665
    %v842 = vunpack.c.h.b16 %v665
    %v843 = vunpack.c.l.b16 %v666
    %v844 = vunpack.c.h.b16 %v666
    %v845 = vunpack.c.l.b16 %v667
    %v846 = vunpack.c.h.b16 %v667
    %v847 = vunpack.c.l.b16 %v668
    %v848 = vunpack.c.h.b16 %v668
    %v849 = vunpack.c.l.b16 %v669
    %v850 = vunpack.c.h.b16 %v669
    %v851 = vunpack.c.l.b16 %v670
    %v852 = vunpack.c.h.b16 %v670
    %v853 = vunpack.c.l.b16 %v671
    %v854 = vunpack.c.h.b16 %v671
    %v855 = vunpack.c.l.b16 %v672
    %v856 = vunpack.c.h.b16 %v672
    %v857 = vunpack.c.l.b16 %v673
    %v858 = vunpack.c.h.b16 %v673
    %v859 = vunpack.c.l.b16 %v674
    %v860 = vunpack.c.h.b16 %v674
    %v861 = vunpack.c.l.b16 %v675
    %v862 = vunpack.c.h.b16 %v675
    %v863 = vunpack.c.l.b16 %v676
    %v864 = vunpack.c.h.b16 %v676
    %v865 = vunpack.c.l.b16 %v677
    %v866 = vunpack.c.h.b16 %v677
    %v867 = vunpack.c.l.b16 %v678
    %v868 = vunpack.c.h.b16 %v678
    %v869 = vunpack.c.l.b16 %v679
    %v870 = vunpack.c.h.b16 %v679
    %v871 = vunpack.c.l.b16 %v680
    %v872 = vunpack.c.h.b16 %v680
    %v873 = vpack.c.b16 %v749, %v745
    %v874 = vpack.c.b16 %v750, %v746
    %v875 = vpack.c.b16 %v751, %v747
    %v876 = vpack.c.b16 %v752, %v748
    %v877 = vpack.c.b16 %v757, %v753
    %v878 = vpack.c.b16 %v758, %v754
    %v879 = vpack.c.b16 %v759, %v755
    %v880 = vpack.c.b16 %v760, %v756
    %v881 = vpack.c.b16 %v765, %v761
    %v882 = vpack.c.b16 %v766, %v762
    %v883 = vpack.c.b16 %v767, %v763
    %v884 = vpack.c.b16 %v768, %v764
    %v885 = vpack.c.b16 %v773, %v769
    %v886 = vpack.c.b16 %v774, %v770
    %v887 = vpack.c.b16 %v775, %v771
    %v888 = vpack.c.b16 %v776, %v772
    %v889 = vpack.c.b16 %v781, %v777
    %v890 = vpack.c.b16 %v782, %v778
    %v891 = vpack.c.b16 %v783, %v779
    %v892 = vpack.c.b16 %v784, %v780
    %v893 = vpack.c.b16 %v789, %v785
    %v894 = vpack.c.b16 %v790, %v786
    %v895 = vpack.c.b16 %v791, %v787
    %v896 = vpack.c.b16 %v792, %v788
    %v897 = vpack.c.b16 %v797, %v793
    %v898 = vpack.c.b16 %v798, %v794
    %v899 = vpack.c.b16 %v799, %v795
    %v900 = vpack.c.b16 %v800, %v796
    %v901 = vpack.c.b16 %v805, %v801
    %v902 = vpack.c.b16 %v806, %v802
    %v903 = vpack.c.b16 %v807, %v803
    %v904 = vpack.c.b16 %v808, %v804
    %v905 = vpack.c.b16 %v813, %v809
    %v906 = vpack.c.b16 %v814, %v810
    %v907 = vpack.c.b16 %v815, %v811
    %v908 = vpack.c.b16 %v816, %v812
    %v909 = vpack.c.b16 %v821, %v817
    %v910 = vpack.c.b16 %v822, %v818
    %v911 = vpack.c.b16 %v823, %v819
    %v912 = vpack.c.b16 %v824, %v820
    %v913 = vpack.c.b16 %v829, %v825
    %v914 = vpack.c.b16 %v830, %v826
    %v915 = vpack.c.b16 %v831, %v827
    %v916 = vpack.c.b16 %v832, %v828
    %v917 = vpack.c.b16 %v837, %v833
    %v918 = vpack.c.b16 %v838, %v834
    %v919 = vpack.c.b16 %v839, %v835
    %v920 = vpack.c.b16 %v840, %v836
    %v921 = vpack.c.b16 %v845, %v841
    %v922 = vpack.c.b16 %v846, %v842
    %v923 = vpack.c.b16 %v847, %v843
    %v924 = vpack.c.b16 %v848, %v844
    %v925 = vpack.c.b16 %v853, %v849
    %v926 = vpack.c.b16 %v854, %v850
    %v927 = vpack.c.b16 %v855, %v851
    %v928 = vpack.c.b16 %v856, %v852
    %v929 = vpack.c.b16 %v861, %v857
    %v930 = vpack.c.b16 %v862, %v858
    %v931 = vpack.c.b16 %v863, %v859
    %v932 = vpack.c.b16 %v864, %v860
    %v933 = vpack.c.b16 %v869, %v865
    %v934 = vpack.c.b16 %v870, %v866
    %v935 = vpack.c.b16 %v871, %v867
    %v936 = vpack.c.b16 %v872, %v868
    %1001 = vmatprep.subr.bf16.mxu0 %v902
    %1002 = vmatpush1.bf16.msra.mxu0 %v901
    %1003 = vmatprep.subr.bf16.mxu0 %v898
    %1004 = vmatpush1.bf16.msra.mxu0 %v897
    %1005 = vmatprep.subr.bf16.mxu0 %v894
    %1006 = vmatpush1.bf16.msra.mxu0 %v893
    %1007 = vmatprep.subr.bf16.mxu0 %v890
    %1008 = vmatpush1.bf16.msra.mxu0 %v889
    %1009 = vmatprep.subr.bf16.mxu0 %v886
    %1010 = vmatpush1.bf16.msra.mxu0 %v885
    %1011 = vmatprep.subr.bf16.mxu0 %v882
    %1012 = vmatpush1.bf16.msra.mxu0 %v881
    %1013 = vmatprep.subr.bf16.mxu0 %v878
    %1014 = vmatpush1.bf16.msra.mxu0 %v877
    %1015 = vmatprep.subr.bf16.mxu0 %v874
    %1016 = vmatpush1.bf16.msra.mxu0 %v873
    %1017 = vmatprep.subr.bf16.mxu0 %v934
    %1018 = vmatpush2.bf16.msra.mxu0 %v933
    %1019 = vmatprep.subr.bf16.mxu0 %v930
    %1020 = vmatpush2.bf16.msra.mxu0 %v929
    %1021 = vmatprep.subr.bf16.mxu0 %v926
    %1022 = vmatpush2.bf16.msra.mxu0 %v925
    %1023 = vmatprep.subr.bf16.mxu0 %v922
    %1024 = vmatpush2.bf16.msra.mxu0 %v921
    %1025 = vmatprep.subr.bf16.mxu0 %v918
    %1026 = vmatpush2.bf16.msra.mxu0 %v917
    %1027 = vmatprep.subr.bf16.mxu0 %v914
    %1028 = vmatpush2.bf16.msra.mxu0 %v913
    %1029 = vmatprep.subr.bf16.mxu0 %v910
    %1030 = vmatpush2.bf16.msra.mxu0 %v909
    %1031 = vmatprep.subr.bf16.mxu0 %v906
    %1032 = vmatpush2.bf16.msra.mxu0 %v905
    %1033 = vmatprep.mubr.bf16.mxu0 %v616
    %1034 = vmatmul.mubr.bf16.gmra.mxu0 %v615
    %v1035 = vpop.f32.mrf.mxu0
    %v1036 = vadd.f32 %v296, %v1035
    %v1037 = vpop.f32.mrf.mxu0
    %v1038 = vadd.f32 %v300, %v1037
    %v1039 = vpop.f32.mrf.mxu0
    %v1040 = vpop.f32.mrf.mxu0
    %1041 = vdwg.mxu0
    %1042 = vmatprep.subr.bf16.mxu0 %v904
    %1043 = vmatpush1.bf16.msra.mxu0 %v903
    %1044 = vmatprep.subr.bf16.mxu0 %v900
    %1045 = vmatpush1.bf16.msra.mxu0 %v899
    %1046 = vmatprep.subr.bf16.mxu0 %v896
    %1047 = vmatpush1.bf16.msra.mxu0 %v895
    %1048 = vmatprep.subr.bf16.mxu0 %v892
    %1049 = vmatpush1.bf16.msra.mxu0 %v891
    %1050 = vmatprep.subr.bf16.mxu0 %v888
    %1051 = vmatpush1.bf16.msra.mxu0 %v887
    %1052 = vmatprep.subr.bf16.mxu0 %v884
    %1053 = vmatpush1.bf16.msra.mxu0 %v883
    %1054 = vmatprep.subr.bf16.mxu0 %v880
    %1055 = vmatpush1.bf16.msra.mxu0 %v879
    %1056 = vmatprep.subr.bf16.mxu0 %v876
    %1057 = vmatpush1.bf16.msra.mxu0 %v875
    %1058 = vmatprep.subr.bf16.mxu0 %v936
    %1059 = vmatpush2.bf16.msra.mxu0 %v935
    %1060 = vmatprep.subr.bf16.mxu0 %v932
    %1061 = vmatpush2.bf16.msra.mxu0 %v931
    %1062 = vmatprep.subr.bf16.mxu0 %v928
    %1063 = vmatpush2.bf16.msra.mxu0 %v927
    %1064 = vmatprep.subr.bf16.mxu0 %v924
    %1065 = vmatpush2.bf16.msra.mxu0 %v923
    %1066 = vmatprep.subr.bf16.mxu0 %v920
    %1067 = vmatpush2.bf16.msra.mxu0 %v919
    %1068 = vmatprep.subr.bf16.mxu0 %v916
    %1069 = vmatpush2.bf16.msra.mxu0 %v915
    %1070 = vmatprep.subr.bf16.mxu0 %v912
    %1071 = vmatpush2.bf16.msra.mxu0 %v911
    %1072 = vmatprep.subr.bf16.mxu0 %v908
    %1073 = vmatpush2.bf16.msra.mxu0 %v907
    %1074 = vmatprep.mubr.bf16.mxu0 %v616
    %1075 = vmatmul.mubr.bf16.gmra.mxu0 %v615
    %v1076 = vpop.f32.mrf.mxu0
    %v1077 = vadd.f32 %v304, %v1076
    %v1078 = vpop.f32.mrf.mxu0
    %v1079 = vadd.f32 %v308, %v1078
    %v1080 = vpop.f32.mrf.mxu0
    %v1081 = vpop.f32.mrf.mxu0
    %1082 = vdwg.mxu0
    %v1083 = vxor.u32 %v1036, 2147483648
    %v1084 = vmul.f32 %v1083, 1.442695
    %v1085 = vpow.pop %v1084
    %v1086 = vadd.f32 %v1085, 1.0
    %v1087 = vrcp.pop %v1086
    %v1088 = vmul.f32 1.0, %v1087
    %v1089 = vxor.u32 %v1038, 2147483648
    %v1090 = vmul.f32 %v1089, 1.442695
    %v1091 = vpow.pop %v1090
    %v1092 = vadd.f32 %v1091, 1.0
    %v1093 = vrcp.pop %v1092
    %v1094 = vmul.f32 1.0, %v1093
    %v1095 = vtanh.pop %v1077
    %v1096 = vxor.u32 %v1079, 2147483648
    %v1097 = vmul.f32 %v1096, 1.442695
    %v1098 = vpow.pop %v1097
    %v1099 = vadd.f32 %v1098, 1.0
    %v1100 = vrcp.pop %v1099
    %v1101 = vmul.f32 1.0, %v1100
    %v1102 = vmul.f32 %v1094, 0.0
    %v1103 = vmul.f32 %v1088, %v1095
    %v1104 = vadd.f32 %v1102, %v1103
    %v1105 = vtanh.pop %v1104
    %v1106 = vmul.f32 %v1101, %v1105
    %1107 = vmatprep.subr.bf16.mxu0 %v470
    %1108 = vmatpush1.bf16.msra.mxu0 %v469
    %1109 = vmatprep.subr.bf16.mxu0 %v466
    %1110 = vmatpush1.bf16.msra.mxu0 %v465
    %1111 = vmatprep.subr.bf16.mxu0 %v462
    %1112 = vmatpush1.bf16.msra.mxu0 %v461
    %1113 = vmatprep.subr.bf16.mxu0 %v458
    %1114 = vmatpush1.bf16.msra.mxu0 %v457
    %1115 = vmatprep.subr.bf16.mxu0 %v454
    %1116 = vmatpush1.bf16.msra.mxu0 %v453
    %1117 = vmatprep.subr.bf16.mxu0 %v450
    %1118 = vmatpush1.bf16.msra.mxu0 %v449
    %1119 = vmatprep.subr.bf16.mxu0 %v446
    %1120 = vmatpush1.bf16.msra.mxu0 %v445
    %1121 = vmatprep.subr.bf16.mxu0 %v442
    %1122 = vmatpush1.bf16.msra.mxu0 %v441
    %1123 = vmatprep.subr.bf16.mxu0 0
    %1124 = vmatpush2.bf16.msra.mxu0 0
    %1125 = vmatprep.subr.bf16.mxu0 0
    %1126 = vmatpush2.bf16.msra.mxu0 0
    %1127 = vmatprep.subr.bf16.mxu0 0
    %1128 = vmatpush2.bf16.msra.mxu0 0
    %1129 = vmatprep.subr.bf16.mxu0 0
    %1130 = vmatpush2.bf16.msra.mxu0 0
    %1131 = vmatprep.subr.bf16.mxu0 0
    %1132 = vmatpush2.bf16.msra.mxu0 0
    %1133 = vmatprep.subr.bf16.mxu0 0
    %1134 = vmatpush2.bf16.msra.mxu0 0
    %1135 = vmatprep.subr.bf16.mxu0 0
    %1136 = vmatpush2.bf16.msra.mxu0 0
    %1137 = vmatprep.subr.bf16.mxu0 0
    %1138 = vmatpush2.bf16.msra.mxu0 0
    %1139 = vmatprep.mubr.bf16.mxu0 0
    %1140 = vmatmul.mubr.bf16.gmra.mxu0 %v615
    %v1141 = vpop.f32.mrf.mxu0
    %v1142 = vadd.f32 0.0, %v1141
    %v1143 = vpop.f32.mrf.mxu0
    %v1144 = vadd.f32 0.0, %v1143
    %v1145 = vpop.f32.mrf.mxu0
    %v1146 = vpop.f32.mrf.mxu0
    %1147 = vdwg.mxu0
    %1148 = vmatprep.subr.bf16.mxu0 %v472
    %1149 = vmatpush1.bf16.msra.mxu0 %v471
    %1150 = vmatprep.subr.bf16.mxu0 %v468
    %1151 = vmatpush1.bf16.msra.mxu0 %v467
    %1152 = vmatprep.subr.bf16.mxu0 %v464
    %1153 = vmatpush1.bf16.msra.mxu0 %v463
    %1154 = vmatprep.subr.bf16.mxu0 %v460
    %1155 = vmatpush1.bf16.msra.mxu0 %v459
    %1156 = vmatprep.subr.bf16.mxu0 %v456
    %1157 = vmatpush1.bf16.msra.mxu0 %v455
    %1158 = vmatprep.subr.bf16.mxu0 %v452
    %1159 = vmatpush1.bf16.msra.mxu0 %v451
    %1160 = vmatprep.subr.bf16.mxu0 %v448
    %1161 = vmatpush1.bf16.msra.mxu0 %v447
    %1162 = vmatprep.subr.bf16.mxu0 %v444
    %1163 = vmatpush1.bf16.msra.mxu0 %v443
    %1164 = vmatprep.subr.bf16.mxu0 0
    %1165 = vmatpush2.bf16.msra.mxu0 0
    %1166 = vmatprep.subr.bf16.mxu0 0
    %1167 = vmatpush2.bf16.msra.mxu0 0
    %1168 = vmatprep.subr.bf16.mxu0 0
    %1169 = vmatpush2.bf16.msra.mxu0 0
    %1170 = vmatprep.subr.bf16.mxu0 0
    %1171 = vmatpush2.bf16.msra.mxu0 0
    %1172 = vmatprep.subr.bf16.mxu0 0
    %1173 = vmatpush2.bf16.msra.mxu0 0
    %1174 = vmatprep.subr.bf16.mxu0 0
    %1175 = vmatpush2.bf16.msra.mxu0 0
    %1176 = vmatprep.subr.bf16.mxu0 0
    %1177 = vmatpush2.bf16.msra.mxu0 0
    %1178 = vmatprep.subr.bf16.mxu0 0
    %1179 = vmatpush2.bf16.msra.mxu0 0
    %1180 = vmatprep.mubr.bf16.mxu0 0
    %1181 = vmatmul.mubr.bf16.gmra.mxu0 %v615
    %v1182 = vpop.f32.mrf.mxu0
    %v1183 = vadd.f32 0.0, %v1182
    %v1184 = vpop.f32.mrf.mxu0
    %v1185 = vadd.f32 0.0, %v1184
    %v1186 = vpop.f32.mrf.mxu0
    %v1187 = vpop.f32.mrf.mxu0
    %1188 = vdwg.mxu0
    %v1193 = vrot.slane %v1142, 6
    %v1194 = vrot.slane %v1144, 6
    %v1195 = vrot.slane %v1183, 6
    %v1196 = vrot.slane %v1185, 6
    %v1201 = vadd.f32 %v240, %v1193
    %v1202 = vadd.f32 %v242, %v1194
    %v1203 = vadd.f32 %v283, %v1195
    %v1204 = vadd.f32 %v285, %v1196
    %v1205 = vxor.u32 %v1201, 2147483648
    %v1206 = vmul.f32 %v1205, 1.442695
    %v1207 = vpow.pop %v1206
    %v1208 = vadd.f32 %v1207, 1.0
    %v1209 = vrcp.pop %v1208
    %v1210 = vmul.f32 1.0, %v1209
    %v1211 = vxor.u32 %v1202, 2147483648
    %v1212 = vmul.f32 %v1211, 1.442695
    %v1213 = vpow.pop %v1212
    %v1214 = vadd.f32 %v1213, 1.0
    %v1215 = vrcp.pop %v1214
    %v1216 = vmul.f32 1.0, %v1215
    %v1217 = vtanh.pop %v1203
    %v1218 = vxor.u32 %v1204, 2147483648
    %v1219 = vmul.f32 %v1218, 1.442695
    %v1220 = vpow.pop %v1219
    %v1221 = vadd.f32 %v1220, 1.0
    %v1222 = vrcp.pop %v1221
    %v1223 = vmul.f32 1.0, %v1222
    %v1225 = vrot.slane %v612, 6
    %v1227 = vmul.f32 %v1216, %v1225
    %v1228 = vmul.f32 %v1210, %v1217
    %v1229 = vadd.f32 %v1227, %v1228
    %v1230 = vtanh.pop %v1229
    %v1231 = vmul.f32 %v1223, %v1230
    %v1233 = vrot.slane %v1106, 6
    %v1235 = vpack.c.bf16 %v1231, %v1231
    %v1236 = vpack.c.bf16 %v1233, %v1233
    %v1239 = vrot.slane %v1235, 1
    %v1240 = vrot.slane %v1236, 1
    %1243 = vmatprep.subr.bf16.mxu0 %v902
    %1244 = vmatpush1.bf16.msra.mxu0 %v901
    %1245 = vmatprep.subr.bf16.mxu0 %v898
    %1246 = vmatpush1.bf16.msra.mxu0 %v897
    %1247 = vmatprep.subr.bf16.mxu0 %v894
    %1248 = vmatpush1.bf16.msra.mxu0 %v893
    %1249 = vmatprep.subr.bf16.mxu0 %v890
    %1250 = vmatpush1.bf16.msra.mxu0 %v889
    %1251 = vmatprep.subr.bf16.mxu0 %v886
    %1252 = vmatpush1.bf16.msra.mxu0 %v885
    %1253 = vmatprep.subr.bf16.mxu0 %v882
    %1254 = vmatpush1.bf16.msra.mxu0 %v881
    %1255 = vmatprep.subr.bf16.mxu0 %v878
    %1256 = vmatpush1.bf16.msra.mxu0 %v877
    %1257 = vmatprep.subr.bf16.mxu0 %v874
    %1258 = vmatpush1.bf16.msra.mxu0 %v873
    %1259 = vmatprep.subr.bf16.mxu0 %v934
    %1260 = vmatpush2.bf16.msra.mxu0 %v933
    %1261 = vmatprep.subr.bf16.mxu0 %v930
    %1262 = vmatpush2.bf16.msra.mxu0 %v929
    %1263 = vmatprep.subr.bf16.mxu0 %v926
    %1264 = vmatpush2.bf16.msra.mxu0 %v925
    %1265 = vmatprep.subr.bf16.mxu0 %v922
    %1266 = vmatpush2.bf16.msra.mxu0 %v921
    %1267 = vmatprep.subr.bf16.mxu0 %v918
    %1268 = vmatpush2.bf16.msra.mxu0 %v917
    %1269 = vmatprep.subr.bf16.mxu0 %v914
    %1270 = vmatpush2.bf16.msra.mxu0 %v913
    %1271 = vmatprep.subr.bf16.mxu0 %v910
    %1272 = vmatpush2.bf16.msra.mxu0 %v909
    %1273 = vmatprep.subr.bf16.mxu0 %v906
    %1274 = vmatpush2.bf16.msra.mxu0 %v905
    %1275 = vmatprep.mubr.bf16.mxu0 %v1240
    %1276 = vmatmul.mubr.bf16.gmra.mxu0 %v1239
    %v1277 = vpop.f32.mrf.mxu0
    %v1278 = vadd.f32 %v296, %v1277
    %v1279 = vpop.f32.mrf.mxu0
    %v1280 = vadd.f32 %v300, %v1279
    %v1281 = vpop.f32.mrf.mxu0
    %v1282 = vpop.f32.mrf.mxu0
    %1283 = vdwg.mxu0
    %1284 = vmatprep.subr.bf16.mxu0 %v904
    %1285 = vmatpush1.bf16.msra.mxu0 %v903
    %1286 = vmatprep.subr.bf16.mxu0 %v900
    %1287 = vmatpush1.bf16.msra.mxu0 %v899
    %1288 = vmatprep.subr.bf16.mxu0 %v896
    %1289 = vmatpush1.bf16.msra.mxu0 %v895
    %1290 = vmatprep.subr.bf16.mxu0 %v892
    %1291 = vmatpush1.bf16.msra.mxu0 %v891
    %1292 = vmatprep.subr.bf16.mxu0 %v888
    %1293 = vmatpush1.bf16.msra.mxu0 %v887
    %1294 = vmatprep.subr.bf16.mxu0 %v884
    %1295 = vmatpush1.bf16.msra.mxu0 %v883
    %1296 = vmatprep.subr.bf16.mxu0 %v880
    %1297 = vmatpush1.bf16.msra.mxu0 %v879
    %1298 = vmatprep.subr.bf16.mxu0 %v876
    %1299 = vmatpush1.bf16.msra.mxu0 %v875
    %1300 = vmatprep.subr.bf16.mxu0 %v936
    %1301 = vmatpush2.bf16.msra.mxu0 %v935
    %1302 = vmatprep.subr.bf16.mxu0 %v932
    %1303 = vmatpush2.bf16.msra.mxu0 %v931
    %1304 = vmatprep.subr.bf16.mxu0 %v928
    %1305 = vmatpush2.bf16.msra.mxu0 %v927
    %1306 = vmatprep.subr.bf16.mxu0 %v924
    %1307 = vmatpush2.bf16.msra.mxu0 %v923
    %1308 = vmatprep.subr.bf16.mxu0 %v920
    %1309 = vmatpush2.bf16.msra.mxu0 %v919
    %1310 = vmatprep.subr.bf16.mxu0 %v916
    %1311 = vmatpush2.bf16.msra.mxu0 %v915
    %1312 = vmatprep.subr.bf16.mxu0 %v912
    %1313 = vmatpush2.bf16.msra.mxu0 %v911
    %1314 = vmatprep.subr.bf16.mxu0 %v908
    %1315 = vmatpush2.bf16.msra.mxu0 %v907
    %1316 = vmatprep.mubr.bf16.mxu0 %v1240
    %1317 = vmatmul.mubr.bf16.gmra.mxu0 %v1239
    %v1318 = vpop.f32.mrf.mxu0
    %v1319 = vadd.f32 %v304, %v1318
    %v1320 = vpop.f32.mrf.mxu0
    %v1321 = vadd.f32 %v308, %v1320
    %v1322 = vpop.f32.mrf.mxu0
    %v1323 = vpop.f32.mrf.mxu0
    %1324 = vdwg.mxu0
    %v1325 = vxor.u32 %v1278, 2147483648
    %v1326 = vmul.f32 %v1325, 1.442695
    %v1327 = vpow.pop %v1326
    %v1328 = vadd.f32 %v1327, 1.0
    %v1329 = vrcp.pop %v1328
    %v1330 = vmul.f32 1.0, %v1329
    %v1331 = vxor.u32 %v1280, 2147483648
    %v1332 = vmul.f32 %v1331, 1.442695
    %v1333 = vpow.pop %v1332
    %v1334 = vadd.f32 %v1333, 1.0
    %v1335 = vrcp.pop %v1334
    %v1336 = vmul.f32 1.0, %v1335
    %v1337 = vtanh.pop %v1319
    %v1338 = vxor.u32 %v1321, 2147483648
    %v1339 = vmul.f32 %v1338, 1.442695
    %v1340 = vpow.pop %v1339
    %v1341 = vadd.f32 %v1340, 1.0
    %v1342 = vrcp.pop %v1341
    %v1343 = vmul.f32 1.0, %v1342
    %v1344 = vmul.f32 %v1336, %v1104
    %v1345 = vmul.f32 %v1330, %v1337
    %v1346 = vadd.f32 %v1344, %v1345
    %v1347 = vtanh.pop %v1346
    %v1348 = vmul.f32 %v1343, %v1347
    %1349 = vmatprep.subr.bf16.mxu0 %v470
    %1350 = vmatpush1.bf16.msra.mxu0 %v469
    %1351 = vmatprep.subr.bf16.mxu0 %v466
    %1352 = vmatpush1.bf16.msra.mxu0 %v465
    %1353 = vmatprep.subr.bf16.mxu0 %v462
    %1354 = vmatpush1.bf16.msra.mxu0 %v461
    %1355 = vmatprep.subr.bf16.mxu0 %v458
    %1356 = vmatpush1.bf16.msra.mxu0 %v457
    %1357 = vmatprep.subr.bf16.mxu0 %v454
    %1358 = vmatpush1.bf16.msra.mxu0 %v453
    %1359 = vmatprep.subr.bf16.mxu0 %v450
    %1360 = vmatpush1.bf16.msra.mxu0 %v449
    %1361 = vmatprep.subr.bf16.mxu0 %v446
    %1362 = vmatpush1.bf16.msra.mxu0 %v445
    %1363 = vmatprep.subr.bf16.mxu0 %v442
    %1364 = vmatpush1.bf16.msra.mxu0 %v441
    %1365 = vmatprep.subr.bf16.mxu0 0
    %1366 = vmatpush2.bf16.msra.mxu0 0
    %1367 = vmatprep.subr.bf16.mxu0 0
    %1368 = vmatpush2.bf16.msra.mxu0 0
    %1369 = vmatprep.subr.bf16.mxu0 0
    %1370 = vmatpush2.bf16.msra.mxu0 0
    %1371 = vmatprep.subr.bf16.mxu0 0
    %1372 = vmatpush2.bf16.msra.mxu0 0
    %1373 = vmatprep.subr.bf16.mxu0 0
    %1374 = vmatpush2.bf16.msra.mxu0 0
    %1375 = vmatprep.subr.bf16.mxu0 0
    %1376 = vmatpush2.bf16.msra.mxu0 0
    %1377 = vmatprep.subr.bf16.mxu0 0
    %1378 = vmatpush2.bf16.msra.mxu0 0
    %1379 = vmatprep.subr.bf16.mxu0 0
    %1380 = vmatpush2.bf16.msra.mxu0 0
    %1381 = vmatprep.mubr.bf16.mxu0 0
    %1382 = vmatmul.mubr.bf16.gmra.mxu0 %v1239
    %v1383 = vpop.f32.mrf.mxu0
    %v1384 = vadd.f32 0.0, %v1383
    %v1385 = vpop.f32.mrf.mxu0
    %v1386 = vadd.f32 0.0, %v1385
    %v1387 = vpop.f32.mrf.mxu0
    %v1388 = vpop.f32.mrf.mxu0
    %1389 = vdwg.mxu0
    %1390 = vmatprep.subr.bf16.mxu0 %v472
    %1391 = vmatpush1.bf16.msra.mxu0 %v471
    %1392 = vmatprep.subr.bf16.mxu0 %v468
    %1393 = vmatpush1.bf16.msra.mxu0 %v467
    %1394 = vmatprep.subr.bf16.mxu0 %v464
    %1395 = vmatpush1.bf16.msra.mxu0 %v463
    %1396 = vmatprep.subr.bf16.mxu0 %v460
    %1397 = vmatpush1.bf16.msra.mxu0 %v459
    %1398 = vmatprep.subr.bf16.mxu0 %v456
    %1399 = vmatpush1.bf16.msra.mxu0 %v455
    %1400 = vmatprep.subr.bf16.mxu0 %v452
    %1401 = vmatpush1.bf16.msra.mxu0 %v451
    %1402 = vmatprep.subr.bf16.mxu0 %v448
    %1403 = vmatpush1.bf16.msra.mxu0 %v447
    %1404 = vmatprep.subr.bf16.mxu0 %v444
    %1405 = vmatpush1.bf16.msra.mxu0 %v443
    %1406 = vmatprep.subr.bf16.mxu0 0
    %1407 = vmatpush2.bf16.msra.mxu0 0
    %1408 = vmatprep.subr.bf16.mxu0 0
    %1409 = vmatpush2.bf16.msra.mxu0 0
    %1410 = vmatprep.subr.bf16.mxu0 0
    %1411 = vmatpush2.bf16.msra.mxu0 0
    %1412 = vmatprep.subr.bf16.mxu0 0
    %1413 = vmatpush2.bf16.msra.mxu0 0
    %1414 = vmatprep.subr.bf16.mxu0 0
    %1415 = vmatpush2.bf16.msra.mxu0 0
    %1416 = vmatprep.subr.bf16.mxu0 0
    %1417 = vmatpush2.bf16.msra.mxu0 0
    %1418 = vmatprep.subr.bf16.mxu0 0
    %1419 = vmatpush2.bf16.msra.mxu0 0
    %1420 = vmatprep.subr.bf16.mxu0 0
    %1421 = vmatpush2.bf16.msra.mxu0 0
    %1422 = vmatprep.mubr.bf16.mxu0 0
    %1423 = vmatmul.mubr.bf16.gmra.mxu0 %v1239
    %v1424 = vpop.f32.mrf.mxu0
    %v1425 = vadd.f32 0.0, %v1424
    %v1426 = vpop.f32.mrf.mxu0
    %v1427 = vadd.f32 0.0, %v1426
    %v1428 = vpop.f32.mrf.mxu0
    %v1429 = vpop.f32.mrf.mxu0
    %1430 = vdwg.mxu0
    %v1435 = vrot.slane %v1384, 4
    %v1436 = vrot.slane %v1386, 4
    %v1437 = vrot.slane %v1425, 4
    %v1438 = vrot.slane %v1427, 4
    %v1443 = vadd.f32 %v240, %v1435
    %v1444 = vadd.f32 %v242, %v1436
    %v1445 = vadd.f32 %v283, %v1437
    %v1446 = vadd.f32 %v285, %v1438
    %v1447 = vxor.u32 %v1443, 2147483648
    %v1448 = vmul.f32 %v1447, 1.442695
    %v1449 = vpow.pop %v1448
    %v1450 = vadd.f32 %v1449, 1.0
    %v1451 = vrcp.pop %v1450
    %v1452 = vmul.f32 1.0, %v1451
    %v1453 = vxor.u32 %v1444, 2147483648
    %v1454 = vmul.f32 %v1453, 1.442695
    %v1455 = vpow.pop %v1454
    %v1456 = vadd.f32 %v1455, 1.0
    %v1457 = vrcp.pop %v1456
    %v1458 = vmul.f32 1.0, %v1457
    %v1459 = vtanh.pop %v1445
    %v1460 = vxor.u32 %v1446, 2147483648
    %v1461 = vmul.f32 %v1460, 1.442695
    %v1462 = vpow.pop %v1461
    %v1463 = vadd.f32 %v1462, 1.0
    %v1464 = vrcp.pop %v1463
    %v1465 = vmul.f32 1.0, %v1464
    %v1467 = vrot.slane %v1229, 6
    %v1469 = vmul.f32 %v1458, %v1467
    %v1470 = vmul.f32 %v1452, %v1459
    %v1471 = vadd.f32 %v1469, %v1470
    %v1472 = vtanh.pop %v1471
    %v1473 = vmul.f32 %v1465, %v1472
    %v1475 = vrot.slane %v1348, 4
    %v1477 = vpack.c.bf16 %v1473, %v1473
    %v1478 = vpack.c.bf16 %v1475, %v1475
    %v1481 = vrot.slane %v1477, 2
    %v1482 = vrot.slane %v1478, 2
    %1485 = vmatprep.subr.bf16.mxu0 %v902
    %1486 = vmatpush1.bf16.msra.mxu0 %v901
    %1487 = vmatprep.subr.bf16.mxu0 %v898
    %1488 = vmatpush1.bf16.msra.mxu0 %v897
    %1489 = vmatprep.subr.bf16.mxu0 %v894
    %1490 = vmatpush1.bf16.msra.mxu0 %v893
    %1491 = vmatprep.subr.bf16.mxu0 %v890
    %1492 = vmatpush1.bf16.msra.mxu0 %v889
    %1493 = vmatprep.subr.bf16.mxu0 %v886
    %1494 = vmatpush1.bf16.msra.mxu0 %v885
    %1495 = vmatprep.subr.bf16.mxu0 %v882
    %1496 = vmatpush1.bf16.msra.mxu0 %v881
    %1497 = vmatprep.subr.bf16.mxu0 %v878
    %1498 = vmatpush1.bf16.msra.mxu0 %v877
    %1499 = vmatprep.subr.bf16.mxu0 %v874
    %1500 = vmatpush1.bf16.msra.mxu0 %v873
    %1501 = vmatprep.subr.bf16.mxu0 %v934
    %1502 = vmatpush2.bf16.msra.mxu0 %v933
    %1503 = vmatprep.subr.bf16.mxu0 %v930
    %1504 = vmatpush2.bf16.msra.mxu0 %v929
    %1505 = vmatprep.subr.bf16.mxu0 %v926
    %1506 = vmatpush2.bf16.msra.mxu0 %v925
    %1507 = vmatprep.subr.bf16.mxu0 %v922
    %1508 = vmatpush2.bf16.msra.mxu0 %v921
    %1509 = vmatprep.subr.bf16.mxu0 %v918
    %1510 = vmatpush2.bf16.msra.mxu0 %v917
    %1511 = vmatprep.subr.bf16.mxu0 %v914
    %1512 = vmatpush2.bf16.msra.mxu0 %v913
    %1513 = vmatprep.subr.bf16.mxu0 %v910
    %1514 = vmatpush2.bf16.msra.mxu0 %v909
    %1515 = vmatprep.subr.bf16.mxu0 %v906
    %1516 = vmatpush2.bf16.msra.mxu0 %v905
    %1517 = vmatprep.mubr.bf16.mxu0 %v1482
    %1518 = vmatmul.mubr.bf16.gmra.mxu0 %v1481
    %v1519 = vpop.f32.mrf.mxu0
    %v1520 = vadd.f32 %v296, %v1519
    %v1521 = vpop.f32.mrf.mxu0
    %v1522 = vadd.f32 %v300, %v1521
    %v1523 = vpop.f32.mrf.mxu0
    %v1524 = vpop.f32.mrf.mxu0
    %1525 = vdwg.mxu0
    %1526 = vmatprep.subr.bf16.mxu0 %v904
    %1527 = vmatpush1.bf16.msra.mxu0 %v903
    %1528 = vmatprep.subr.bf16.mxu0 %v900
    %1529 = vmatpush1.bf16.msra.mxu0 %v899
    %1530 = vmatprep.subr.bf16.mxu0 %v896
    %1531 = vmatpush1.bf16.msra.mxu0 %v895
    %1532 = vmatprep.subr.bf16.mxu0 %v892
    %1533 = vmatpush1.bf16.msra.mxu0 %v891
    %1534 = vmatprep.subr.bf16.mxu0 %v888
    %1535 = vmatpush1.bf16.msra.mxu0 %v887
    %1536 = vmatprep.subr.bf16.mxu0 %v884
    %1537 = vmatpush1.bf16.msra.mxu0 %v883
    %1538 = vmatprep.subr.bf16.mxu0 %v880
    %1539 = vmatpush1.bf16.msra.mxu0 %v879
    %1540 = vmatprep.subr.bf16.mxu0 %v876
    %1541 = vmatpush1.bf16.msra.mxu0 %v875
    %1542 = vmatprep.subr.bf16.mxu0 %v936
    %1543 = vmatpush2.bf16.msra.mxu0 %v935
    %1544 = vmatprep.subr.bf16.mxu0 %v932
    %1545 = vmatpush2.bf16.msra.mxu0 %v931
    %1546 = vmatprep.subr.bf16.mxu0 %v928
    %1547 = vmatpush2.bf16.msra.mxu0 %v927
    %1548 = vmatprep.subr.bf16.mxu0 %v924
    %1549 = vmatpush2.bf16.msra.mxu0 %v923
    %1550 = vmatprep.subr.bf16.mxu0 %v920
    %1551 = vmatpush2.bf16.msra.mxu0 %v919
    %1552 = vmatprep.subr.bf16.mxu0 %v916
    %1553 = vmatpush2.bf16.msra.mxu0 %v915
    %1554 = vmatprep.subr.bf16.mxu0 %v912
    %1555 = vmatpush2.bf16.msra.mxu0 %v911
    %1556 = vmatprep.subr.bf16.mxu0 %v908
    %1557 = vmatpush2.bf16.msra.mxu0 %v907
    %1558 = vmatprep.mubr.bf16.mxu0 %v1482
    %1559 = vmatmul.mubr.bf16.gmra.mxu0 %v1481
    %v1560 = vpop.f32.mrf.mxu0
    %v1561 = vadd.f32 %v304, %v1560
    %v1562 = vpop.f32.mrf.mxu0
    %v1563 = vadd.f32 %v308, %v1562
    %v1564 = vpop.f32.mrf.mxu0
    %v1565 = vpop.f32.mrf.mxu0
    %1566 = vdwg.mxu0
    %v1567 = vxor.u32 %v1520, 2147483648
    %v1568 = vmul.f32 %v1567, 1.442695
    %v1569 = vpow.pop %v1568
    %v1570 = vadd.f32 %v1569, 1.0
    %v1571 = vrcp.pop %v1570
    %v1572 = vmul.f32 1.0, %v1571
    %v1573 = vxor.u32 %v1522, 2147483648
    %v1574 = vmul.f32 %v1573, 1.442695
    %v1575 = vpow.pop %v1574
    %v1576 = vadd.f32 %v1575, 1.0
    %v1577 = vrcp.pop %v1576
    %v1578 = vmul.f32 1.0, %v1577
    %v1579 = vtanh.pop %v1561
    %v1580 = vxor.u32 %v1563, 2147483648
    %v1581 = vmul.f32 %v1580, 1.442695
    %v1582 = vpow.pop %v1581
    %v1583 = vadd.f32 %v1582, 1.0
    %v1584 = vrcp.pop %v1583
    %v1585 = vmul.f32 1.0, %v1584
    %v1586 = vmul.f32 %v1578, %v1346
    %v1587 = vmul.f32 %v1572, %v1579
    %v1588 = vadd.f32 %v1586, %v1587
    %v1589 = vtanh.pop %v1588
    %v1590 = vmul.f32 %v1585, %v1589
    %1591 = vmatprep.subr.bf16.mxu0 %v470
    %1592 = vmatpush1.bf16.msra.mxu0 %v469
    %1593 = vmatprep.subr.bf16.mxu0 %v466
    %1594 = vmatpush1.bf16.msra.mxu0 %v465
    %1595 = vmatprep.subr.bf16.mxu0 %v462
    %1596 = vmatpush1.bf16.msra.mxu0 %v461
    %1597 = vmatprep.subr.bf16.mxu0 %v458
    %1598 = vmatpush1.bf16.msra.mxu0 %v457
    %1599 = vmatprep.subr.bf16.mxu0 %v454
    %1600 = vmatpush1.bf16.msra.mxu0 %v453
    %1601 = vmatprep.subr.bf16.mxu0 %v450
    %1602 = vmatpush1.bf16.msra.mxu0 %v449
    %1603 = vmatprep.subr.bf16.mxu0 %v446
    %1604 = vmatpush1.bf16.msra.mxu0 %v445
    %1605 = vmatprep.subr.bf16.mxu0 %v442
    %1606 = vmatpush1.bf16.msra.mxu0 %v441
    %1607 = vmatprep.subr.bf16.mxu0 0
    %1608 = vmatpush2.bf16.msra.mxu0 0
    %1609 = vmatprep.subr.bf16.mxu0 0
    %1610 = vmatpush2.bf16.msra.mxu0 0
    %1611 = vmatprep.subr.bf16.mxu0 0
    %1612 = vmatpush2.bf16.msra.mxu0 0
    %1613 = vmatprep.subr.bf16.mxu0 0
    %1614 = vmatpush2.bf16.msra.mxu0 0
    %1615 = vmatprep.subr.bf16.mxu0 0
    %1616 = vmatpush2.bf16.msra.mxu0 0
    %1617 = vmatprep.subr.bf16.mxu0 0
    %1618 = vmatpush2.bf16.msra.mxu0 0
    %1619 = vmatprep.subr.bf16.mxu0 0
    %1620 = vmatpush2.bf16.msra.mxu0 0
    %1621 = vmatprep.subr.bf16.mxu0 0
    %1622 = vmatpush2.bf16.msra.mxu0 0
    %1623 = vmatprep.mubr.bf16.mxu0 0
    %1624 = vmatmul.mubr.bf16.gmra.mxu0 %v1481
    %v1625 = vpop.f32.mrf.mxu0
    %v1626 = vadd.f32 0.0, %v1625
    %v1627 = vpop.f32.mrf.mxu0
    %v1628 = vadd.f32 0.0, %v1627
    %v1629 = vpop.f32.mrf.mxu0
    %v1630 = vpop.f32.mrf.mxu0
    %1631 = vdwg.mxu0
    %1632 = vmatprep.subr.bf16.mxu0 %v472
    %1633 = vmatpush1.bf16.msra.mxu0 %v471
    %1634 = vmatprep.subr.bf16.mxu0 %v468
    %1635 = vmatpush1.bf16.msra.mxu0 %v467
    %1636 = vmatprep.subr.bf16.mxu0 %v464
    %1637 = vmatpush1.bf16.msra.mxu0 %v463
    %1638 = vmatprep.subr.bf16.mxu0 %v460
    %1639 = vmatpush1.bf16.msra.mxu0 %v459
    %1640 = vmatprep.subr.bf16.mxu0 %v456
    %1641 = vmatpush1.bf16.msra.mxu0 %v455
    %1642 = vmatprep.subr.bf16.mxu0 %v452
    %1643 = vmatpush1.bf16.msra.mxu0 %v451
    %1644 = vmatprep.subr.bf16.mxu0 %v448
    %1645 = vmatpush1.bf16.msra.mxu0 %v447
    %1646 = vmatprep.subr.bf16.mxu0 %v444
    %1647 = vmatpush1.bf16.msra.mxu0 %v443
    %1648 = vmatprep.subr.bf16.mxu0 0
    %1649 = vmatpush2.bf16.msra.mxu0 0
    %1650 = vmatprep.subr.bf16.mxu0 0
    %1651 = vmatpush2.bf16.msra.mxu0 0
    %1652 = vmatprep.subr.bf16.mxu0 0
    %1653 = vmatpush2.bf16.msra.mxu0 0
    %1654 = vmatprep.subr.bf16.mxu0 0
    %1655 = vmatpush2.bf16.msra.mxu0 0
    %1656 = vmatprep.subr.bf16.mxu0 0
    %1657 = vmatpush2.bf16.msra.mxu0 0
    %1658 = vmatprep.subr.bf16.mxu0 0
    %1659 = vmatpush2.bf16.msra.mxu0 0
    %1660 = vmatprep.subr.bf16.mxu0 0
    %1661 = vmatpush2.bf16.msra.mxu0 0
    %1662 = vmatprep.subr.bf16.mxu0 0
    %1663 = vmatpush2.bf16.msra.mxu0 0
    %1664 = vmatprep.mubr.bf16.mxu0 0
    %1665 = vmatmul.mubr.bf16.gmra.mxu0 %v1481
    %v1666 = vpop.f32.mrf.mxu0
    %v1667 = vadd.f32 0.0, %v1666
    %v1668 = vpop.f32.mrf.mxu0
    %v1669 = vadd.f32 0.0, %v1668
    %v1670 = vpop.f32.mrf.mxu0
    %v1671 = vpop.f32.mrf.mxu0
    %1672 = vdwg.mxu0
    %v1677 = vrot.slane %v1626, 2
    %v1678 = vrot.slane %v1628, 2
    %v1679 = vrot.slane %v1667, 2
    %v1680 = vrot.slane %v1669, 2
    %v1685 = vadd.f32 %v240, %v1677
    %v1686 = vadd.f32 %v242, %v1678
    %v1687 = vadd.f32 %v283, %v1679
    %v1688 = vadd.f32 %v285, %v1680
    %v1689 = vxor.u32 %v1685, 2147483648
    %v1690 = vmul.f32 %v1689, 1.442695
    %v1691 = vpow.pop %v1690
    %v1692 = vadd.f32 %v1691, 1.0
    %v1693 = vrcp.pop %v1692
    %v1694 = vmul.f32 1.0, %v1693
    %v1695 = vxor.u32 %v1686, 2147483648
    %v1696 = vmul.f32 %v1695, 1.442695
    %v1697 = vpow.pop %v1696
    %v1698 = vadd.f32 %v1697, 1.0
    %v1699 = vrcp.pop %v1698
    %v1700 = vmul.f32 1.0, %v1699
    %v1701 = vtanh.pop %v1687
    %v1702 = vxor.u32 %v1688, 2147483648
    %v1703 = vmul.f32 %v1702, 1.442695
    %v1704 = vpow.pop %v1703
    %v1705 = vadd.f32 %v1704, 1.0
    %v1706 = vrcp.pop %v1705
    %v1707 = vmul.f32 1.0, %v1706
    %v1709 = vrot.slane %v1471, 6
    %v1711 = vmul.f32 %v1700, %v1709
    %v1712 = vmul.f32 %v1694, %v1701
    %v1713 = vadd.f32 %v1711, %v1712
    %v1714 = vtanh.pop %v1713
    %v1715 = vmul.f32 %v1707, %v1714
    %v1717 = vrot.slane %v1590, 2
    %v1719 = vpack.c.bf16 %v1715, %v1715
    %v1720 = vpack.c.bf16 %v1717, %v1717
    %v1723 = vrot.slane %v1719, 3
    %v1724 = vrot.slane %v1720, 3
    %1727 = vmatprep.subr.bf16.mxu0 %v902
    %1728 = vmatpush1.bf16.msra.mxu0 %v901
    %1729 = vmatprep.subr.bf16.mxu0 %v898
    %1730 = vmatpush1.bf16.msra.mxu0 %v897
    %1731 = vmatprep.subr.bf16.mxu0 %v894
    %1732 = vmatpush1.bf16.msra.mxu0 %v893
    %1733 = vmatprep.subr.bf16.mxu0 %v890
    %1734 = vmatpush1.bf16.msra.mxu0 %v889
    %1735 = vmatprep.subr.bf16.mxu0 %v886
    %1736 = vmatpush1.bf16.msra.mxu0 %v885
    %1737 = vmatprep.subr.bf16.mxu0 %v882
    %1738 = vmatpush1.bf16.msra.mxu0 %v881
    %1739 = vmatprep.subr.bf16.mxu0 %v878
    %1740 = vmatpush1.bf16.msra.mxu0 %v877
    %1741 = vmatprep.subr.bf16.mxu0 %v874
    %1742 = vmatpush1.bf16.msra.mxu0 %v873
    %1743 = vmatprep.subr.bf16.mxu0 %v934
    %1744 = vmatpush2.bf16.msra.mxu0 %v933
    %1745 = vmatprep.subr.bf16.mxu0 %v930
    %1746 = vmatpush2.bf16.msra.mxu0 %v929
    %1747 = vmatprep.subr.bf16.mxu0 %v926
    %1748 = vmatpush2.bf16.msra.mxu0 %v925
    %1749 = vmatprep.subr.bf16.mxu0 %v922
    %1750 = vmatpush2.bf16.msra.mxu0 %v921
    %1751 = vmatprep.subr.bf16.mxu0 %v918
    %1752 = vmatpush2.bf16.msra.mxu0 %v917
    %1753 = vmatprep.subr.bf16.mxu0 %v914
    %1754 = vmatpush2.bf16.msra.mxu0 %v913
    %1755 = vmatprep.subr.bf16.mxu0 %v910
    %1756 = vmatpush2.bf16.msra.mxu0 %v909
    %1757 = vmatprep.subr.bf16.mxu0 %v906
    %1758 = vmatpush2.bf16.msra.mxu0 %v905
    %1759 = vmatprep.mubr.bf16.mxu0 %v1724
    %1760 = vmatmul.mubr.bf16.gmra.mxu0 %v1723
    %v1761 = vpop.f32.mrf.mxu0
    %v1762 = vadd.f32 %v296, %v1761
    %v1763 = vpop.f32.mrf.mxu0
    %v1764 = vadd.f32 %v300, %v1763
    %v1765 = vpop.f32.mrf.mxu0
    %v1766 = vpop.f32.mrf.mxu0
    %1767 = vdwg.mxu0
    %1768 = vmatprep.subr.bf16.mxu0 %v904
    %1769 = vmatpush1.bf16.msra.mxu0 %v903
    %1770 = vmatprep.subr.bf16.mxu0 %v900
    %1771 = vmatpush1.bf16.msra.mxu0 %v899
    %1772 = vmatprep.subr.bf16.mxu0 %v896
    %1773 = vmatpush1.bf16.msra.mxu0 %v895
    %1774 = vmatprep.subr.bf16.mxu0 %v892
    %1775 = vmatpush1.bf16.msra.mxu0 %v891
    %1776 = vmatprep.subr.bf16.mxu0 %v888
    %1777 = vmatpush1.bf16.msra.mxu0 %v887
    %1778 = vmatprep.subr.bf16.mxu0 %v884
    %1779 = vmatpush1.bf16.msra.mxu0 %v883
    %1780 = vmatprep.subr.bf16.mxu0 %v880
    %1781 = vmatpush1.bf16.msra.mxu0 %v879
    %1782 = vmatprep.subr.bf16.mxu0 %v876
    %1783 = vmatpush1.bf16.msra.mxu0 %v875
    %1784 = vmatprep.subr.bf16.mxu0 %v936
    %1785 = vmatpush2.bf16.msra.mxu0 %v935
    %1786 = vmatprep.subr.bf16.mxu0 %v932
    %1787 = vmatpush2.bf16.msra.mxu0 %v931
    %1788 = vmatprep.subr.bf16.mxu0 %v928
    %1789 = vmatpush2.bf16.msra.mxu0 %v927
    %1790 = vmatprep.subr.bf16.mxu0 %v924
    %1791 = vmatpush2.bf16.msra.mxu0 %v923
    %1792 = vmatprep.subr.bf16.mxu0 %v920
    %1793 = vmatpush2.bf16.msra.mxu0 %v919
    %1794 = vmatprep.subr.bf16.mxu0 %v916
    %1795 = vmatpush2.bf16.msra.mxu0 %v915
    %1796 = vmatprep.subr.bf16.mxu0 %v912
    %1797 = vmatpush2.bf16.msra.mxu0 %v911
    %1798 = vmatprep.subr.bf16.mxu0 %v908
    %1799 = vmatpush2.bf16.msra.mxu0 %v907
    %1800 = vmatprep.mubr.bf16.mxu0 %v1724
    %1801 = vmatmul.mubr.bf16.gmra.mxu0 %v1723
    %v1802 = vpop.f32.mrf.mxu0
    %v1803 = vadd.f32 %v304, %v1802
    %v1804 = vpop.f32.mrf.mxu0
    %v1805 = vadd.f32 %v308, %v1804
    %v1806 = vpop.f32.mrf.mxu0
    %v1807 = vpop.f32.mrf.mxu0
    %1808 = vdwg.mxu0
    %v1809 = vxor.u32 %v1762, 2147483648
    %v1810 = vmul.f32 %v1809, 1.442695
    %v1811 = vpow.pop %v1810
    %v1812 = vadd.f32 %v1811, 1.0
    %v1813 = vrcp.pop %v1812
    %v1814 = vmul.f32 1.0, %v1813
    %v1815 = vxor.u32 %v1764, 2147483648
    %v1816 = vmul.f32 %v1815, 1.442695
    %v1817 = vpow.pop %v1816
    %v1818 = vadd.f32 %v1817, 1.0
    %v1819 = vrcp.pop %v1818
    %v1820 = vmul.f32 1.0, %v1819
    %v1821 = vtanh.pop %v1803
    %v1822 = vxor.u32 %v1805, 2147483648
    %v1823 = vmul.f32 %v1822, 1.442695
    %v1824 = vpow.pop %v1823
    %v1825 = vadd.f32 %v1824, 1.0
    %v1826 = vrcp.pop %v1825
    %v1827 = vmul.f32 1.0, %v1826
    %v1828 = vmul.f32 %v1820, %v1588
    %v1829 = vmul.f32 %v1814, %v1821
    %v1830 = vadd.f32 %v1828, %v1829
    %v1831 = vtanh.pop %v1830
    %v1832 = vmul.f32 %v1827, %v1831
    %1833 = vmatprep.subr.bf16.mxu0 %v470
    %1834 = vmatpush1.bf16.msra.mxu0 %v469
    %1835 = vmatprep.subr.bf16.mxu0 %v466
    %1836 = vmatpush1.bf16.msra.mxu0 %v465
    %1837 = vmatprep.subr.bf16.mxu0 %v462
    %1838 = vmatpush1.bf16.msra.mxu0 %v461
    %1839 = vmatprep.subr.bf16.mxu0 %v458
    %1840 = vmatpush1.bf16.msra.mxu0 %v457
    %1841 = vmatprep.subr.bf16.mxu0 %v454
    %1842 = vmatpush1.bf16.msra.mxu0 %v453
    %1843 = vmatprep.subr.bf16.mxu0 %v450
    %1844 = vmatpush1.bf16.msra.mxu0 %v449
    %1845 = vmatprep.subr.bf16.mxu0 %v446
    %1846 = vmatpush1.bf16.msra.mxu0 %v445
    %1847 = vmatprep.subr.bf16.mxu0 %v442
    %1848 = vmatpush1.bf16.msra.mxu0 %v441
    %1849 = vmatprep.subr.bf16.mxu0 0
    %1850 = vmatpush2.bf16.msra.mxu0 0
    %1851 = vmatprep.subr.bf16.mxu0 0
    %1852 = vmatpush2.bf16.msra.mxu0 0
    %1853 = vmatprep.subr.bf16.mxu0 0
    %1854 = vmatpush2.bf16.msra.mxu0 0
    %1855 = vmatprep.subr.bf16.mxu0 0
    %1856 = vmatpush2.bf16.msra.mxu0 0
    %1857 = vmatprep.subr.bf16.mxu0 0
    %1858 = vmatpush2.bf16.msra.mxu0 0
    %1859 = vmatprep.subr.bf16.mxu0 0
    %1860 = vmatpush2.bf16.msra.mxu0 0
    %1861 = vmatprep.subr.bf16.mxu0 0
    %1862 = vmatpush2.bf16.msra.mxu0 0
    %1863 = vmatprep.subr.bf16.mxu0 0
    %1864 = vmatpush2.bf16.msra.mxu0 0
    %1865 = vmatprep.mubr.bf16.mxu0 0
    %1866 = vmatmul.mubr.bf16.gmra.mxu0 %v1723
    %v1867 = vpop.f32.mrf.mxu0
    %v1868 = vadd.f32 0.0, %v1867
    %v1869 = vpop.f32.mrf.mxu0
    %v1870 = vadd.f32 0.0, %v1869
    %v1871 = vpop.f32.mrf.mxu0
    %v1872 = vpop.f32.mrf.mxu0
    %1873 = vdwg.mxu0
    %1874 = vmatprep.subr.bf16.mxu0 %v472
    %1875 = vmatpush1.bf16.msra.mxu0 %v471
    %1876 = vmatprep.subr.bf16.mxu0 %v468
    %1877 = vmatpush1.bf16.msra.mxu0 %v467
    %1878 = vmatprep.subr.bf16.mxu0 %v464
    %1879 = vmatpush1.bf16.msra.mxu0 %v463
    %1880 = vmatprep.subr.bf16.mxu0 %v460
    %1881 = vmatpush1.bf16.msra.mxu0 %v459
    %1882 = vmatprep.subr.bf16.mxu0 %v456
    %1883 = vmatpush1.bf16.msra.mxu0 %v455
    %1884 = vmatprep.subr.bf16.mxu0 %v452
    %1885 = vmatpush1.bf16.msra.mxu0 %v451
    %1886 = vmatprep.subr.bf16.mxu0 %v448
    %1887 = vmatpush1.bf16.msra.mxu0 %v447
    %1888 = vmatprep.subr.bf16.mxu0 %v444
    %1889 = vmatpush1.bf16.msra.mxu0 %v443
    %1890 = vmatprep.subr.bf16.mxu0 0
    %1891 = vmatpush2.bf16.msra.mxu0 0
    %1892 = vmatprep.subr.bf16.mxu0 0
    %1893 = vmatpush2.bf16.msra.mxu0 0
    %1894 = vmatprep.subr.bf16.mxu0 0
    %1895 = vmatpush2.bf16.msra.mxu0 0
    %1896 = vmatprep.subr.bf16.mxu0 0
    %1897 = vmatpush2.bf16.msra.mxu0 0
    %1898 = vmatprep.subr.bf16.mxu0 0
    %1899 = vmatpush2.bf16.msra.mxu0 0
    %1900 = vmatprep.subr.bf16.mxu0 0
    %1901 = vmatpush2.bf16.msra.mxu0 0
    %1902 = vmatprep.subr.bf16.mxu0 0
    %1903 = vmatpush2.bf16.msra.mxu0 0
    %1904 = vmatprep.subr.bf16.mxu0 0
    %1905 = vmatpush2.bf16.msra.mxu0 0
    %1906 = vmatprep.mubr.bf16.mxu0 0
    %1907 = vmatmul.mubr.bf16.gmra.mxu0 %v1723
    %v1908 = vpop.f32.mrf.mxu0
    %v1909 = vadd.f32 0.0, %v1908
    %v1910 = vpop.f32.mrf.mxu0
    %v1911 = vadd.f32 0.0, %v1910
    %v1912 = vpop.f32.mrf.mxu0
    %v1913 = vpop.f32.mrf.mxu0
    %1914 = vdwg.mxu0
    %v1915 = vadd.f32 %v244, %v1868
    %v1916 = vadd.f32 %v246, %v1870
    %v1917 = vadd.f32 %v287, %v1909
    %v1918 = vadd.f32 %v289, %v1911
    %v1919 = vxor.u32 %v1915, 2147483648
    %v1920 = vmul.f32 %v1919, 1.442695
    %v1921 = vpow.pop %v1920
    %v1922 = vadd.f32 %v1921, 1.0
    %v1923 = vrcp.pop %v1922
    %v1924 = vmul.f32 1.0, %v1923
    %v1925 = vxor.u32 %v1916, 2147483648
    %v1926 = vmul.f32 %v1925, 1.442695
    %v1927 = vpow.pop %v1926
    %v1928 = vadd.f32 %v1927, 1.0
    %v1929 = vrcp.pop %v1928
    %v1930 = vmul.f32 1.0, %v1929
    %v1931 = vtanh.pop %v1917
    %v1932 = vxor.u32 %v1918, 2147483648
    %v1933 = vmul.f32 %v1932, 1.442695
    %v1934 = vpow.pop %v1933
    %v1935 = vadd.f32 %v1934, 1.0
    %v1936 = vrcp.pop %v1935
    %v1937 = vmul.f32 1.0, %v1936
    %v1939 = vrot.slane %v1713, 6
    %v1941 = vmul.f32 %v1930, %v1939
    %v1942 = vmul.f32 %v1924, %v1931
    %v1943 = vadd.f32 %v1941, %v1942
    %v1944 = vtanh.pop %v1943
    %v1945 = vmul.f32 %v1937, %v1944
    %v1946 = vpack.c.bf16 %v1945, %v1945
    %v1947 = vpack.c.bf16 %v1832, %v1832
    %1948 = vmatprep.subr.bf16.mxu0 %v902
    %1949 = vmatpush1.bf16.msra.mxu0 %v901
    %1950 = vmatprep.subr.bf16.mxu0 %v898
    %1951 = vmatpush1.bf16.msra.mxu0 %v897
    %1952 = vmatprep.subr.bf16.mxu0 %v894
    %1953 = vmatpush1.bf16.msra.mxu0 %v893
    %1954 = vmatprep.subr.bf16.mxu0 %v890
    %1955 = vmatpush1.bf16.msra.mxu0 %v889
    %1956 = vmatprep.subr.bf16.mxu0 %v886
    %1957 = vmatpush1.bf16.msra.mxu0 %v885
    %1958 = vmatprep.subr.bf16.mxu0 %v882
    %1959 = vmatpush1.bf16.msra.mxu0 %v881
    %1960 = vmatprep.subr.bf16.mxu0 %v878
    %1961 = vmatpush1.bf16.msra.mxu0 %v877
    %1962 = vmatprep.subr.bf16.mxu0 %v874
    %1963 = vmatpush1.bf16.msra.mxu0 %v873
    %1964 = vmatprep.subr.bf16.mxu0 %v934
    %1965 = vmatpush2.bf16.msra.mxu0 %v933
    %1966 = vmatprep.subr.bf16.mxu0 %v930
    %1967 = vmatpush2.bf16.msra.mxu0 %v929
    %1968 = vmatprep.subr.bf16.mxu0 %v926
    %1969 = vmatpush2.bf16.msra.mxu0 %v925
    %1970 = vmatprep.subr.bf16.mxu0 %v922
    %1971 = vmatpush2.bf16.msra.mxu0 %v921
    %1972 = vmatprep.subr.bf16.mxu0 %v918
    %1973 = vmatpush2.bf16.msra.mxu0 %v917
    %1974 = vmatprep.subr.bf16.mxu0 %v914
    %1975 = vmatpush2.bf16.msra.mxu0 %v913
    %1976 = vmatprep.subr.bf16.mxu0 %v910
    %1977 = vmatpush2.bf16.msra.mxu0 %v909
    %1978 = vmatprep.subr.bf16.mxu0 %v906
    %1979 = vmatpush2.bf16.msra.mxu0 %v905
    %1980 = vmatprep.mubr.bf16.mxu0 %v1947
    %1981 = vmatmul.mubr.bf16.gmra.mxu0 %v1946
    %v1982 = vpop.f32.mrf.mxu0
    %v1983 = vadd.f32 %v296, %v1982
    %v1984 = vpop.f32.mrf.mxu0
    %v1985 = vadd.f32 %v300, %v1984
    %v1986 = vpop.f32.mrf.mxu0
    %v1987 = vpop.f32.mrf.mxu0
    %1988 = vdwg.mxu0
    %1989 = vmatprep.subr.bf16.mxu0 %v904
    %1990 = vmatpush1.bf16.msra.mxu0 %v903
    %1991 = vmatprep.subr.bf16.mxu0 %v900
    %1992 = vmatpush1.bf16.msra.mxu0 %v899
    %1993 = vmatprep.subr.bf16.mxu0 %v896
    %1994 = vmatpush1.bf16.msra.mxu0 %v895
    %1995 = vmatprep.subr.bf16.mxu0 %v892
    %1996 = vmatpush1.bf16.msra.mxu0 %v891
    %1997 = vmatprep.subr.bf16.mxu0 %v888
    %1998 = vmatpush1.bf16.msra.mxu0 %v887
    %1999 = vmatprep.subr.bf16.mxu0 %v884
    %2000 = vmatpush1.bf16.msra.mxu0 %v883
    %2001 = vmatprep.subr.bf16.mxu0 %v880
    %2002 = vmatpush1.bf16.msra.mxu0 %v879
    %2003 = vmatprep.subr.bf16.mxu0 %v876
    %2004 = vmatpush1.bf16.msra.mxu0 %v875
    %2005 = vmatprep.subr.bf16.mxu0 %v936
    %2006 = vmatpush2.bf16.msra.mxu0 %v935
    %2007 = vmatprep.subr.bf16.mxu0 %v932
    %2008 = vmatpush2.bf16.msra.mxu0 %v931
    %2009 = vmatprep.subr.bf16.mxu0 %v928
    %2010 = vmatpush2.bf16.msra.mxu0 %v927
    %2011 = vmatprep.subr.bf16.mxu0 %v924
    %2012 = vmatpush2.bf16.msra.mxu0 %v923
    %2013 = vmatprep.subr.bf16.mxu0 %v920
    %2014 = vmatpush2.bf16.msra.mxu0 %v919
    %2015 = vmatprep.subr.bf16.mxu0 %v916
    %2016 = vmatpush2.bf16.msra.mxu0 %v915
    %2017 = vmatprep.subr.bf16.mxu0 %v912
    %2018 = vmatpush2.bf16.msra.mxu0 %v911
    %2019 = vmatprep.subr.bf16.mxu0 %v908
    %2020 = vmatpush2.bf16.msra.mxu0 %v907
    %2021 = vmatprep.mubr.bf16.mxu0 %v1947
    %2022 = vmatmul.mubr.bf16.gmra.mxu0 %v1946
    %v2023 = vpop.f32.mrf.mxu0
    %v2024 = vadd.f32 %v304, %v2023
    %v2025 = vpop.f32.mrf.mxu0
    %v2026 = vadd.f32 %v308, %v2025
    %v2027 = vpop.f32.mrf.mxu0
    %v2028 = vpop.f32.mrf.mxu0
    %2029 = vdwg.mxu0
    %v2030 = vxor.u32 %v1983, 2147483648
    %v2031 = vmul.f32 %v2030, 1.442695
    %v2032 = vpow.pop %v2031
    %v2033 = vadd.f32 %v2032, 1.0
    %v2034 = vrcp.pop %v2033
    %v2035 = vmul.f32 1.0, %v2034
    %v2036 = vxor.u32 %v1985, 2147483648
    %v2037 = vmul.f32 %v2036, 1.442695
    %v2038 = vpow.pop %v2037
    %v2039 = vadd.f32 %v2038, 1.0
    %v2040 = vrcp.pop %v2039
    %v2041 = vmul.f32 1.0, %v2040
    %v2042 = vtanh.pop %v2024
    %v2043 = vxor.u32 %v2026, 2147483648
    %v2044 = vmul.f32 %v2043, 1.442695
    %v2045 = vpow.pop %v2044
    %v2046 = vadd.f32 %v2045, 1.0
    %v2047 = vrcp.pop %v2046
    %v2048 = vmul.f32 1.0, %v2047
    %v2049 = vmul.f32 %v2041, %v1830
    %v2050 = vmul.f32 %v2035, %v2042
    %v2051 = vadd.f32 %v2049, %v2050
    %v2052 = vtanh.pop %v2051
    %v2053 = vmul.f32 %v2048, %v2052
    %2054 = vmatprep.subr.bf16.mxu0 %v470
    %2055 = vmatpush1.bf16.msra.mxu0 %v469
    %2056 = vmatprep.subr.bf16.mxu0 %v466
    %2057 = vmatpush1.bf16.msra.mxu0 %v465
    %2058 = vmatprep.subr.bf16.mxu0 %v462
    %2059 = vmatpush1.bf16.msra.mxu0 %v461
    %2060 = vmatprep.subr.bf16.mxu0 %v458
    %2061 = vmatpush1.bf16.msra.mxu0 %v457
    %2062 = vmatprep.subr.bf16.mxu0 %v454
    %2063 = vmatpush1.bf16.msra.mxu0 %v453
    %2064 = vmatprep.subr.bf16.mxu0 %v450
    %2065 = vmatpush1.bf16.msra.mxu0 %v449
    %2066 = vmatprep.subr.bf16.mxu0 %v446
    %2067 = vmatpush1.bf16.msra.mxu0 %v445
    %2068 = vmatprep.subr.bf16.mxu0 %v442
    %2069 = vmatpush1.bf16.msra.mxu0 %v441
    %2070 = vmatprep.subr.bf16.mxu0 0
    %2071 = vmatpush2.bf16.msra.mxu0 0
    %2072 = vmatprep.subr.bf16.mxu0 0
    %2073 = vmatpush2.bf16.msra.mxu0 0
    %2074 = vmatprep.subr.bf16.mxu0 0
    %2075 = vmatpush2.bf16.msra.mxu0 0
    %2076 = vmatprep.subr.bf16.mxu0 0
    %2077 = vmatpush2.bf16.msra.mxu0 0
    %2078 = vmatprep.subr.bf16.mxu0 0
    %2079 = vmatpush2.bf16.msra.mxu0 0
    %2080 = vmatprep.subr.bf16.mxu0 0
    %2081 = vmatpush2.bf16.msra.mxu0 0
    %2082 = vmatprep.subr.bf16.mxu0 0
    %2083 = vmatpush2.bf16.msra.mxu0 0
    %2084 = vmatprep.subr.bf16.mxu0 0
    %2085 = vmatpush2.bf16.msra.mxu0 0
    %2086 = vmatprep.mubr.bf16.mxu0 0
    %2087 = vmatmul.mubr.bf16.gmra.mxu0 %v1946
    %v2088 = vpop.f32.mrf.mxu0
    %v2089 = vadd.f32 0.0, %v2088
    %v2090 = vpop.f32.mrf.mxu0
    %v2091 = vadd.f32 0.0, %v2090
    %v2092 = vpop.f32.mrf.mxu0
    %v2093 = vpop.f32.mrf.mxu0
    %2094 = vdwg.mxu0
    %2095 = vmatprep.subr.bf16.mxu0 %v472
    %2096 = vmatpush1.bf16.msra.mxu0 %v471
    %2097 = vmatprep.subr.bf16.mxu0 %v468
    %2098 = vmatpush1.bf16.msra.mxu0 %v467
    %2099 = vmatprep.subr.bf16.mxu0 %v464
    %2100 = vmatpush1.bf16.msra.mxu0 %v463
    %2101 = vmatprep.subr.bf16.mxu0 %v460
    %2102 = vmatpush1.bf16.msra.mxu0 %v459
    %2103 = vmatprep.subr.bf16.mxu0 %v456
    %2104 = vmatpush1.bf16.msra.mxu0 %v455
    %2105 = vmatprep.subr.bf16.mxu0 %v452
    %2106 = vmatpush1.bf16.msra.mxu0 %v451
    %2107 = vmatprep.subr.bf16.mxu0 %v448
    %2108 = vmatpush1.bf16.msra.mxu0 %v447
    %2109 = vmatprep.subr.bf16.mxu0 %v444
    %2110 = vmatpush1.bf16.msra.mxu0 %v443
    %2111 = vmatprep.subr.bf16.mxu0 0
    %2112 = vmatpush2.bf16.msra.mxu0 0
    %2113 = vmatprep.subr.bf16.mxu0 0
    %2114 = vmatpush2.bf16.msra.mxu0 0
    %2115 = vmatprep.subr.bf16.mxu0 0
    %2116 = vmatpush2.bf16.msra.mxu0 0
    %2117 = vmatprep.subr.bf16.mxu0 0
    %2118 = vmatpush2.bf16.msra.mxu0 0
    %2119 = vmatprep.subr.bf16.mxu0 0
    %2120 = vmatpush2.bf16.msra.mxu0 0
    %2121 = vmatprep.subr.bf16.mxu0 0
    %2122 = vmatpush2.bf16.msra.mxu0 0
    %2123 = vmatprep.subr.bf16.mxu0 0
    %2124 = vmatpush2.bf16.msra.mxu0 0
    %2125 = vmatprep.subr.bf16.mxu0 0
    %2126 = vmatpush2.bf16.msra.mxu0 0
    %2127 = vmatprep.mubr.bf16.mxu0 0
    %2128 = vmatmul.mubr.bf16.gmra.mxu0 %v1946
    %v2129 = vpop.f32.mrf.mxu0
    %v2130 = vadd.f32 0.0, %v2129
    %v2131 = vpop.f32.mrf.mxu0
    %v2132 = vadd.f32 0.0, %v2131
    %v2133 = vpop.f32.mrf.mxu0
    %v2134 = vpop.f32.mrf.mxu0
    %2135 = vdwg.mxu0
    %v2140 = vrot.slane %v2089, 6
    %v2141 = vrot.slane %v2091, 6
    %v2142 = vrot.slane %v2130, 6
    %v2143 = vrot.slane %v2132, 6
    %v2148 = vadd.f32 %v244, %v2140
    %v2149 = vadd.f32 %v246, %v2141
    %v2150 = vadd.f32 %v287, %v2142
    %v2151 = vadd.f32 %v289, %v2143
    %v2152 = vxor.u32 %v2148, 2147483648
    %v2153 = vmul.f32 %v2152, 1.442695
    %v2154 = vpow.pop %v2153
    %v2155 = vadd.f32 %v2154, 1.0
    %v2156 = vrcp.pop %v2155
    %v2157 = vmul.f32 1.0, %v2156
    %v2158 = vxor.u32 %v2149, 2147483648
    %v2159 = vmul.f32 %v2158, 1.442695
    %v2160 = vpow.pop %v2159
    %v2161 = vadd.f32 %v2160, 1.0
    %v2162 = vrcp.pop %v2161
    %v2163 = vmul.f32 1.0, %v2162
    %v2164 = vtanh.pop %v2150
    %v2165 = vxor.u32 %v2151, 2147483648
    %v2166 = vmul.f32 %v2165, 1.442695
    %v2167 = vpow.pop %v2166
    %v2168 = vadd.f32 %v2167, 1.0
    %v2169 = vrcp.pop %v2168
    %v2170 = vmul.f32 1.0, %v2169
    %v2172 = vrot.slane %v1943, 6
    %v2174 = vmul.f32 %v2163, %v2172
    %v2175 = vmul.f32 %v2157, %v2164
    %v2176 = vadd.f32 %v2174, %v2175
    %v2177 = vtanh.pop %v2176
    %v2178 = vmul.f32 %v2170, %v2177
    %v2180 = vrot.slane %v2053, 6
    %v2182 = vpack.c.bf16 %v2178, %v2178
    %v2183 = vpack.c.bf16 %v2180, %v2180
    %v2186 = vrot.slane %v2182, 1
    %v2187 = vrot.slane %v2183, 1
    %2190 = vmatprep.subr.bf16.mxu0 %v902
    %2191 = vmatpush1.bf16.msra.mxu0 %v901
    %2192 = vmatprep.subr.bf16.mxu0 %v898
    %2193 = vmatpush1.bf16.msra.mxu0 %v897
    %2194 = vmatprep.subr.bf16.mxu0 %v894
    %2195 = vmatpush1.bf16.msra.mxu0 %v893
    %2196 = vmatprep.subr.bf16.mxu0 %v890
    %2197 = vmatpush1.bf16.msra.mxu0 %v889
    %2198 = vmatprep.subr.bf16.mxu0 %v886
    %2199 = vmatpush1.bf16.msra.mxu0 %v885
    %2200 = vmatprep.subr.bf16.mxu0 %v882
    %2201 = vmatpush1.bf16.msra.mxu0 %v881
    %2202 = vmatprep.subr.bf16.mxu0 %v878
    %2203 = vmatpush1.bf16.msra.mxu0 %v877
    %2204 = vmatprep.subr.bf16.mxu0 %v874
    %2205 = vmatpush1.bf16.msra.mxu0 %v873
    %2206 = vmatprep.subr.bf16.mxu0 %v934
    %2207 = vmatpush2.bf16.msra.mxu0 %v933
    %2208 = vmatprep.subr.bf16.mxu0 %v930
    %2209 = vmatpush2.bf16.msra.mxu0 %v929
    %2210 = vmatprep.subr.bf16.mxu0 %v926
    %2211 = vmatpush2.bf16.msra.mxu0 %v925
    %2212 = vmatprep.subr.bf16.mxu0 %v922
    %2213 = vmatpush2.bf16.msra.mxu0 %v921
    %2214 = vmatprep.subr.bf16.mxu0 %v918
    %2215 = vmatpush2.bf16.msra.mxu0 %v917
    %2216 = vmatprep.subr.bf16.mxu0 %v914
    %2217 = vmatpush2.bf16.msra.mxu0 %v913
    %2218 = vmatprep.subr.bf16.mxu0 %v910
    %2219 = vmatpush2.bf16.msra.mxu0 %v909
    %2220 = vmatprep.subr.bf16.mxu0 %v906
    %2221 = vmatpush2.bf16.msra.mxu0 %v905
    %2222 = vmatprep.mubr.bf16.mxu0 %v2187
    %2223 = vmatmul.mubr.bf16.gmra.mxu0 %v2186
    %v2224 = vpop.f32.mrf.mxu0
    %v2225 = vadd.f32 %v296, %v2224
    %v2226 = vpop.f32.mrf.mxu0
    %v2227 = vadd.f32 %v300, %v2226
    %v2228 = vpop.f32.mrf.mxu0
    %v2229 = vpop.f32.mrf.mxu0
    %2230 = vdwg.mxu0
    %2231 = vmatprep.subr.bf16.mxu0 %v904
    %2232 = vmatpush1.bf16.msra.mxu0 %v903
    %2233 = vmatprep.subr.bf16.mxu0 %v900
    %2234 = vmatpush1.bf16.msra.mxu0 %v899
    %2235 = vmatprep.subr.bf16.mxu0 %v896
    %2236 = vmatpush1.bf16.msra.mxu0 %v895
    %2237 = vmatprep.subr.bf16.mxu0 %v892
    %2238 = vmatpush1.bf16.msra.mxu0 %v891
    %2239 = vmatprep.subr.bf16.mxu0 %v888
    %2240 = vmatpush1.bf16.msra.mxu0 %v887
    %2241 = vmatprep.subr.bf16.mxu0 %v884
    %2242 = vmatpush1.bf16.msra.mxu0 %v883
    %2243 = vmatprep.subr.bf16.mxu0 %v880
    %2244 = vmatpush1.bf16.msra.mxu0 %v879
    %2245 = vmatprep.subr.bf16.mxu0 %v876
    %2246 = vmatpush1.bf16.msra.mxu0 %v875
    %2247 = vmatprep.subr.bf16.mxu0 %v936
    %2248 = vmatpush2.bf16.msra.mxu0 %v935
    %2249 = vmatprep.subr.bf16.mxu0 %v932
    %2250 = vmatpush2.bf16.msra.mxu0 %v931
    %2251 = vmatprep.subr.bf16.mxu0 %v928
    %2252 = vmatpush2.bf16.msra.mxu0 %v927
    %2253 = vmatprep.subr.bf16.mxu0 %v924
    %2254 = vmatpush2.bf16.msra.mxu0 %v923
    %2255 = vmatprep.subr.bf16.mxu0 %v920
    %2256 = vmatpush2.bf16.msra.mxu0 %v919
    %2257 = vmatprep.subr.bf16.mxu0 %v916
    %2258 = vmatpush2.bf16.msra.mxu0 %v915
    %2259 = vmatprep.subr.bf16.mxu0 %v912
    %2260 = vmatpush2.bf16.msra.mxu0 %v911
    %2261 = vmatprep.subr.bf16.mxu0 %v908
    %2262 = vmatpush2.bf16.msra.mxu0 %v907
    %2263 = vmatprep.mubr.bf16.mxu0 %v2187
    %2264 = vmatmul.mubr.bf16.gmra.mxu0 %v2186
    %v2265 = vpop.f32.mrf.mxu0
    %v2266 = vadd.f32 %v304, %v2265
    %v2267 = vpop.f32.mrf.mxu0
    %v2268 = vadd.f32 %v308, %v2267
    %v2269 = vpop.f32.mrf.mxu0
    %v2270 = vpop.f32.mrf.mxu0
    %2271 = vdwg.mxu0
    %v2272 = vxor.u32 %v2225, 2147483648
    %v2273 = vmul.f32 %v2272, 1.442695
    %v2274 = vpow.pop %v2273
    %v2275 = vadd.f32 %v2274, 1.0
    %v2276 = vrcp.pop %v2275
    %v2277 = vmul.f32 1.0, %v2276
    %v2278 = vxor.u32 %v2227, 2147483648
    %v2279 = vmul.f32 %v2278, 1.442695
    %v2280 = vpow.pop %v2279
    %v2281 = vadd.f32 %v2280, 1.0
    %v2282 = vrcp.pop %v2281
    %v2283 = vmul.f32 1.0, %v2282
    %v2284 = vtanh.pop %v2266
    %v2285 = vxor.u32 %v2268, 2147483648
    %v2286 = vmul.f32 %v2285, 1.442695
    %v2287 = vpow.pop %v2286
    %v2288 = vadd.f32 %v2287, 1.0
    %v2289 = vrcp.pop %v2288
    %v2290 = vmul.f32 1.0, %v2289
    %v2291 = vmul.f32 %v2283, %v2051
    %v2292 = vmul.f32 %v2277, %v2284
    %v2293 = vadd.f32 %v2291, %v2292
    %v2294 = vtanh.pop %v2293
    %v2295 = vmul.f32 %v2290, %v2294
    %2296 = vmatprep.subr.bf16.mxu0 %v470
    %2297 = vmatpush1.bf16.msra.mxu0 %v469
    %2298 = vmatprep.subr.bf16.mxu0 %v466
    %2299 = vmatpush1.bf16.msra.mxu0 %v465
    %2300 = vmatprep.subr.bf16.mxu0 %v462
    %2301 = vmatpush1.bf16.msra.mxu0 %v461
    %2302 = vmatprep.subr.bf16.mxu0 %v458
    %2303 = vmatpush1.bf16.msra.mxu0 %v457
    %2304 = vmatprep.subr.bf16.mxu0 %v454
    %2305 = vmatpush1.bf16.msra.mxu0 %v453
    %2306 = vmatprep.subr.bf16.mxu0 %v450
    %2307 = vmatpush1.bf16.msra.mxu0 %v449
    %2308 = vmatprep.subr.bf16.mxu0 %v446
    %2309 = vmatpush1.bf16.msra.mxu0 %v445
    %2310 = vmatprep.subr.bf16.mxu0 %v442
    %2311 = vmatpush1.bf16.msra.mxu0 %v441
    %2312 = vmatprep.subr.bf16.mxu0 0
    %2313 = vmatpush2.bf16.msra.mxu0 0
    %2314 = vmatprep.subr.bf16.mxu0 0
    %2315 = vmatpush2.bf16.msra.mxu0 0
    %2316 = vmatprep.subr.bf16.mxu0 0
    %2317 = vmatpush2.bf16.msra.mxu0 0
    %2318 = vmatprep.subr.bf16.mxu0 0
    %2319 = vmatpush2.bf16.msra.mxu0 0
    %2320 = vmatprep.subr.bf16.mxu0 0
    %2321 = vmatpush2.bf16.msra.mxu0 0
    %2322 = vmatprep.subr.bf16.mxu0 0
    %2323 = vmatpush2.bf16.msra.mxu0 0
    %2324 = vmatprep.subr.bf16.mxu0 0
    %2325 = vmatpush2.bf16.msra.mxu0 0
    %2326 = vmatprep.subr.bf16.mxu0 0
    %2327 = vmatpush2.bf16.msra.mxu0 0
    %2328 = vmatprep.mubr.bf16.mxu0 0
    %2329 = vmatmul.mubr.bf16.gmra.mxu0 %v2186
    %v2330 = vpop.f32.mrf.mxu0
    %v2331 = vadd.f32 0.0, %v2330
    %v2332 = vpop.f32.mrf.mxu0
    %v2333 = vadd.f32 0.0, %v2332
    %v2334 = vpop.f32.mrf.mxu0
    %v2335 = vpop.f32.mrf.mxu0
    %2336 = vdwg.mxu0
    %2337 = vmatprep.subr.bf16.mxu0 %v472
    %2338 = vmatpush1.bf16.msra.mxu0 %v471
    %2339 = vmatprep.subr.bf16.mxu0 %v468
    %2340 = vmatpush1.bf16.msra.mxu0 %v467
    %2341 = vmatprep.subr.bf16.mxu0 %v464
    %2342 = vmatpush1.bf16.msra.mxu0 %v463
    %2343 = vmatprep.subr.bf16.mxu0 %v460
    %2344 = vmatpush1.bf16.msra.mxu0 %v459
    %2345 = vmatprep.subr.bf16.mxu0 %v456
    %2346 = vmatpush1.bf16.msra.mxu0 %v455
    %2347 = vmatprep.subr.bf16.mxu0 %v452
    %2348 = vmatpush1.bf16.msra.mxu0 %v451
    %2349 = vmatprep.subr.bf16.mxu0 %v448
    %2350 = vmatpush1.bf16.msra.mxu0 %v447
    %2351 = vmatprep.subr.bf16.mxu0 %v444
    %2352 = vmatpush1.bf16.msra.mxu0 %v443
    %2353 = vmatprep.subr.bf16.mxu0 0
    %2354 = vmatpush2.bf16.msra.mxu0 0
    %2355 = vmatprep.subr.bf16.mxu0 0
    %2356 = vmatpush2.bf16.msra.mxu0 0
    %2357 = vmatprep.subr.bf16.mxu0 0
    %2358 = vmatpush2.bf16.msra.mxu0 0
    %2359 = vmatprep.subr.bf16.mxu0 0
    %2360 = vmatpush2.bf16.msra.mxu0 0
    %2361 = vmatprep.subr.bf16.mxu0 0
    %2362 = vmatpush2.bf16.msra.mxu0 0
    %2363 = vmatprep.subr.bf16.mxu0 0
    %2364 = vmatpush2.bf16.msra.mxu0 0
    %2365 = vmatprep.subr.bf16.mxu0 0
    %2366 = vmatpush2.bf16.msra.mxu0 0
    %2367 = vmatprep.subr.bf16.mxu0 0
    %2368 = vmatpush2.bf16.msra.mxu0 0
    %2369 = vmatprep.mubr.bf16.mxu0 0
    %2370 = vmatmul.mubr.bf16.gmra.mxu0 %v2186
    %v2371 = vpop.f32.mrf.mxu0
    %v2372 = vadd.f32 0.0, %v2371
    %v2373 = vpop.f32.mrf.mxu0
    %v2374 = vadd.f32 0.0, %v2373
    %v2375 = vpop.f32.mrf.mxu0
    %v2376 = vpop.f32.mrf.mxu0
    %2377 = vdwg.mxu0
    %v2382 = vrot.slane %v2331, 4
    %v2383 = vrot.slane %v2333, 4
    %v2384 = vrot.slane %v2372, 4
    %v2385 = vrot.slane %v2374, 4
    %v2390 = vadd.f32 %v244, %v2382
    %v2391 = vadd.f32 %v246, %v2383
    %v2392 = vadd.f32 %v287, %v2384
    %v2393 = vadd.f32 %v289, %v2385
    %v2394 = vxor.u32 %v2390, 2147483648
    %v2395 = vmul.f32 %v2394, 1.442695
    %v2396 = vpow.pop %v2395
    %v2397 = vadd.f32 %v2396, 1.0
    %v2398 = vrcp.pop %v2397
    %v2399 = vmul.f32 1.0, %v2398
    %v2400 = vxor.u32 %v2391, 2147483648
    %v2401 = vmul.f32 %v2400, 1.442695
    %v2402 = vpow.pop %v2401
    %v2403 = vadd.f32 %v2402, 1.0
    %v2404 = vrcp.pop %v2403
    %v2405 = vmul.f32 1.0, %v2404
    %v2406 = vtanh.pop %v2392
    %v2407 = vxor.u32 %v2393, 2147483648
    %v2408 = vmul.f32 %v2407, 1.442695
    %v2409 = vpow.pop %v2408
    %v2410 = vadd.f32 %v2409, 1.0
    %v2411 = vrcp.pop %v2410
    %v2412 = vmul.f32 1.0, %v2411
    %v2414 = vrot.slane %v2176, 6
    %v2416 = vmul.f32 %v2405, %v2414
    %v2417 = vmul.f32 %v2399, %v2406
    %v2418 = vadd.f32 %v2416, %v2417
    %v2419 = vtanh.pop %v2418
    %v2420 = vmul.f32 %v2412, %v2419
    %v2422 = vrot.slane %v2295, 4
    %v2424 = vpack.c.bf16 %v2420, %v2420
    %v2425 = vpack.c.bf16 %v2422, %v2422
    %v2428 = vrot.slane %v2424, 2
    %v2429 = vrot.slane %v2425, 2
    %2432 = vmatprep.subr.bf16.mxu0 %v902
    %2433 = vmatpush1.bf16.msra.mxu0 %v901
    %2434 = vmatprep.subr.bf16.mxu0 %v898
    %2435 = vmatpush1.bf16.msra.mxu0 %v897
    %2436 = vmatprep.subr.bf16.mxu0 %v894
    %2437 = vmatpush1.bf16.msra.mxu0 %v893
    %2438 = vmatprep.subr.bf16.mxu0 %v890
    %2439 = vmatpush1.bf16.msra.mxu0 %v889
    %2440 = vmatprep.subr.bf16.mxu0 %v886
    %2441 = vmatpush1.bf16.msra.mxu0 %v885
    %2442 = vmatprep.subr.bf16.mxu0 %v882
    %2443 = vmatpush1.bf16.msra.mxu0 %v881
    %2444 = vmatprep.subr.bf16.mxu0 %v878
    %2445 = vmatpush1.bf16.msra.mxu0 %v877
    %2446 = vmatprep.subr.bf16.mxu0 %v874
    %2447 = vmatpush1.bf16.msra.mxu0 %v873
    %2448 = vmatprep.subr.bf16.mxu0 %v934
    %2449 = vmatpush2.bf16.msra.mxu0 %v933
    %2450 = vmatprep.subr.bf16.mxu0 %v930
    %2451 = vmatpush2.bf16.msra.mxu0 %v929
    %2452 = vmatprep.subr.bf16.mxu0 %v926
    %2453 = vmatpush2.bf16.msra.mxu0 %v925
    %2454 = vmatprep.subr.bf16.mxu0 %v922
    %2455 = vmatpush2.bf16.msra.mxu0 %v921
    %2456 = vmatprep.subr.bf16.mxu0 %v918
    %2457 = vmatpush2.bf16.msra.mxu0 %v917
    %2458 = vmatprep.subr.bf16.mxu0 %v914
    %2459 = vmatpush2.bf16.msra.mxu0 %v913
    %2460 = vmatprep.subr.bf16.mxu0 %v910
    %2461 = vmatpush2.bf16.msra.mxu0 %v909
    %2462 = vmatprep.subr.bf16.mxu0 %v906
    %2463 = vmatpush2.bf16.msra.mxu0 %v905
    %2464 = vmatprep.mubr.bf16.mxu0 %v2429
    %2465 = vmatmul.mubr.bf16.gmra.mxu0 %v2428
    %v2466 = vpop.f32.mrf.mxu0
    %v2467 = vadd.f32 %v296, %v2466
    %v2468 = vpop.f32.mrf.mxu0
    %v2469 = vadd.f32 %v300, %v2468
    %v2470 = vpop.f32.mrf.mxu0
    %v2471 = vpop.f32.mrf.mxu0
    %2472 = vdwg.mxu0
    %2473 = vmatprep.subr.bf16.mxu0 %v904
    %2474 = vmatpush1.bf16.msra.mxu0 %v903
    %2475 = vmatprep.subr.bf16.mxu0 %v900
    %2476 = vmatpush1.bf16.msra.mxu0 %v899
    %2477 = vmatprep.subr.bf16.mxu0 %v896
    %2478 = vmatpush1.bf16.msra.mxu0 %v895
    %2479 = vmatprep.subr.bf16.mxu0 %v892
    %2480 = vmatpush1.bf16.msra.mxu0 %v891
    %2481 = vmatprep.subr.bf16.mxu0 %v888
    %2482 = vmatpush1.bf16.msra.mxu0 %v887
    %2483 = vmatprep.subr.bf16.mxu0 %v884
    %2484 = vmatpush1.bf16.msra.mxu0 %v883
    %2485 = vmatprep.subr.bf16.mxu0 %v880
    %2486 = vmatpush1.bf16.msra.mxu0 %v879
    %2487 = vmatprep.subr.bf16.mxu0 %v876
    %2488 = vmatpush1.bf16.msra.mxu0 %v875
    %2489 = vmatprep.subr.bf16.mxu0 %v936
    %2490 = vmatpush2.bf16.msra.mxu0 %v935
    %2491 = vmatprep.subr.bf16.mxu0 %v932
    %2492 = vmatpush2.bf16.msra.mxu0 %v931
    %2493 = vmatprep.subr.bf16.mxu0 %v928
    %2494 = vmatpush2.bf16.msra.mxu0 %v927
    %2495 = vmatprep.subr.bf16.mxu0 %v924
    %2496 = vmatpush2.bf16.msra.mxu0 %v923
    %2497 = vmatprep.subr.bf16.mxu0 %v920
    %2498 = vmatpush2.bf16.msra.mxu0 %v919
    %2499 = vmatprep.subr.bf16.mxu0 %v916
    %2500 = vmatpush2.bf16.msra.mxu0 %v915
    %2501 = vmatprep.subr.bf16.mxu0 %v912
    %2502 = vmatpush2.bf16.msra.mxu0 %v911
    %2503 = vmatprep.subr.bf16.mxu0 %v908
    %2504 = vmatpush2.bf16.msra.mxu0 %v907
    %2505 = vmatprep.mubr.bf16.mxu0 %v2429
    %2506 = vmatmul.mubr.bf16.gmra.mxu0 %v2428
    %v2507 = vpop.f32.mrf.mxu0
    %v2508 = vadd.f32 %v304, %v2507
    %v2509 = vpop.f32.mrf.mxu0
    %v2510 = vadd.f32 %v308, %v2509
    %v2511 = vpop.f32.mrf.mxu0
    %v2512 = vpop.f32.mrf.mxu0
    %2513 = vdwg.mxu0
    %v2514 = vxor.u32 %v2467, 2147483648
    %v2515 = vmul.f32 %v2514, 1.442695
    %v2516 = vpow.pop %v2515
    %v2517 = vadd.f32 %v2516, 1.0
    %v2518 = vrcp.pop %v2517
    %v2519 = vmul.f32 1.0, %v2518
    %v2520 = vxor.u32 %v2469, 2147483648
    %v2521 = vmul.f32 %v2520, 1.442695
    %v2522 = vpow.pop %v2521
    %v2523 = vadd.f32 %v2522, 1.0
    %v2524 = vrcp.pop %v2523
    %v2525 = vmul.f32 1.0, %v2524
    %v2526 = vtanh.pop %v2508
    %v2527 = vxor.u32 %v2510, 2147483648
    %v2528 = vmul.f32 %v2527, 1.442695
    %v2529 = vpow.pop %v2528
    %v2530 = vadd.f32 %v2529, 1.0
    %v2531 = vrcp.pop %v2530
    %v2532 = vmul.f32 1.0, %v2531
    %v2533 = vmul.f32 %v2525, %v2293
    %v2534 = vmul.f32 %v2519, %v2526
    %v2535 = vadd.f32 %v2533, %v2534
    %v2536 = vtanh.pop %v2535
    %v2537 = vmul.f32 %v2532, %v2536
    %2538 = vmatprep.subr.bf16.mxu0 %v470
    %2539 = vmatpush1.bf16.msra.mxu0 %v469
    %2540 = vmatprep.subr.bf16.mxu0 %v466
    %2541 = vmatpush1.bf16.msra.mxu0 %v465
    %2542 = vmatprep.subr.bf16.mxu0 %v462
    %2543 = vmatpush1.bf16.msra.mxu0 %v461
    %2544 = vmatprep.subr.bf16.mxu0 %v458
    %2545 = vmatpush1.bf16.msra.mxu0 %v457
    %2546 = vmatprep.subr.bf16.mxu0 %v454
    %2547 = vmatpush1.bf16.msra.mxu0 %v453
    %2548 = vmatprep.subr.bf16.mxu0 %v450
    %2549 = vmatpush1.bf16.msra.mxu0 %v449
    %2550 = vmatprep.subr.bf16.mxu0 %v446
    %2551 = vmatpush1.bf16.msra.mxu0 %v445
    %2552 = vmatprep.subr.bf16.mxu0 %v442
    %2553 = vmatpush1.bf16.msra.mxu0 %v441
    %2554 = vmatprep.subr.bf16.mxu0 0
    %2555 = vmatpush2.bf16.msra.mxu0 0
    %2556 = vmatprep.subr.bf16.mxu0 0
    %2557 = vmatpush2.bf16.msra.mxu0 0
    %2558 = vmatprep.subr.bf16.mxu0 0
    %2559 = vmatpush2.bf16.msra.mxu0 0
    %2560 = vmatprep.subr.bf16.mxu0 0
    %2561 = vmatpush2.bf16.msra.mxu0 0
    %2562 = vmatprep.subr.bf16.mxu0 0
    %2563 = vmatpush2.bf16.msra.mxu0 0
    %2564 = vmatprep.subr.bf16.mxu0 0
    %2565 = vmatpush2.bf16.msra.mxu0 0
    %2566 = vmatprep.subr.bf16.mxu0 0
    %2567 = vmatpush2.bf16.msra.mxu0 0
    %2568 = vmatprep.subr.bf16.mxu0 0
    %2569 = vmatpush2.bf16.msra.mxu0 0
    %2570 = vmatprep.mubr.bf16.mxu0 0
    %2571 = vmatmul.mubr.bf16.gmra.mxu0 %v2428
    %v2572 = vpop.f32.mrf.mxu0
    %v2573 = vadd.f32 0.0, %v2572
    %v2574 = vpop.f32.mrf.mxu0
    %v2575 = vadd.f32 0.0, %v2574
    %v2576 = vpop.f32.mrf.mxu0
    %v2577 = vpop.f32.mrf.mxu0
    %2578 = vdwg.mxu0
    %2579 = vmatprep.subr.bf16.mxu0 %v472
    %2580 = vmatpush1.bf16.msra.mxu0 %v471
    %2581 = vmatprep.subr.bf16.mxu0 %v468
    %2582 = vmatpush1.bf16.msra.mxu0 %v467
    %2583 = vmatprep.subr.bf16.mxu0 %v464
    %2584 = vmatpush1.bf16.msra.mxu0 %v463
    %2585 = vmatprep.subr.bf16.mxu0 %v460
    %2586 = vmatpush1.bf16.msra.mxu0 %v459
    %2587 = vmatprep.subr.bf16.mxu0 %v456
    %2588 = vmatpush1.bf16.msra.mxu0 %v455
    %2589 = vmatprep.subr.bf16.mxu0 %v452
    %2590 = vmatpush1.bf16.msra.mxu0 %v451
    %2591 = vmatprep.subr.bf16.mxu0 %v448
    %2592 = vmatpush1.bf16.msra.mxu0 %v447
    %2593 = vmatprep.subr.bf16.mxu0 %v444
    %2594 = vmatpush1.bf16.msra.mxu0 %v443
    %2595 = vmatprep.subr.bf16.mxu0 0
    %2596 = vmatpush2.bf16.msra.mxu0 0
    %2597 = vmatprep.subr.bf16.mxu0 0
    %2598 = vmatpush2.bf16.msra.mxu0 0
    %2599 = vmatprep.subr.bf16.mxu0 0
    %2600 = vmatpush2.bf16.msra.mxu0 0
    %2601 = vmatprep.subr.bf16.mxu0 0
    %2602 = vmatpush2.bf16.msra.mxu0 0
    %2603 = vmatprep.subr.bf16.mxu0 0
    %2604 = vmatpush2.bf16.msra.mxu0 0
    %2605 = vmatprep.subr.bf16.mxu0 0
    %2606 = vmatpush2.bf16.msra.mxu0 0
    %2607 = vmatprep.subr.bf16.mxu0 0
    %2608 = vmatpush2.bf16.msra.mxu0 0
    %2609 = vmatprep.subr.bf16.mxu0 0
    %2610 = vmatpush2.bf16.msra.mxu0 0
    %2611 = vmatprep.mubr.bf16.mxu0 0
    %2612 = vmatmul.mubr.bf16.gmra.mxu0 %v2428
    %v2613 = vpop.f32.mrf.mxu0
    %v2614 = vadd.f32 0.0, %v2613
    %v2615 = vpop.f32.mrf.mxu0
    %v2616 = vadd.f32 0.0, %v2615
    %v2617 = vpop.f32.mrf.mxu0
    %v2618 = vpop.f32.mrf.mxu0
    %2619 = vdwg.mxu0
    %v2624 = vrot.slane %v2573, 2
    %v2625 = vrot.slane %v2575, 2
    %v2626 = vrot.slane %v2614, 2
    %v2627 = vrot.slane %v2616, 2
    %v2632 = vadd.f32 %v244, %v2624
    %v2633 = vadd.f32 %v246, %v2625
    %v2634 = vadd.f32 %v287, %v2626
    %v2635 = vadd.f32 %v289, %v2627
    %v2636 = vxor.u32 %v2632, 2147483648
    %v2637 = vmul.f32 %v2636, 1.442695
    %v2638 = vpow.pop %v2637
    %v2639 = vadd.f32 %v2638, 1.0
    %v2640 = vrcp.pop %v2639
    %v2641 = vmul.f32 1.0, %v2640
    %v2642 = vxor.u32 %v2633, 2147483648
    %v2643 = vmul.f32 %v2642, 1.442695
    %v2644 = vpow.pop %v2643
    %v2645 = vadd.f32 %v2644, 1.0
    %v2646 = vrcp.pop %v2645
    %v2647 = vmul.f32 1.0, %v2646
    %v2648 = vtanh.pop %v2634
    %v2649 = vxor.u32 %v2635, 2147483648
    %v2650 = vmul.f32 %v2649, 1.442695
    %v2651 = vpow.pop %v2650
    %v2652 = vadd.f32 %v2651, 1.0
    %v2653 = vrcp.pop %v2652
    %v2654 = vmul.f32 1.0, %v2653
    %v2656 = vrot.slane %v2418, 6
    %v2658 = vmul.f32 %v2647, %v2656
    %v2659 = vmul.f32 %v2641, %v2648
    %v2660 = vadd.f32 %v2658, %v2659
    %v2661 = vtanh.pop %v2660
    %v2662 = vmul.f32 %v2654, %v2661
    %v2664 = vrot.slane %v2537, 2
    %v2666 = vpack.c.bf16 %v2662, %v2662
    %v2667 = vpack.c.bf16 %v2664, %v2664
    %v2670 = vrot.slane %v2666, 3
    %v2671 = vrot.slane %v2667, 3
    %2674 = vmatprep.subr.bf16.mxu0 %v902
    %2675 = vmatpush1.bf16.msra.mxu0 %v901
    %2676 = vmatprep.subr.bf16.mxu0 %v898
    %2677 = vmatpush1.bf16.msra.mxu0 %v897
    %2678 = vmatprep.subr.bf16.mxu0 %v894
    %2679 = vmatpush1.bf16.msra.mxu0 %v893
    %2680 = vmatprep.subr.bf16.mxu0 %v890
    %2681 = vmatpush1.bf16.msra.mxu0 %v889
    %2682 = vmatprep.subr.bf16.mxu0 %v886
    %2683 = vmatpush1.bf16.msra.mxu0 %v885
    %2684 = vmatprep.subr.bf16.mxu0 %v882
    %2685 = vmatpush1.bf16.msra.mxu0 %v881
    %2686 = vmatprep.subr.bf16.mxu0 %v878
    %2687 = vmatpush1.bf16.msra.mxu0 %v877
    %2688 = vmatprep.subr.bf16.mxu0 %v874
    %2689 = vmatpush1.bf16.msra.mxu0 %v873
    %2690 = vmatprep.subr.bf16.mxu0 %v934
    %2691 = vmatpush2.bf16.msra.mxu0 %v933
    %2692 = vmatprep.subr.bf16.mxu0 %v930
    %2693 = vmatpush2.bf16.msra.mxu0 %v929
    %2694 = vmatprep.subr.bf16.mxu0 %v926
    %2695 = vmatpush2.bf16.msra.mxu0 %v925
    %2696 = vmatprep.subr.bf16.mxu0 %v922
    %2697 = vmatpush2.bf16.msra.mxu0 %v921
    %2698 = vmatprep.subr.bf16.mxu0 %v918
    %2699 = vmatpush2.bf16.msra.mxu0 %v917
    %2700 = vmatprep.subr.bf16.mxu0 %v914
    %2701 = vmatpush2.bf16.msra.mxu0 %v913
    %2702 = vmatprep.subr.bf16.mxu0 %v910
    %2703 = vmatpush2.bf16.msra.mxu0 %v909
    %2704 = vmatprep.subr.bf16.mxu0 %v906
    %2705 = vmatpush2.bf16.msra.mxu0 %v905
    %2706 = vmatprep.mubr.bf16.mxu0 %v2671
    %2707 = vmatmul.mubr.bf16.gmra.mxu0 %v2670
    %v2708 = vpop.f32.mrf.mxu0
    %v2709 = vadd.f32 %v296, %v2708
    %v2710 = vpop.f32.mrf.mxu0
    %v2711 = vadd.f32 %v300, %v2710
    %v2712 = vpop.f32.mrf.mxu0
    %v2713 = vpop.f32.mrf.mxu0
    %2714 = vdwg.mxu0
    %2715 = vmatprep.subr.bf16.mxu0 %v904
    %2716 = vmatpush1.bf16.msra.mxu0 %v903
    %2717 = vmatprep.subr.bf16.mxu0 %v900
    %2718 = vmatpush1.bf16.msra.mxu0 %v899
    %2719 = vmatprep.subr.bf16.mxu0 %v896
    %2720 = vmatpush1.bf16.msra.mxu0 %v895
    %2721 = vmatprep.subr.bf16.mxu0 %v892
    %2722 = vmatpush1.bf16.msra.mxu0 %v891
    %2723 = vmatprep.subr.bf16.mxu0 %v888
    %2724 = vmatpush1.bf16.msra.mxu0 %v887
    %2725 = vmatprep.subr.bf16.mxu0 %v884
    %2726 = vmatpush1.bf16.msra.mxu0 %v883
    %2727 = vmatprep.subr.bf16.mxu0 %v880
    %2728 = vmatpush1.bf16.msra.mxu0 %v879
    %2729 = vmatprep.subr.bf16.mxu0 %v876
    %2730 = vmatpush1.bf16.msra.mxu0 %v875
    %2731 = vmatprep.subr.bf16.mxu0 %v936
    %2732 = vmatpush2.bf16.msra.mxu0 %v935
    %2733 = vmatprep.subr.bf16.mxu0 %v932
    %2734 = vmatpush2.bf16.msra.mxu0 %v931
    %2735 = vmatprep.subr.bf16.mxu0 %v928
    %2736 = vmatpush2.bf16.msra.mxu0 %v927
    %2737 = vmatprep.subr.bf16.mxu0 %v924
    %2738 = vmatpush2.bf16.msra.mxu0 %v923
    %2739 = vmatprep.subr.bf16.mxu0 %v920
    %2740 = vmatpush2.bf16.msra.mxu0 %v919
    %2741 = vmatprep.subr.bf16.mxu0 %v916
    %2742 = vmatpush2.bf16.msra.mxu0 %v915
    %2743 = vmatprep.subr.bf16.mxu0 %v912
    %2744 = vmatpush2.bf16.msra.mxu0 %v911
    %2745 = vmatprep.subr.bf16.mxu0 %v908
    %2746 = vmatpush2.bf16.msra.mxu0 %v907
    %2747 = vmatprep.mubr.bf16.mxu0 %v2671
    %2748 = vmatmul.mubr.bf16.gmra.mxu0 %v2670
    %v2749 = vpop.f32.mrf.mxu0
    %v2750 = vadd.f32 %v304, %v2749
    %v2751 = vpop.f32.mrf.mxu0
    %v2752 = vadd.f32 %v308, %v2751
    %v2753 = vpop.f32.mrf.mxu0
    %v2754 = vpop.f32.mrf.mxu0
    %2755 = vdwg.mxu0
    %v2756 = vxor.u32 %v2709, 2147483648
    %v2757 = vmul.f32 %v2756, 1.442695
    %v2758 = vpow.pop %v2757
    %v2759 = vadd.f32 %v2758, 1.0
    %v2760 = vrcp.pop %v2759
    %v2761 = vmul.f32 1.0, %v2760
    %v2762 = vxor.u32 %v2711, 2147483648
    %v2763 = vmul.f32 %v2762, 1.442695
    %v2764 = vpow.pop %v2763
    %v2765 = vadd.f32 %v2764, 1.0
    %v2766 = vrcp.pop %v2765
    %v2767 = vmul.f32 1.0, %v2766
    %v2768 = vtanh.pop %v2750
    %v2769 = vxor.u32 %v2752, 2147483648
    %v2770 = vmul.f32 %v2769, 1.442695
    %v2771 = vpow.pop %v2770
    %v2772 = vadd.f32 %v2771, 1.0
    %v2773 = vrcp.pop %v2772
    %v2774 = vmul.f32 1.0, %v2773
    %v2775 = vmul.f32 %v2767, %v2535
    %v2776 = vmul.f32 %v2761, %v2768
    %v2777 = vadd.f32 %v2775, %v2776
    %v2778 = vtanh.pop %v2777
    %v2779 = vmul.f32 %v2774, %v2778
    %v2780 = vpack.c.bf16 %v2779, %v2779
    %v2781 = vld [vmem:[#allocation10] sm:$0xf]
    %v2782 = vld [vmem:[#allocation10 + $0x4] sm:$0xf]
    %v2783 = vld [vmem:[#allocation10 + $0x8] sm:$0xf]
    %v2784 = vld [vmem:[#allocation10 + $0xc] sm:$0xf]
    %v2785 = vld [vmem:[#allocation10 + $0x10] sm:$0xf]
    %v2786 = vld [vmem:[#allocation10 + $0x14] sm:$0xf]
    %v2787 = vld [vmem:[#allocation10 + $0x18] sm:$0xf]
    %v2788 = vld [vmem:[#allocation10 + $0x1c] sm:$0xf]
    %v2789 = vld [vmem:[#allocation10 + $0x20] sm:$0xf]
    %v2790 = vld [vmem:[#allocation10 + $0x24] sm:$0xf]
    %v2791 = vld [vmem:[#allocation10 + $0x28] sm:$0xf]
    %v2792 = vld [vmem:[#allocation10 + $0x2c] sm:$0xf]
    %v2793 = vld [vmem:[#allocation10 + $0x30] sm:$0xf]
    %v2794 = vld [vmem:[#allocation10 + $0x34] sm:$0xf]
    %v2795 = vld [vmem:[#allocation10 + $0x38] sm:$0xf]
    %v2796 = vld [vmem:[#allocation10 + $0x3c] sm:$0xf]
    %v2797 = vld [vmem:[%s7] sm:$0x1]
    %v2799 = vlaneseq
    %v2800 = vshrl.u32 %v2799, 7
    %v2801 = vsub.s32 0, %v2800
    %v2802 = vrot.slane %v2797, %v2801
    %v2820 = vunpack.c.l.b16 %v2781
    %v2821 = vunpack.c.l.b16 %v2782
    %v2822 = vunpack.c.l.b16 %v2783
    %v2823 = vunpack.c.l.b16 %v2784
    %v2824 = vunpack.c.l.b16 %v2785
    %v2825 = vunpack.c.l.b16 %v2786
    %v2826 = vunpack.c.l.b16 %v2787
    %v2827 = vunpack.c.l.b16 %v2788
    %v2828 = vunpack.c.l.b16 %v2789
    %v2829 = vunpack.c.l.b16 %v2790
    %v2830 = vunpack.c.l.b16 %v2791
    %v2831 = vunpack.c.l.b16 %v2792
    %v2832 = vunpack.c.l.b16 %v2793
    %v2833 = vunpack.c.l.b16 %v2794
    %v2834 = vunpack.c.l.b16 %v2795
    %v2835 = vunpack.c.l.b16 %v2796
    %v2836 = vpack.c.b16 %v2821, %v2820
    %v2837 = vpack.c.b16 %v2823, %v2822
    %v2838 = vpack.c.b16 %v2825, %v2824
    %v2839 = vpack.c.b16 %v2827, %v2826
    %v2840 = vpack.c.b16 %v2829, %v2828
    %v2841 = vpack.c.b16 %v2831, %v2830
    %v2842 = vpack.c.b16 %v2833, %v2832
    %v2843 = vpack.c.b16 %v2835, %v2834
    %2852 = vmatprep.subr.bf16.mxu0 0
    %2853 = vmatpush1.bf16.msra.mxu0 %v2843
    %2854 = vmatprep.subr.bf16.mxu0 0
    %2855 = vmatpush1.bf16.msra.mxu0 %v2842
    %2856 = vmatprep.subr.bf16.mxu0 0
    %2857 = vmatpush1.bf16.msra.mxu0 %v2841
    %2858 = vmatprep.subr.bf16.mxu0 0
    %2859 = vmatpush1.bf16.msra.mxu0 %v2840
    %2860 = vmatprep.subr.bf16.mxu0 0
    %2861 = vmatpush1.bf16.msra.mxu0 %v2839
    %2862 = vmatprep.subr.bf16.mxu0 0
    %2863 = vmatpush1.bf16.msra.mxu0 %v2838
    %2864 = vmatprep.subr.bf16.mxu0 0
    %2865 = vmatpush1.bf16.msra.mxu0 %v2837
    %2866 = vmatprep.subr.bf16.mxu0 0
    %2867 = vmatpush1.bf16.msra.mxu0 %v2836
    %2868 = vmatprep.subr.bf16.mxu0 0
    %2869 = vmatpush2.bf16.msra.mxu0 0
    %2870 = vmatprep.subr.bf16.mxu0 0
    %2871 = vmatpush2.bf16.msra.mxu0 0
    %2872 = vmatprep.subr.bf16.mxu0 0
    %2873 = vmatpush2.bf16.msra.mxu0 0
    %2874 = vmatprep.subr.bf16.mxu0 0
    %2875 = vmatpush2.bf16.msra.mxu0 0
    %2876 = vmatprep.subr.bf16.mxu0 0
    %2877 = vmatpush2.bf16.msra.mxu0 0
    %2878 = vmatprep.subr.bf16.mxu0 0
    %2879 = vmatpush2.bf16.msra.mxu0 0
    %2880 = vmatprep.subr.bf16.mxu0 0
    %2881 = vmatpush2.bf16.msra.mxu0 0
    %2882 = vmatprep.subr.bf16.mxu0 0
    %2883 = vmatpush2.bf16.msra.mxu0 0
    %2884 = vmatprep.mubr.bf16.mxu0 0
    %2885 = vmatmul.mubr.bf16.gmra.mxu0 %v2780
    %v2886 = vpop.f32.mrf.mxu0
    %v2887 = vadd.f32 %v2802, %v2886
    %v2888 = vpop.f32.mrf.mxu0
    %v2889 = vpop.f32.mrf.mxu0
    %v2890 = vpop.f32.mrf.mxu0
    %2891 = vdwg.mxu0
    %2892 = vst [vmem:[#allocation11] sm:$0x3] %v2887
    // Predicated region
    $region54: #{tpu_custom_call.1} parent=1 // pred_check
      _
    $region55: #{tpu_custom_call.1} parent=1 // pred_check_branch
      %2894 = sbr.rel (0) target = $region57
    $region56: #{tpu_custom_call.1} parent=1 // pred_region
      %s2896 = ssub.s32 32, 32
      %2897 = vsyncadd [#allocation4], %s2896
      %s2899 = sshll.u32 [#allocation11], 4
      %s2900 = int_to_ptr.vmem [resolvable:$true] %s2899
      %2902 = dma.vmem_to_hbm [thread:$0]  %s2900, 32, %s8, [#allocation4]
    $region57: #{tpu_custom_call.1} parent=1 // pred_fallthru
      _
    // Predicated region
    $region58: #{tpu_custom_call.1} parent=1 // pred_check
      _
    $region59: #{tpu_custom_call.1} parent=1 // pred_check_branch
      %2904 = sbr.rel (0) target = $region61
    $region60: #{tpu_custom_call.1} parent=1 // pred_region
      %2905 = dma.done [#allocation4], 32
    $region61: #{tpu_custom_call.1} parent=1 // pred_fallthru
      _
    %2906 = vsyncpa [#allocation3], 1
    %2907 = vsyncpa [#allocation6], 1
    %2908 = vsyncpa [#allocation9], 1
    %2909 = vsyncpa [#allocation4], 1

</llo_original>
